<compile_context>
chip_gen: v7x
topology: tpu7x:2x2x1
jax: 0.10.0
libtpu: 0.0.40
codegen_flags: <defaults>
</compile_context>

<pallas_src>
import jax
import jax.numpy as jnp
import numpy as np
from jax.experimental import pallas as pl
from jax.experimental.pallas import tpu as pltpu


def dkt_kernel(x_ref, w_ih_ref, w_hh_ref, b_ref, w_fc_ref, b_fc_ref,
               pred_ref, h_out_ref, h_state, c_state, gx_ref, h_acc):
    """One grid step = one (batch-tile, time-chunk) block."""
    bt, Hp = h_state.shape                 # Hp is the 128-padded hidden size
    t_chunk = h_acc.shape[1]
    Op = w_fc_ref.shape[1]
    D = x_ref.shape[-1]
    n_rows = bt * t_chunk

    # Reset carried state at the start of each batch tile's time loop.
    # (Correct only because the time axis is the innermost, sequentially
    #  executed "arbitrary" grid axis.)
    @pl.when(pl.program_id(1) == 0)
    def _():
        h_state[...] = jnp.zeros_like(h_state)
        c_state[...] = jnp.zeros_like(c_state)

    # ---- Fused input projection for the whole chunk (off the serial path). ----
    # One (n_rows, D) @ (D, 4*Hp) GEMM covering all 4 gates; bias folded in.
    x2d = x_ref[...].reshape(n_rows, D).astype(jnp.bfloat16)
    gx = jnp.dot(x2d, w_ih_ref[...], preferred_element_type=jnp.float32)
    gx = gx + b_ref[...]                               # (n_rows, 4*Hp) f32
    gx_ref[...] = gx.reshape(bt, t_chunk, 4 * Hp)      # park in VMEM scratch

    h = h_state[...]                                   # (bt, Hp) f32
    c = c_state[...]                                   # (bt, Hp) f32

    # ---- Serial recurrence over the chunk. Only h @ W_hh (one fused GEMM per
    #      timestep, N = 4*Hp) is on the critical path.  Static unroll is fine
    #      for the default t_chunk=8; switch to lax.fori_loop(..., unroll=8)
    #      with a time-leading gx scratch if t_chunk is raised well above 8.
    for t in range(t_chunk):
        h_bf = h.astype(jnp.bfloat16)
        gates = gx_ref[:, t, :] + jnp.dot(
            h_bf, w_hh_ref[...], preferred_element_type=jnp.float32)
        # Static, 128-aligned lane slices -> whole-vreg selects (gate order i,f,g,o).
        i_g = jax.nn.sigmoid(gates[:, 0 * Hp:1 * Hp])
        f_g = jax.nn.sigmoid(gates[:, 1 * Hp:2 * Hp])
        g_g = jnp.tanh(gates[:, 2 * Hp:3 * Hp])
        o_g = jax.nn.sigmoid(gates[:, 3 * Hp:4 * Hp])
        c = f_g * c + i_g * g_g
        h = o_g * jnp.tanh(c)
        h_acc[:, t, :] = h                 # VMEM scratch write (lane-dense, Hp=128k)

    h_state[...] = h
    c_state[...] = c

    # ---- Outputs: one dense chunk-wide store of the LSTM hidden states ... ----
    h_out_ref[...] = h_acc[...]

    # ---- ... and the fc + sigmoid head fed straight from the scratch:
    #      one (n_rows, Hp) @ (Hp, Op) GEMM and one dense chunk-wide store.
    h2d = h_acc[...].reshape(n_rows, Hp).astype(jnp.bfloat16)
    logits = jnp.dot(h2d, w_fc_ref[...], preferred_element_type=jnp.float32)
    logits = logits + b_fc_ref[...]
    pred_ref[...] = jax.nn.sigmoid(logits).reshape(bt, t_chunk, Op)


def _round_up(n, m):
    return (n + m - 1) // m * m


def _pick_b_tile(b_padded):
    """Largest multiple-of-8 divisor of b_padded that is <= 128 and, when the
    batch allows it, leaves >= 2 batch tiles (so the 'parallel' grid axis can
    shard across the two TensorCores on v7x)."""
    best = min(b_padded, 8)
    for d in range(8, min(b_padded, 128) + 1, 8):
        if b_padded % d == 0 and (b_padded // d >= 2 or b_padded <= 8):
            best = d
    return best


def dkt_forward(x, params, *, t_chunk=8, b_tile=None):
    """x: (B, T, D) float32. Returns (predictions (B,T,O), rnn_out (B,T,H))."""
    B, T, D = x.shape
    H = params["w_hh_t"].shape[0]
    O = params["w_fc_t"].shape[1]

    assert t_chunk % 8 == 0, "t_chunk must be a multiple of 8 (sublane alignment)"

    # Pad to hardware-friendly sizes (lane dim -> 128, sublane dim -> 8).
    Hp = _round_up(H, 128)
    Op = _round_up(O, 128)
    Tp = _round_up(T, t_chunk)
    Bp = _round_up(B, 8)
    if b_tile is None:
        b_tile = _pick_b_tile(Bp)
    assert b_tile % 8 == 0, "b_tile must be a multiple of 8"
    Bp = _round_up(Bp, b_tile)

    if (Bp, Tp) != (B, T):
        x = jnp.pad(x, ((0, Bp - B), (0, Tp - T), (0, 0)))

    # Fused, per-gate-padded, pre-transposed weights (PyTorch gate order i,f,g,o).
    # Padded columns/rows are zero so the padded state stays exactly zero.
    w_ih = params["w_ih_t"].reshape(D, 4, H)
    w_ih = jnp.pad(w_ih, ((0, 0), (0, 0), (0, Hp - H)))
    w_ih = w_ih.reshape(D, 4 * Hp).astype(jnp.bfloat16)

    w_hh = params["w_hh_t"].reshape(H, 4, H)
    w_hh = jnp.pad(w_hh, ((0, Hp - H), (0, 0), (0, Hp - H)))
    w_hh = w_hh.reshape(Hp, 4 * Hp).astype(jnp.bfloat16)

    bias_g = (params["b_ih"] + params["b_hh"]).reshape(4, H)
    bias_g = jnp.pad(bias_g, ((0, 0), (0, Hp - H)))
    bias_g = bias_g.reshape(1, 4 * Hp).astype(jnp.float32)

    w_fc = jnp.pad(params["w_fc_t"], ((0, Hp - H), (0, Op - O))).astype(jnp.bfloat16)
    b_fc = jnp.pad(params["b_fc"], (0, Op - O)).reshape(1, Op).astype(jnp.float32)

    # Explicit VMEM budget (double-buffered blocks + weights + scratch), with
    # headroom; stays small for the defaults, scales for larger tiles.
    blk_bytes = b_tile * t_chunk * (D + Hp + Op) * 4
    w_bytes = (D * 4 * Hp + Hp * 4 * Hp + Hp * Op) * 2 + (4 * Hp + Op) * 4
    scratch_bytes = (2 * b_tile * Hp + b_tile * t_chunk * (4 * Hp + Hp)) * 4
    vmem_est = 2 * blk_bytes + 2 * w_bytes + scratch_bytes
    vmem_limit = int(max(32 * 2**20, min(96 * 2**20, 4 * vmem_est)))

    pred_p, rnn_p = pl.pallas_call(
        dkt_kernel,
        out_shape=(jax.ShapeDtypeStruct((Bp, Tp, Op), jnp.float32),
                   jax.ShapeDtypeStruct((Bp, Tp, Hp), jnp.float32)),
        grid_spec=pltpu.PrefetchScalarGridSpec(
            num_scalar_prefetch=0,
            grid=(Bp // b_tile, Tp // t_chunk),
            in_specs=[
                pl.BlockSpec((b_tile, t_chunk, D), lambda b, c: (b, c, 0)),  # x chunk
                pl.BlockSpec((D, 4 * Hp), lambda b, c: (0, 0)),    # fused W_ih^T
                pl.BlockSpec((Hp, 4 * Hp), lambda b, c: (0, 0)),   # fused W_hh^T
                pl.BlockSpec((1, 4 * Hp), lambda b, c: (0, 0)),    # b_ih + b_hh
                pl.BlockSpec((Hp, Op), lambda b, c: (0, 0)),       # W_fc^T
                pl.BlockSpec((1, Op), lambda b, c: (0, 0)),        # b_fc
            ],
            out_specs=[
                pl.BlockSpec((b_tile, t_chunk, Op), lambda b, c: (b, c, 0)),  # pred
                pl.BlockSpec((b_tile, t_chunk, Hp), lambda b, c: (b, c, 0)),  # rnn_out
            ],
            scratch_shapes=[
                pltpu.VMEM((b_tile, Hp), jnp.float32),                  # carried h
                pltpu.VMEM((b_tile, Hp), jnp.float32),                  # carried c
                pltpu.VMEM((b_tile, t_chunk, 4 * Hp), jnp.float32),     # gx (chunk)
                pltpu.VMEM((b_tile, t_chunk, Hp), jnp.float32),         # h history
            ],
        ),
        compiler_params=pltpu.CompilerParams(
            dimension_semantics=("parallel", "arbitrary"),   # batch ||, time serial
            vmem_limit_bytes=vmem_limit),
    )(x, w_ih, w_hh, bias_g, w_fc, b_fc)

    # Slice away the batch/time/feature padding.
    return pred_p[:B, :T, :O], rnn_p[:B, :T, :H]


def init_params(key, input_dim, hidden_dim, output_dim):
    """Deterministic init mimicking PyTorch's uniform(-1/sqrt(H), 1/sqrt(H))."""
    ks = jax.random.split(key, 6)
    k = 1.0 / np.sqrt(hidden_dim)
    u = lambda kk, shape: jax.random.uniform(kk, shape, jnp.float32, -k, k)
    return {
        # stored pre-transposed for (B,.)@(.,.) matmuls
        "w_ih_t": u(ks[0], (input_dim, 4 * hidden_dim)),    # = W_ih^T
        "w_hh_t": u(ks[1], (hidden_dim, 4 * hidden_dim)),   # = W_hh^T
        "b_ih": u(ks[2], (4 * hidden_dim,)),
        "b_hh": u(ks[3], (4 * hidden_dim,)),
        "w_fc_t": u(ks[4], (hidden_dim, output_dim)),       # = fc.weight^T
        "b_fc": u(ks[5], (output_dim,)),
    }


def dkt_reference(x, params):
    """Pure-JAX f32 reference (lax.scan LSTM) matching the PyTorch module."""
    H = params["w_hh_t"].shape[0]
    b = params["b_ih"] + params["b_hh"]

    def step(carry, x_t):
        h, c = carry
        gates = x_t @ params["w_ih_t"] + h @ params["w_hh_t"] + b
        i = jax.nn.sigmoid(gates[:, 0 * H:1 * H])
        f = jax.nn.sigmoid(gates[:, 1 * H:2 * H])
        g = jnp.tanh(gates[:, 2 * H:3 * H])
        o = jax.nn.sigmoid(gates[:, 3 * H:4 * H])
        c_new = f * c + i * g
        h_new = o * jnp.tanh(c_new)
        return (h_new, c_new), h_new

    B = x.shape[0]
    h0 = jnp.zeros((B, H), jnp.float32)
    c0 = jnp.zeros((B, H), jnp.float32)
    _, hs = jax.lax.scan(step, (h0, c0), jnp.transpose(x, (1, 0, 2)))
    rnn_out = jnp.transpose(hs, (1, 0, 2))
    pred = jax.nn.sigmoid(rnn_out @ params["w_fc_t"] + params["b_fc"])
    return pred, rnn_out


if __name__ == "__main__":
    B, T = 2, 8
    input_dim, hidden_dim, output_dim = 16, 32, 16

    key = jax.random.PRNGKey(0)
    k_x, k_p = jax.random.split(key)
    x = jax.random.normal(k_x, (B, T, input_dim), jnp.float32)
    params = init_params(k_p, input_dim, hidden_dim, output_dim)

    pred, rnn_out = dkt_forward(x, params)
    jax.block_until_ready((pred, rnn_out))

    pred_ref, rnn_ref = dkt_reference(x, params)
    assert pred.shape == (B, T, output_dim)
    assert rnn_out.shape == (B, T, hidden_dim)
    # Kernel uses bf16 weights/activations on the MXU (f32 accumulation, f32
    # h/c state), so compare against the f32 reference with bf16 tolerance.
    np.testing.assert_allclose(np.asarray(pred), np.asarray(pred_ref),
                               rtol=3e-2, atol=3e-2)
    np.testing.assert_allclose(np.asarray(rnn_out), np.asarray(rnn_ref),
                               rtol=3e-2, atol=3e-2)

    print("KERNEL_OK")
</pallas_src>

<mosaic_0001>
module attributes {stable_mosaic.version = 11 : i64} {
  func.func @dkt_kernel(%arg0: i32, %arg1: i32, %arg2: memref<8x8x16xf32, #tpu.memory_space<vmem>>, %arg3: memref<16x512xbf16, #tpu.memory_space<vmem>>, %arg4: memref<128x512xbf16, #tpu.memory_space<vmem>>, %arg5: memref<1x512xf32, #tpu.memory_space<vmem>>, %arg6: memref<128x128xbf16, #tpu.memory_space<vmem>>, %arg7: memref<1x128xf32, #tpu.memory_space<vmem>>, %arg8: memref<8x8x128xf32, #tpu.memory_space<vmem>>, %arg9: memref<8x8x128xf32, #tpu.memory_space<vmem>>, %arg10: memref<8x128xf32, #tpu.memory_space<vmem>>, %arg11: memref<8x128xf32, #tpu.memory_space<vmem>>, %arg12: memref<8x8x512xf32, #tpu.memory_space<vmem>>, %arg13: memref<8x8x128xf32, #tpu.memory_space<vmem>>) attributes {dimension_semantics = [#tpu.dimension_semantics<parallel>, #tpu.dimension_semantics<arbitrary>], iteration_bounds = array<i64: 1, 1>, scalar_prefetch = 0 : i64, scratch_operands = 4 : i64, tpu.core_type = #tpu.core_type<tc>, window_params = [{transform_indices = @transform_0, window_bounds = array<i64: 8, 8, 16>}, {pipeline_mode = #tpu.pipeline_mode<synchronous>, transform_indices = @transform_1, window_bounds = array<i64: 16, 512>}, {pipeline_mode = #tpu.pipeline_mode<synchronous>, transform_indices = @transform_2, window_bounds = array<i64: 128, 512>}, {pipeline_mode = #tpu.pipeline_mode<synchronous>, transform_indices = @transform_3, window_bounds = array<i64: 1, 512>}, {pipeline_mode = #tpu.pipeline_mode<synchronous>, transform_indices = @transform_4, window_bounds = array<i64: 128, 128>}, {pipeline_mode = #tpu.pipeline_mode<synchronous>, transform_indices = @transform_5, window_bounds = array<i64: 1, 128>}, {transform_indices = @transform_6, window_bounds = array<i64: 8, 8, 128>}, {transform_indices = @transform_7, window_bounds = array<i64: 8, 8, 128>}]} {
    %c0_i32 = arith.constant 0 : i32
    %0 = arith.cmpi eq, %arg1, %c0_i32 : i32
    %1 = arith.extui %0 : i1 to i32
    %c0_i32_0 = arith.constant 0 : i32
    %2 = arith.cmpi ne, %1, %c0_i32_0 : i32
    scf.if %2 {
      %cst_125 = arith.constant 0.000000e+00 : f32
      %306 = vector.broadcast %cst_125 : f32 to vector<8x128xf32>
      %c0_126 = arith.constant 0 : index
      %c0_127 = arith.constant 0 : index
      %307 = vector.load %arg10[%c0_126, %c0_127] : memref<8x128xf32, #tpu.memory_space<vmem>>, vector<8x128xf32>
      tpu.vector_store %arg10[%c0_126, %c0_127], %306 {strides = array<i32>} : memref<8x128xf32, #tpu.memory_space<vmem>>, vector<8x128xf32>,
      %cst_128 = arith.constant 0.000000e+00 : f32
      %308 = vector.broadcast %cst_128 : f32 to vector<8x128xf32>
      %c0_129 = arith.constant 0 : index
      %c0_130 = arith.constant 0 : index
      %309 = vector.load %arg11[%c0_129, %c0_130] : memref<8x128xf32, #tpu.memory_space<vmem>>, vector<8x128xf32>
      tpu.vector_store %arg11[%c0_129, %c0_130], %308 {strides = array<i32>} : memref<8x128xf32, #tpu.memory_space<vmem>>, vector<8x128xf32>,
    } else {
    }
    %c0 = arith.constant 0 : index
    %c0_1 = arith.constant 0 : index
    %c0_2 = arith.constant 0 : index
    %3 = vector.load %arg2[%c0, %c0_1, %c0_2] : memref<8x8x16xf32, #tpu.memory_space<vmem>>, vector<8x8x16xf32>
    %4 = vector.shape_cast %3 : vector<8x8x16xf32> to vector<64x16xf32>
    %5 = arith.truncf %4 : vector<64x16xf32> to vector<64x16xbf16>
    %c0_3 = arith.constant 0 : index
    %c0_4 = arith.constant 0 : index
    %6 = vector.load %arg3[%c0_3, %c0_4] : memref<16x512xbf16, #tpu.memory_space<vmem>>, vector<16x512xbf16>
    %cst = arith.constant dense<0.000000e+00> : vector<64x512xf32>
    %7 = tpu.matmul %5, %6, %cst {dimension_numbers = #tpu.dot_dimension_numbers<[1], [0], [0], [1], [0, 0, 1, 1], [], []>} : vector<64x16xbf16>, vector<16x512xbf16>, vector<64x512xf32> -> vector<64x512xf32>
    %c0_5 = arith.constant 0 : index
    %c0_6 = arith.constant 0 : index
    %8 = vector.load %arg5[%c0_5, %c0_6] : memref<1x512xf32, #tpu.memory_space<vmem>>, vector<1x512xf32>
    %9 = vector.broadcast %8 : vector<1x512xf32> to vector<64x512xf32>
    %10 = arith.addf %7, %9 : vector<64x512xf32>
    %11 = vector.shape_cast %10 : vector<64x512xf32> to vector<8x8x512xf32>
    %c0_7 = arith.constant 0 : index
    %c0_8 = arith.constant 0 : index
    %c0_9 = arith.constant 0 : index
    %12 = vector.load %arg12[%c0_7, %c0_8, %c0_9] : memref<8x8x512xf32, #tpu.memory_space<vmem>>, vector<8x8x512xf32>
    tpu.vector_store %arg12[%c0_7, %c0_8, %c0_9], %11 {strides = array<i32>} : memref<8x8x512xf32, #tpu.memory_space<vmem>>, vector<8x8x512xf32>,
    %c0_10 = arith.constant 0 : index
    %c0_11 = arith.constant 0 : index
    %13 = vector.load %arg10[%c0_10, %c0_11] : memref<8x128xf32, #tpu.memory_space<vmem>>, vector<8x128xf32>
    %c0_12 = arith.constant 0 : index
    %c0_13 = arith.constant 0 : index
    %14 = vector.load %arg11[%c0_12, %c0_13] : memref<8x128xf32, #tpu.memory_space<vmem>>, vector<8x128xf32>
    %15 = arith.truncf %13 : vector<8x128xf32> to vector<8x128xbf16>
    %c0_14 = arith.constant 0 : index
    %c0_15 = arith.constant 0 : index
    %c0_16 = arith.constant 0 : index
    %16 = vector.load %arg12[%c0_14, %c0_15, %c0_16] : memref<8x8x512xf32, #tpu.memory_space<vmem>>, vector<8x1x512xf32>
    %17 = vector.shape_cast %16 : vector<8x1x512xf32> to vector<8x512xf32>
    %c0_17 = arith.constant 0 : index
    %c0_18 = arith.constant 0 : index
    %18 = vector.load %arg4[%c0_17, %c0_18] : memref<128x512xbf16, #tpu.memory_space<vmem>>, vector<128x512xbf16>
    %cst_19 = arith.constant dense<0.000000e+00> : vector<8x512xf32>
    %19 = tpu.matmul %15, %18, %cst_19 {dimension_numbers = #tpu.dot_dimension_numbers<[1], [0], [0], [1], [0, 0, 1, 1], [], []>} : vector<8x128xbf16>, vector<128x512xbf16>, vector<8x512xf32> -> vector<8x512xf32>
    %20 = arith.addf %17, %19 : vector<8x512xf32>
    %21 = vector.extract_strided_slice %20 {offsets = [0, 0], sizes = [8, 128], strides = [1, 1]} : vector<8x512xf32> to vector<8x128xf32>
    %22 = arith.negf %21 : vector<8x128xf32>
    %23 = math.exp %22 : vector<8x128xf32>
    %cst_20 = arith.constant 1.000000e+00 : f32
    %24 = vector.broadcast %cst_20 : f32 to vector<8x128xf32>
    %25 = arith.addf %24, %23 : vector<8x128xf32>
    %26 = arith.divf %24, %25 : vector<8x128xf32>
    %27 = vector.extract_strided_slice %20 {offsets = [0, 128], sizes = [8, 128], strides = [1, 1]} : vector<8x512xf32> to vector<8x128xf32>
    %28 = arith.negf %27 : vector<8x128xf32>
    %29 = math.exp %28 : vector<8x128xf32>
    %cst_21 = arith.constant 1.000000e+00 : f32
    %30 = vector.broadcast %cst_21 : f32 to vector<8x128xf32>
    %31 = arith.addf %30, %29 : vector<8x128xf32>
    %32 = arith.divf %30, %31 : vector<8x128xf32>
    %33 = vector.extract_strided_slice %20 {offsets = [0, 256], sizes = [8, 128], strides = [1, 1]} : vector<8x512xf32> to vector<8x128xf32>
    %34 = math.tanh %33 : vector<8x128xf32>
    %35 = vector.extract_strided_slice %20 {offsets = [0, 384], sizes = [8, 128], strides = [1, 1]} : vector<8x512xf32> to vector<8x128xf32>
    %36 = arith.negf %35 : vector<8x128xf32>
    %37 = math.exp %36 : vector<8x128xf32>
    %cst_22 = arith.constant 1.000000e+00 : f32
    %38 = vector.broadcast %cst_22 : f32 to vector<8x128xf32>
    %39 = arith.addf %38, %37 : vector<8x128xf32>
    %40 = arith.divf %38, %39 : vector<8x128xf32>
    %41 = arith.mulf %32, %14 : vector<8x128xf32>
    %42 = arith.mulf %26, %34 : vector<8x128xf32>
    %43 = arith.addf %41, %42 : vector<8x128xf32>
    %44 = math.tanh %43 : vector<8x128xf32>
    %45 = arith.mulf %40, %44 : vector<8x128xf32>
    %c0_23 = arith.constant 0 : index
    %c0_24 = arith.constant 0 : index
    %c0_25 = arith.constant 0 : index
    %46 = vector.load %arg13[%c0_23, %c0_24, %c0_25] : memref<8x8x128xf32, #tpu.memory_space<vmem>>, vector<8x1x128xf32>
    %47 = vector.shape_cast %46 : vector<8x1x128xf32> to vector<8x128xf32>
    %48 = vector.shape_cast %45 : vector<8x128xf32> to vector<8x1x128xf32>
    tpu.vector_store %arg13[%c0_23, %c0_24, %c0_25], %48 {strides = array<i32>} : memref<8x8x128xf32, #tpu.memory_space<vmem>>, vector<8x1x128xf32>,
    %49 = arith.truncf %45 : vector<8x128xf32> to vector<8x128xbf16>
    %c0_26 = arith.constant 0 : index
    %c1 = arith.constant 1 : index
    %c0_27 = arith.constant 0 : index
    %50 = vector.load %arg12[%c0_26, %c1, %c0_27] : memref<8x8x512xf32, #tpu.memory_space<vmem>>, vector<8x1x512xf32>
    %51 = vector.shape_cast %50 : vector<8x1x512xf32> to vector<8x512xf32>
    %c0_28 = arith.constant 0 : index
    %c0_29 = arith.constant 0 : index
    %52 = vector.load %arg4[%c0_28, %c0_29] : memref<128x512xbf16, #tpu.memory_space<vmem>>, vector<128x512xbf16>
    %cst_30 = arith.constant dense<0.000000e+00> : vector<8x512xf32>
    %53 = tpu.matmul %49, %52, %cst_30 {dimension_numbers = #tpu.dot_dimension_numbers<[1], [0], [0], [1], [0, 0, 1, 1], [], []>} : vector<8x128xbf16>, vector<128x512xbf16>, vector<8x512xf32> -> vector<8x512xf32>
    %54 = arith.addf %51, %53 : vector<8x512xf32>
    %55 = vector.extract_strided_slice %54 {offsets = [0, 0], sizes = [8, 128], strides = [1, 1]} : vector<8x512xf32> to vector<8x128xf32>
    %56 = arith.negf %55 : vector<8x128xf32>
    %57 = math.exp %56 : vector<8x128xf32>
    %cst_31 = arith.constant 1.000000e+00 : f32
    %58 = vector.broadcast %cst_31 : f32 to vector<8x128xf32>
    %59 = arith.addf %58, %57 : vector<8x128xf32>
    %60 = arith.divf %58, %59 : vector<8x128xf32>
    %61 = vector.extract_strided_slice %54 {offsets = [0, 128], sizes = [8, 128], strides = [1, 1]} : vector<8x512xf32> to vector<8x128xf32>
    %62 = arith.negf %61 : vector<8x128xf32>
    %63 = math.exp %62 : vector<8x128xf32>
    %cst_32 = arith.constant 1.000000e+00 : f32
    %64 = vector.broadcast %cst_32 : f32 to vector<8x128xf32>
    %65 = arith.addf %64, %63 : vector<8x128xf32>
    %66 = arith.divf %64, %65 : vector<8x128xf32>
    %67 = vector.extract_strided_slice %54 {offsets = [0, 256], sizes = [8, 128], strides = [1, 1]} : vector<8x512xf32> to vector<8x128xf32>
    %68 = math.tanh %67 : vector<8x128xf32>
    %69 = vector.extract_strided_slice %54 {offsets = [0, 384], sizes = [8, 128], strides = [1, 1]} : vector<8x512xf32> to vector<8x128xf32>
    %70 = arith.negf %69 : vector<8x128xf32>
    %71 = math.exp %70 : vector<8x128xf32>
    %cst_33 = arith.constant 1.000000e+00 : f32
    %72 = vector.broadcast %cst_33 : f32 to vector<8x128xf32>
    %73 = arith.addf %72, %71 : vector<8x128xf32>
    %74 = arith.divf %72, %73 : vector<8x128xf32>
    %75 = arith.mulf %66, %43 : vector<8x128xf32>
    %76 = arith.mulf %60, %68 : vector<8x128xf32>
    %77 = arith.addf %75, %76 : vector<8x128xf32>
    %78 = math.tanh %77 : vector<8x128xf32>
    %79 = arith.mulf %74, %78 : vector<8x128xf32>
    %c0_34 = arith.constant 0 : index
    %c1_35 = arith.constant 1 : index
    %c0_36 = arith.constant 0 : index
    %80 = vector.load %arg13[%c0_34, %c1_35, %c0_36] : memref<8x8x128xf32, #tpu.memory_space<vmem>>, vector<8x1x128xf32>
    %81 = vector.shape_cast %80 : vector<8x1x128xf32> to vector<8x128xf32>
    %82 = vector.shape_cast %79 : vector<8x128xf32> to vector<8x1x128xf32>
    tpu.vector_store %arg13[%c0_34, %c1_35, %c0_36], %82 {strides = array<i32>} : memref<8x8x128xf32, #tpu.memory_space<vmem>>, vector<8x1x128xf32>,
    %83 = arith.truncf %79 : vector<8x128xf32> to vector<8x128xbf16>
    %c0_37 = arith.constant 0 : index
    %c2 = arith.constant 2 : index
    %c0_38 = arith.constant 0 : index
    %84 = vector.load %arg12[%c0_37, %c2, %c0_38] : memref<8x8x512xf32, #tpu.memory_space<vmem>>, vector<8x1x512xf32>
    %85 = vector.shape_cast %84 : vector<8x1x512xf32> to vector<8x512xf32>
    %c0_39 = arith.constant 0 : index
    %c0_40 = arith.constant 0 : index
    %86 = vector.load %arg4[%c0_39, %c0_40] : memref<128x512xbf16, #tpu.memory_space<vmem>>, vector<128x512xbf16>
    %cst_41 = arith.constant dense<0.000000e+00> : vector<8x512xf32>
    %87 = tpu.matmul %83, %86, %cst_41 {dimension_numbers = #tpu.dot_dimension_numbers<[1], [0], [0], [1], [0, 0, 1, 1], [], []>} : vector<8x128xbf16>, vector<128x512xbf16>, vector<8x512xf32> -> vector<8x512xf32>
    %88 = arith.addf %85, %87 : vector<8x512xf32>
    %89 = vector.extract_strided_slice %88 {offsets = [0, 0], sizes = [8, 128], strides = [1, 1]} : vector<8x512xf32> to vector<8x128xf32>
    %90 = arith.negf %89 : vector<8x128xf32>
    %91 = math.exp %90 : vector<8x128xf32>
    %cst_42 = arith.constant 1.000000e+00 : f32
    %92 = vector.broadcast %cst_42 : f32 to vector<8x128xf32>
    %93 = arith.addf %92, %91 : vector<8x128xf32>
    %94 = arith.divf %92, %93 : vector<8x128xf32>
    %95 = vector.extract_strided_slice %88 {offsets = [0, 128], sizes = [8, 128], strides = [1, 1]} : vector<8x512xf32> to vector<8x128xf32>
    %96 = arith.negf %95 : vector<8x128xf32>
    %97 = math.exp %96 : vector<8x128xf32>
    %cst_43 = arith.constant 1.000000e+00 : f32
    %98 = vector.broadcast %cst_43 : f32 to vector<8x128xf32>
    %99 = arith.addf %98, %97 : vector<8x128xf32>
    %100 = arith.divf %98, %99 : vector<8x128xf32>
    %101 = vector.extract_strided_slice %88 {offsets = [0, 256], sizes = [8, 128], strides = [1, 1]} : vector<8x512xf32> to vector<8x128xf32>
    %102 = math.tanh %101 : vector<8x128xf32>
    %103 = vector.extract_strided_slice %88 {offsets = [0, 384], sizes = [8, 128], strides = [1, 1]} : vector<8x512xf32> to vector<8x128xf32>
    %104 = arith.negf %103 : vector<8x128xf32>
    %105 = math.exp %104 : vector<8x128xf32>
    %cst_44 = arith.constant 1.000000e+00 : f32
    %106 = vector.broadcast %cst_44 : f32 to vector<8x128xf32>
    %107 = arith.addf %106, %105 : vector<8x128xf32>
    %108 = arith.divf %106, %107 : vector<8x128xf32>
    %109 = arith.mulf %100, %77 : vector<8x128xf32>
    %110 = arith.mulf %94, %102 : vector<8x128xf32>
    %111 = arith.addf %109, %110 : vector<8x128xf32>
    %112 = math.tanh %111 : vector<8x128xf32>
    %113 = arith.mulf %108, %112 : vector<8x128xf32>
    %c0_45 = arith.constant 0 : index
    %c2_46 = arith.constant 2 : index
    %c0_47 = arith.constant 0 : index
    %114 = vector.load %arg13[%c0_45, %c2_46, %c0_47] : memref<8x8x128xf32, #tpu.memory_space<vmem>>, vector<8x1x128xf32>
    %115 = vector.shape_cast %114 : vector<8x1x128xf32> to vector<8x128xf32>
    %116 = vector.shape_cast %113 : vector<8x128xf32> to vector<8x1x128xf32>
    tpu.vector_store %arg13[%c0_45, %c2_46, %c0_47], %116 {strides = array<i32>} : memref<8x8x128xf32, #tpu.memory_space<vmem>>, vector<8x1x128xf32>,
    %117 = arith.truncf %113 : vector<8x128xf32> to vector<8x128xbf16>
    %c0_48 = arith.constant 0 : index
    %c3 = arith.constant 3 : index
    %c0_49 = arith.constant 0 : index
    %118 = vector.load %arg12[%c0_48, %c3, %c0_49] : memref<8x8x512xf32, #tpu.memory_space<vmem>>, vector<8x1x512xf32>
    %119 = vector.shape_cast %118 : vector<8x1x512xf32> to vector<8x512xf32>
    %c0_50 = arith.constant 0 : index
    %c0_51 = arith.constant 0 : index
    %120 = vector.load %arg4[%c0_50, %c0_51] : memref<128x512xbf16, #tpu.memory_space<vmem>>, vector<128x512xbf16>
    %cst_52 = arith.constant dense<0.000000e+00> : vector<8x512xf32>
    %121 = tpu.matmul %117, %120, %cst_52 {dimension_numbers = #tpu.dot_dimension_numbers<[1], [0], [0], [1], [0, 0, 1, 1], [], []>} : vector<8x128xbf16>, vector<128x512xbf16>, vector<8x512xf32> -> vector<8x512xf32>
    %122 = arith.addf %119, %121 : vector<8x512xf32>
    %123 = vector.extract_strided_slice %122 {offsets = [0, 0], sizes = [8, 128], strides = [1, 1]} : vector<8x512xf32> to vector<8x128xf32>
    %124 = arith.negf %123 : vector<8x128xf32>
    %125 = math.exp %124 : vector<8x128xf32>
    %cst_53 = arith.constant 1.000000e+00 : f32
    %126 = vector.broadcast %cst_53 : f32 to vector<8x128xf32>
    %127 = arith.addf %126, %125 : vector<8x128xf32>
    %128 = arith.divf %126, %127 : vector<8x128xf32>
    %129 = vector.extract_strided_slice %122 {offsets = [0, 128], sizes = [8, 128], strides = [1, 1]} : vector<8x512xf32> to vector<8x128xf32>
    %130 = arith.negf %129 : vector<8x128xf32>
    %131 = math.exp %130 : vector<8x128xf32>
    %cst_54 = arith.constant 1.000000e+00 : f32
    %132 = vector.broadcast %cst_54 : f32 to vector<8x128xf32>
    %133 = arith.addf %132, %131 : vector<8x128xf32>
    %134 = arith.divf %132, %133 : vector<8x128xf32>
    %135 = vector.extract_strided_slice %122 {offsets = [0, 256], sizes = [8, 128], strides = [1, 1]} : vector<8x512xf32> to vector<8x128xf32>
    %136 = math.tanh %135 : vector<8x128xf32>
    %137 = vector.extract_strided_slice %122 {offsets = [0, 384], sizes = [8, 128], strides = [1, 1]} : vector<8x512xf32> to vector<8x128xf32>
    %138 = arith.negf %137 : vector<8x128xf32>
    %139 = math.exp %138 : vector<8x128xf32>
    %cst_55 = arith.constant 1.000000e+00 : f32
    %140 = vector.broadcast %cst_55 : f32 to vector<8x128xf32>
    %141 = arith.addf %140, %139 : vector<8x128xf32>
    %142 = arith.divf %140, %141 : vector<8x128xf32>
    %143 = arith.mulf %134, %111 : vector<8x128xf32>
    %144 = arith.mulf %128, %136 : vector<8x128xf32>
    %145 = arith.addf %143, %144 : vector<8x128xf32>
    %146 = math.tanh %145 : vector<8x128xf32>
    %147 = arith.mulf %142, %146 : vector<8x128xf32>
    %c0_56 = arith.constant 0 : index
    %c3_57 = arith.constant 3 : index
    %c0_58 = arith.constant 0 : index
    %148 = vector.load %arg13[%c0_56, %c3_57, %c0_58] : memref<8x8x128xf32, #tpu.memory_space<vmem>>, vector<8x1x128xf32>
    %149 = vector.shape_cast %148 : vector<8x1x128xf32> to vector<8x128xf32>
    %150 = vector.shape_cast %147 : vector<8x128xf32> to vector<8x1x128xf32>
    tpu.vector_store %arg13[%c0_56, %c3_57, %c0_58], %150 {strides = array<i32>} : memref<8x8x128xf32, #tpu.memory_space<vmem>>, vector<8x1x128xf32>,
    %151 = arith.truncf %147 : vector<8x128xf32> to vector<8x128xbf16>
    %c0_59 = arith.constant 0 : index
    %c4 = arith.constant 4 : index
    %c0_60 = arith.constant 0 : index
    %152 = vector.load %arg12[%c0_59, %c4, %c0_60] : memref<8x8x512xf32, #tpu.memory_space<vmem>>, vector<8x1x512xf32>
    %153 = vector.shape_cast %152 : vector<8x1x512xf32> to vector<8x512xf32>
    %c0_61 = arith.constant 0 : index
    %c0_62 = arith.constant 0 : index
    %154 = vector.load %arg4[%c0_61, %c0_62] : memref<128x512xbf16, #tpu.memory_space<vmem>>, vector<128x512xbf16>
    %cst_63 = arith.constant dense<0.000000e+00> : vector<8x512xf32>
    %155 = tpu.matmul %151, %154, %cst_63 {dimension_numbers = #tpu.dot_dimension_numbers<[1], [0], [0], [1], [0, 0, 1, 1], [], []>} : vector<8x128xbf16>, vector<128x512xbf16>, vector<8x512xf32> -> vector<8x512xf32>
    %156 = arith.addf %153, %155 : vector<8x512xf32>
    %157 = vector.extract_strided_slice %156 {offsets = [0, 0], sizes = [8, 128], strides = [1, 1]} : vector<8x512xf32> to vector<8x128xf32>
    %158 = arith.negf %157 : vector<8x128xf32>
    %159 = math.exp %158 : vector<8x128xf32>
    %cst_64 = arith.constant 1.000000e+00 : f32
    %160 = vector.broadcast %cst_64 : f32 to vector<8x128xf32>
    %161 = arith.addf %160, %159 : vector<8x128xf32>
    %162 = arith.divf %160, %161 : vector<8x128xf32>
    %163 = vector.extract_strided_slice %156 {offsets = [0, 128], sizes = [8, 128], strides = [1, 1]} : vector<8x512xf32> to vector<8x128xf32>
    %164 = arith.negf %163 : vector<8x128xf32>
    %165 = math.exp %164 : vector<8x128xf32>
    %cst_65 = arith.constant 1.000000e+00 : f32
    %166 = vector.broadcast %cst_65 : f32 to vector<8x128xf32>
    %167 = arith.addf %166, %165 : vector<8x128xf32>
    %168 = arith.divf %166, %167 : vector<8x128xf32>
    %169 = vector.extract_strided_slice %156 {offsets = [0, 256], sizes = [8, 128], strides = [1, 1]} : vector<8x512xf32> to vector<8x128xf32>
    %170 = math.tanh %169 : vector<8x128xf32>
    %171 = vector.extract_strided_slice %156 {offsets = [0, 384], sizes = [8, 128], strides = [1, 1]} : vector<8x512xf32> to vector<8x128xf32>
    %172 = arith.negf %171 : vector<8x128xf32>
    %173 = math.exp %172 : vector<8x128xf32>
    %cst_66 = arith.constant 1.000000e+00 : f32
    %174 = vector.broadcast %cst_66 : f32 to vector<8x128xf32>
    %175 = arith.addf %174, %173 : vector<8x128xf32>
    %176 = arith.divf %174, %175 : vector<8x128xf32>
    %177 = arith.mulf %168, %145 : vector<8x128xf32>
    %178 = arith.mulf %162, %170 : vector<8x128xf32>
    %179 = arith.addf %177, %178 : vector<8x128xf32>
    %180 = math.tanh %179 : vector<8x128xf32>
    %181 = arith.mulf %176, %180 : vector<8x128xf32>
    %c0_67 = arith.constant 0 : index
    %c4_68 = arith.constant 4 : index
    %c0_69 = arith.constant 0 : index
    %182 = vector.load %arg13[%c0_67, %c4_68, %c0_69] : memref<8x8x128xf32, #tpu.memory_space<vmem>>, vector<8x1x128xf32>
    %183 = vector.shape_cast %182 : vector<8x1x128xf32> to vector<8x128xf32>
    %184 = vector.shape_cast %181 : vector<8x128xf32> to vector<8x1x128xf32>
    tpu.vector_store %arg13[%c0_67, %c4_68, %c0_69], %184 {strides = array<i32>} : memref<8x8x128xf32, #tpu.memory_space<vmem>>, vector<8x1x128xf32>,
    %185 = arith.truncf %181 : vector<8x128xf32> to vector<8x128xbf16>
    %c0_70 = arith.constant 0 : index
    %c5 = arith.constant 5 : index
    %c0_71 = arith.constant 0 : index
    %186 = vector.load %arg12[%c0_70, %c5, %c0_71] : memref<8x8x512xf32, #tpu.memory_space<vmem>>, vector<8x1x512xf32>
    %187 = vector.shape_cast %186 : vector<8x1x512xf32> to vector<8x512xf32>
    %c0_72 = arith.constant 0 : index
    %c0_73 = arith.constant 0 : index
    %188 = vector.load %arg4[%c0_72, %c0_73] : memref<128x512xbf16, #tpu.memory_space<vmem>>, vector<128x512xbf16>
    %cst_74 = arith.constant dense<0.000000e+00> : vector<8x512xf32>
    %189 = tpu.matmul %185, %188, %cst_74 {dimension_numbers = #tpu.dot_dimension_numbers<[1], [0], [0], [1], [0, 0, 1, 1], [], []>} : vector<8x128xbf16>, vector<128x512xbf16>, vector<8x512xf32> -> vector<8x512xf32>
    %190 = arith.addf %187, %189 : vector<8x512xf32>
    %191 = vector.extract_strided_slice %190 {offsets = [0, 0], sizes = [8, 128], strides = [1, 1]} : vector<8x512xf32> to vector<8x128xf32>
    %192 = arith.negf %191 : vector<8x128xf32>
    %193 = math.exp %192 : vector<8x128xf32>
    %cst_75 = arith.constant 1.000000e+00 : f32
    %194 = vector.broadcast %cst_75 : f32 to vector<8x128xf32>
    %195 = arith.addf %194, %193 : vector<8x128xf32>
    %196 = arith.divf %194, %195 : vector<8x128xf32>
    %197 = vector.extract_strided_slice %190 {offsets = [0, 128], sizes = [8, 128], strides = [1, 1]} : vector<8x512xf32> to vector<8x128xf32>
    %198 = arith.negf %197 : vector<8x128xf32>
    %199 = math.exp %198 : vector<8x128xf32>
    %cst_76 = arith.constant 1.000000e+00 : f32
    %200 = vector.broadcast %cst_76 : f32 to vector<8x128xf32>
    %201 = arith.addf %200, %199 : vector<8x128xf32>
    %202 = arith.divf %200, %201 : vector<8x128xf32>
    %203 = vector.extract_strided_slice %190 {offsets = [0, 256], sizes = [8, 128], strides = [1, 1]} : vector<8x512xf32> to vector<8x128xf32>
    %204 = math.tanh %203 : vector<8x128xf32>
    %205 = vector.extract_strided_slice %190 {offsets = [0, 384], sizes = [8, 128], strides = [1, 1]} : vector<8x512xf32> to vector<8x128xf32>
    %206 = arith.negf %205 : vector<8x128xf32>
    %207 = math.exp %206 : vector<8x128xf32>
    %cst_77 = arith.constant 1.000000e+00 : f32
    %208 = vector.broadcast %cst_77 : f32 to vector<8x128xf32>
    %209 = arith.addf %208, %207 : vector<8x128xf32>
    %210 = arith.divf %208, %209 : vector<8x128xf32>
    %211 = arith.mulf %202, %179 : vector<8x128xf32>
    %212 = arith.mulf %196, %204 : vector<8x128xf32>
    %213 = arith.addf %211, %212 : vector<8x128xf32>
    %214 = math.tanh %213 : vector<8x128xf32>
    %215 = arith.mulf %210, %214 : vector<8x128xf32>
    %c0_78 = arith.constant 0 : index
    %c5_79 = arith.constant 5 : index
    %c0_80 = arith.constant 0 : index
    %216 = vector.load %arg13[%c0_78, %c5_79, %c0_80] : memref<8x8x128xf32, #tpu.memory_space<vmem>>, vector<8x1x128xf32>
    %217 = vector.shape_cast %216 : vector<8x1x128xf32> to vector<8x128xf32>
    %218 = vector.shape_cast %215 : vector<8x128xf32> to vector<8x1x128xf32>
    tpu.vector_store %arg13[%c0_78, %c5_79, %c0_80], %218 {strides = array<i32>} : memref<8x8x128xf32, #tpu.memory_space<vmem>>, vector<8x1x128xf32>,
    %219 = arith.truncf %215 : vector<8x128xf32> to vector<8x128xbf16>
    %c0_81 = arith.constant 0 : index
    %c6 = arith.constant 6 : index
    %c0_82 = arith.constant 0 : index
    %220 = vector.load %arg12[%c0_81, %c6, %c0_82] : memref<8x8x512xf32, #tpu.memory_space<vmem>>, vector<8x1x512xf32>
    %221 = vector.shape_cast %220 : vector<8x1x512xf32> to vector<8x512xf32>
    %c0_83 = arith.constant 0 : index
    %c0_84 = arith.constant 0 : index
    %222 = vector.load %arg4[%c0_83, %c0_84] : memref<128x512xbf16, #tpu.memory_space<vmem>>, vector<128x512xbf16>
    %cst_85 = arith.constant dense<0.000000e+00> : vector<8x512xf32>
    %223 = tpu.matmul %219, %222, %cst_85 {dimension_numbers = #tpu.dot_dimension_numbers<[1], [0], [0], [1], [0, 0, 1, 1], [], []>} : vector<8x128xbf16>, vector<128x512xbf16>, vector<8x512xf32> -> vector<8x512xf32>
    %224 = arith.addf %221, %223 : vector<8x512xf32>
    %225 = vector.extract_strided_slice %224 {offsets = [0, 0], sizes = [8, 128], strides = [1, 1]} : vector<8x512xf32> to vector<8x128xf32>
    %226 = arith.negf %225 : vector<8x128xf32>
    %227 = math.exp %226 : vector<8x128xf32>
    %cst_86 = arith.constant 1.000000e+00 : f32
    %228 = vector.broadcast %cst_86 : f32 to vector<8x128xf32>
    %229 = arith.addf %228, %227 : vector<8x128xf32>
    %230 = arith.divf %228, %229 : vector<8x128xf32>
    %231 = vector.extract_strided_slice %224 {offsets = [0, 128], sizes = [8, 128], strides = [1, 1]} : vector<8x512xf32> to vector<8x128xf32>
    %232 = arith.negf %231 : vector<8x128xf32>
    %233 = math.exp %232 : vector<8x128xf32>
    %cst_87 = arith.constant 1.000000e+00 : f32
    %234 = vector.broadcast %cst_87 : f32 to vector<8x128xf32>
    %235 = arith.addf %234, %233 : vector<8x128xf32>
    %236 = arith.divf %234, %235 : vector<8x128xf32>
    %237 = vector.extract_strided_slice %224 {offsets = [0, 256], sizes = [8, 128], strides = [1, 1]} : vector<8x512xf32> to vector<8x128xf32>
    %238 = math.tanh %237 : vector<8x128xf32>
    %239 = vector.extract_strided_slice %224 {offsets = [0, 384], sizes = [8, 128], strides = [1, 1]} : vector<8x512xf32> to vector<8x128xf32>
    %240 = arith.negf %239 : vector<8x128xf32>
    %241 = math.exp %240 : vector<8x128xf32>
    %cst_88 = arith.constant 1.000000e+00 : f32
    %242 = vector.broadcast %cst_88 : f32 to vector<8x128xf32>
    %243 = arith.addf %242, %241 : vector<8x128xf32>
    %244 = arith.divf %242, %243 : vector<8x128xf32>
    %245 = arith.mulf %236, %213 : vector<8x128xf32>
    %246 = arith.mulf %230, %238 : vector<8x128xf32>
    %247 = arith.addf %245, %246 : vector<8x128xf32>
    %248 = math.tanh %247 : vector<8x128xf32>
    %249 = arith.mulf %244, %248 : vector<8x128xf32>
    %c0_89 = arith.constant 0 : index
    %c6_90 = arith.constant 6 : index
    %c0_91 = arith.constant 0 : index
    %250 = vector.load %arg13[%c0_89, %c6_90, %c0_91] : memref<8x8x128xf32, #tpu.memory_space<vmem>>, vector<8x1x128xf32>
    %251 = vector.shape_cast %250 : vector<8x1x128xf32> to vector<8x128xf32>
    %252 = vector.shape_cast %249 : vector<8x128xf32> to vector<8x1x128xf32>
    tpu.vector_store %arg13[%c0_89, %c6_90, %c0_91], %252 {strides = array<i32>} : memref<8x8x128xf32, #tpu.memory_space<vmem>>, vector<8x1x128xf32>,
    %253 = arith.truncf %249 : vector<8x128xf32> to vector<8x128xbf16>
    %c0_92 = arith.constant 0 : index
    %c7 = arith.constant 7 : index
    %c0_93 = arith.constant 0 : index
    %254 = vector.load %arg12[%c0_92, %c7, %c0_93] : memref<8x8x512xf32, #tpu.memory_space<vmem>>, vector<8x1x512xf32>
    %255 = vector.shape_cast %254 : vector<8x1x512xf32> to vector<8x512xf32>
    %c0_94 = arith.constant 0 : index
    %c0_95 = arith.constant 0 : index
    %256 = vector.load %arg4[%c0_94, %c0_95] : memref<128x512xbf16, #tpu.memory_space<vmem>>, vector<128x512xbf16>
    %cst_96 = arith.constant dense<0.000000e+00> : vector<8x512xf32>
    %257 = tpu.matmul %253, %256, %cst_96 {dimension_numbers = #tpu.dot_dimension_numbers<[1], [0], [0], [1], [0, 0, 1, 1], [], []>} : vector<8x128xbf16>, vector<128x512xbf16>, vector<8x512xf32> -> vector<8x512xf32>
    %258 = arith.addf %255, %257 : vector<8x512xf32>
    %259 = vector.extract_strided_slice %258 {offsets = [0, 0], sizes = [8, 128], strides = [1, 1]} : vector<8x512xf32> to vector<8x128xf32>
    %260 = arith.negf %259 : vector<8x128xf32>
    %261 = math.exp %260 : vector<8x128xf32>
    %cst_97 = arith.constant 1.000000e+00 : f32
    %262 = vector.broadcast %cst_97 : f32 to vector<8x128xf32>
    %263 = arith.addf %262, %261 : vector<8x128xf32>
    %264 = arith.divf %262, %263 : vector<8x128xf32>
    %265 = vector.extract_strided_slice %258 {offsets = [0, 128], sizes = [8, 128], strides = [1, 1]} : vector<8x512xf32> to vector<8x128xf32>
    %266 = arith.negf %265 : vector<8x128xf32>
    %267 = math.exp %266 : vector<8x128xf32>
    %cst_98 = arith.constant 1.000000e+00 : f32
    %268 = vector.broadcast %cst_98 : f32 to vector<8x128xf32>
    %269 = arith.addf %268, %267 : vector<8x128xf32>
    %270 = arith.divf %268, %269 : vector<8x128xf32>
    %271 = vector.extract_strided_slice %258 {offsets = [0, 256], sizes = [8, 128], strides = [1, 1]} : vector<8x512xf32> to vector<8x128xf32>
    %272 = math.tanh %271 : vector<8x128xf32>
    %273 = vector.extract_strided_slice %258 {offsets = [0, 384], sizes = [8, 128], strides = [1, 1]} : vector<8x512xf32> to vector<8x128xf32>
    %274 = arith.negf %273 : vector<8x128xf32>
    %275 = math.exp %274 : vector<8x128xf32>
    %cst_99 = arith.constant 1.000000e+00 : f32
    %276 = vector.broadcast %cst_99 : f32 to vector<8x128xf32>
    %277 = arith.addf %276, %275 : vector<8x128xf32>
    %278 = arith.divf %276, %277 : vector<8x128xf32>
    %279 = arith.mulf %270, %247 : vector<8x128xf32>
    %280 = arith.mulf %264, %272 : vector<8x128xf32>
    %281 = arith.addf %279, %280 : vector<8x128xf32>
    %282 = math.tanh %281 : vector<8x128xf32>
    %283 = arith.mulf %278, %282 : vector<8x128xf32>
    %c0_100 = arith.constant 0 : index
    %c7_101 = arith.constant 7 : index
    %c0_102 = arith.constant 0 : index
    %284 = vector.load %arg13[%c0_100, %c7_101, %c0_102] : memref<8x8x128xf32, #tpu.memory_space<vmem>>, vector<8x1x128xf32>
    %285 = vector.shape_cast %284 : vector<8x1x128xf32> to vector<8x128xf32>
    %286 = vector.shape_cast %283 : vector<8x128xf32> to vector<8x1x128xf32>
    tpu.vector_store %arg13[%c0_100, %c7_101, %c0_102], %286 {strides = array<i32>} : memref<8x8x128xf32, #tpu.memory_space<vmem>>, vector<8x1x128xf32>,
    %c0_103 = arith.constant 0 : index
    %c0_104 = arith.constant 0 : index
    %287 = vector.load %arg10[%c0_103, %c0_104] : memref<8x128xf32, #tpu.memory_space<vmem>>, vector<8x128xf32>
    tpu.vector_store %arg10[%c0_103, %c0_104], %283 {strides = array<i32>} : memref<8x128xf32, #tpu.memory_space<vmem>>, vector<8x128xf32>,
    %c0_105 = arith.constant 0 : index
    %c0_106 = arith.constant 0 : index
    %288 = vector.load %arg11[%c0_105, %c0_106] : memref<8x128xf32, #tpu.memory_space<vmem>>, vector<8x128xf32>
    tpu.vector_store %arg11[%c0_105, %c0_106], %281 {strides = array<i32>} : memref<8x128xf32, #tpu.memory_space<vmem>>, vector<8x128xf32>,
    %c0_107 = arith.constant 0 : index
    %c0_108 = arith.constant 0 : index
    %c0_109 = arith.constant 0 : index
    %289 = vector.load %arg13[%c0_107, %c0_108, %c0_109] : memref<8x8x128xf32, #tpu.memory_space<vmem>>, vector<8x8x128xf32>
    %c0_110 = arith.constant 0 : index
    %c0_111 = arith.constant 0 : index
    %c0_112 = arith.constant 0 : index
    %290 = vector.load %arg9[%c0_110, %c0_111, %c0_112] : memref<8x8x128xf32, #tpu.memory_space<vmem>>, vector<8x8x128xf32>
    tpu.vector_store %arg9[%c0_110, %c0_111, %c0_112], %289 {strides = array<i32>} : memref<8x8x128xf32, #tpu.memory_space<vmem>>, vector<8x8x128xf32>,
    %c0_113 = arith.constant 0 : index
    %c0_114 = arith.constant 0 : index
    %c0_115 = arith.constant 0 : index
    %291 = vector.load %arg13[%c0_113, %c0_114, %c0_115] : memref<8x8x128xf32, #tpu.memory_space<vmem>>, vector<8x8x128xf32>
    %292 = vector.shape_cast %291 : vector<8x8x128xf32> to vector<64x128xf32>
    %293 = arith.truncf %292 : vector<64x128xf32> to vector<64x128xbf16>
    %c0_116 = arith.constant 0 : index
    %c0_117 = arith.constant 0 : index
    %294 = vector.load %arg6[%c0_116, %c0_117] : memref<128x128xbf16, #tpu.memory_space<vmem>>, vector<128x128xbf16>
    %cst_118 = arith.constant dense<0.000000e+00> : vector<64x128xf32>
    %295 = tpu.matmul %293, %294, %cst_118 {dimension_numbers = #tpu.dot_dimension_numbers<[1], [0], [0], [1], [0, 0, 1, 1], [], []>} : vector<64x128xbf16>, vector<128x128xbf16>, vector<64x128xf32> -> vector<64x128xf32>
    %c0_119 = arith.constant 0 : index
    %c0_120 = arith.constant 0 : index
    %296 = vector.load %arg7[%c0_119, %c0_120] : memref<1x128xf32, #tpu.memory_space<vmem>>, vector<1x128xf32>
    %297 = vector.broadcast %296 : vector<1x128xf32> to vector<64x128xf32>
    %298 = arith.addf %295, %297 : vector<64x128xf32>
    %299 = arith.negf %298 : vector<64x128xf32>
    %300 = math.exp %299 : vector<64x128xf32>
    %cst_121 = arith.constant 1.000000e+00 : f32
    %301 = vector.broadcast %cst_121 : f32 to vector<64x128xf32>
    %302 = arith.addf %301, %300 : vector<64x128xf32>
    %303 = arith.divf %301, %302 : vector<64x128xf32>
    %304 = vector.shape_cast %303 : vector<64x128xf32> to vector<8x8x128xf32>
    %c0_122 = arith.constant 0 : index
    %c0_123 = arith.constant 0 : index
    %c0_124 = arith.constant 0 : index
    %305 = vector.load %arg8[%c0_122, %c0_123, %c0_124] : memref<8x8x128xf32, #tpu.memory_space<vmem>>, vector<8x8x128xf32>
    tpu.vector_store %arg8[%c0_122, %c0_123, %c0_124], %304 {strides = array<i32>} : memref<8x8x128xf32, #tpu.memory_space<vmem>>, vector<8x8x128xf32>,
    return
  }
  func.func @transform_0(%arg0: i32, %arg1: i32) -> (i32, i32, i32) {
    %c0_i32 = arith.constant 0 : i32
    %c0_i32_0 = arith.constant 0 : i32
    return %arg0, %arg1, %c0_i32 : i32, i32, i32
  }
  func.func @transform_1(%arg0: i32, %arg1: i32) -> (i32, i32) {
    %c0_i32 = arith.constant 0 : i32
    %c0_i32_0 = arith.constant 0 : i32
    %c0_i32_1 = arith.constant 0 : i32
    return %c0_i32, %c0_i32_0 : i32, i32
  }
  func.func @transform_2(%arg0: i32, %arg1: i32) -> (i32, i32) {
    %c0_i32 = arith.constant 0 : i32
    %c0_i32_0 = arith.constant 0 : i32
    %c0_i32_1 = arith.constant 0 : i32
    return %c0_i32, %c0_i32_0 : i32, i32
  }
  func.func @transform_3(%arg0: i32, %arg1: i32) -> (i32, i32) {
    %c0_i32 = arith.constant 0 : i32
    %c0_i32_0 = arith.constant 0 : i32
    %c0_i32_1 = arith.constant 0 : i32
    return %c0_i32, %c0_i32_0 : i32, i32
  }
  func.func @transform_4(%arg0: i32, %arg1: i32) -> (i32, i32) {
    %c0_i32 = arith.constant 0 : i32
    %c0_i32_0 = arith.constant 0 : i32
    %c0_i32_1 = arith.constant 0 : i32
    return %c0_i32, %c0_i32_0 : i32, i32
  }
  func.func @transform_5(%arg0: i32, %arg1: i32) -> (i32, i32) {
    %c0_i32 = arith.constant 0 : i32
    %c0_i32_0 = arith.constant 0 : i32
    %c0_i32_1 = arith.constant 0 : i32
    return %c0_i32, %c0_i32_0 : i32, i32
  }
  func.func @transform_6(%arg0: i32, %arg1: i32) -> (i32, i32, i32) {
    %c0_i32 = arith.constant 0 : i32
    %c0_i32_0 = arith.constant 0 : i32
    return %arg0, %arg1, %c0_i32 : i32, i32, i32
  }
  func.func @transform_7(%arg0: i32, %arg1: i32) -> (i32, i32, i32) {
    %c0_i32 = arith.constant 0 : i32
    %c0_i32_0 = arith.constant 0 : i32
    return %arg0, %arg1, %c0_i32 : i32, i32, i32
  }
}

</mosaic_0001>

<llo_original>
// kernel: tpu_custom_call.1
$region0: #{tpu_custom_call.1}
  #allocation0 [shape = 'u32[]', space=smem, size = 0x4, offset = 0x4, fixed_abs, tag = 'smem constant byte address 0x4 - core index']
  #allocation1 [shape = 'u32[144,128]{1,0:T(1,128)}', space=vmem, size = 0x12000, scoped, tag = 'internal scratch']
  #allocation2 [shape = 'f32[8,128]{1,0:T(8,128)}', space=vmem, size = 0x1000, scoped, tag = 'scratch operand']
  #allocation3 [shape = 'f32[8,128]{1,0:T(8,128)}', space=vmem, size = 0x1000, scoped, tag = 'scratch operand']
  #allocation4 [shape = 'f32[8,8,512]{2,1,0:T(8,128)}', space=vmem, size = 0x20000, scoped, tag = 'scratch operand']
  #allocation5 [shape = 'f32[8,8,128]{2,1,0:T(8,128)}', space=vmem, size = 0x8000, scoped, tag = 'scratch operand']
  %s0 = inlined_call_operand.hbm [shape: f32[8,8,16], index: 0, kind: input, shape index: {}]
  %s1 = inlined_call_operand.hbm [shape: bf16[16,512], index: 1, kind: input, shape index: {}]
  %s2 = inlined_call_operand.hbm [shape: bf16[128,512], index: 2, kind: input, shape index: {}]
  %s3 = inlined_call_operand.vmem [shape: f32[1,512], index: 3, kind: input, shape index: {}]
  %s4 = inlined_call_operand.hbm [shape: bf16[128,128], index: 4, kind: input, shape index: {}]
  %s5 = inlined_call_operand.vmem [shape: f32[1,128], index: 5, kind: input, shape index: {}]
  %s6 = inlined_call_operand.hbm [shape: f32[8,8,128], index: 6, kind: output, shape index: {0}]
  %s7 = inlined_call_operand.hbm [shape: f32[8,8,128], index: 7, kind: output, shape index: {1}]
  %8 = xla_tuple %s6, %s7
  %s9 = sld [smem:[#allocation0]]
  $region62: #{tpu_custom_call.1} parent=0
    _
  %s11 = ssub.s32 1, %s9
  %s12 = scalar_select 0, %s11, %s9
  $region1: #{tpu_custom_call.1} parent=0
    #allocation6 [shape = 'u8[32768]{0}', space=vmem, size = 0x8000, scoped, tag = 'input window, operand 0, single buffered']
    #allocation7 [shape = 's32[1]{0}', space=sflag, size = 0x4, scoped, tag = 'scoped memory for tpu_custom_call.1']
    #allocation8 [shape = 's32[1]{0}', space=sflag, size = 0x4, scoped, tag = 'scoped memory for tpu_custom_call.1']
    #allocation9 [shape = 'u8[16384]{0}', space=vmem, size = 0x4000, scoped, tag = 'input window, operand 1, single buffered']
    #allocation10 [shape = 's32[1]{0}', space=sflag, size = 0x4, scoped, tag = 'scoped memory for tpu_custom_call.1']
    #allocation11 [shape = 'u8[131072]{0}', space=vmem, size = 0x20000, scoped, tag = 'input window, operand 2, single buffered']
    #allocation12 [shape = 'u8[32768]{0}', space=vmem, size = 0x8000, scoped, tag = 'input window, operand 4, single buffered']
    #allocation13 [shape = 's32[1]{0}', space=sflag, size = 0x4, scoped, tag = 'scoped memory for tpu_custom_call.1']
    #allocation14 [shape = 'u8[32768]{0}', space=vmem, size = 0x8000, scoped, tag = 'output window, operand 0, single buffered']
    #allocation15 [shape = 'u8[32768]{0}', space=vmem, size = 0x8000, scoped, tag = 'output window, operand 1, single buffered']
    #allocation16 [shape = 's32[1]{0}', space=sflag, size = 0x4, scoped, tag = 'scoped memory for tpu_custom_call.1']
    %13 = vsyncpa [#allocation7], 0
    %14 = vsyncpa [#allocation10], 0
    %15 = vsyncpa [#allocation13], 0
    %16 = vsyncpa [#allocation8], 0
    %17 = vsyncpa [#allocation16], 0
    // Predicated region
    $region2: #{tpu_custom_call.1} parent=1 // pred_check
      _
    $region3: #{tpu_custom_call.1} parent=1 // pred_check_branch
      %19 = sbr.rel (0) target = $region5
    $region4: #{tpu_custom_call.1} parent=1 // pred_region
      %s21 = ssub.s32 1024, 1024
      %22 = vsyncadd [#allocation7], %s21
      %s23 = sshll.u32 [#allocation6], 4
      %s24 = int_to_ptr.vmem [resolvable:$true] %s23
      %29 = dma.hbm_to_vmem [thread:$0]  %s0, 1024, %s24, [#allocation7], 128, 128, 8
    $region5: #{tpu_custom_call.1} parent=1 // pred_fallthru
      _
    // Predicated region
    $region6: #{tpu_custom_call.1} parent=1 // pred_check
      _
    $region7: #{tpu_custom_call.1} parent=1 // pred_check_branch
      %31 = sbr.rel (0) target = $region9
    $region8: #{tpu_custom_call.1} parent=1 // pred_region
      %s33 = ssub.s32 512, 512
      %34 = vsyncadd [#allocation10], %s33
      %s35 = sshll.u32 [#allocation9], 4
      %s36 = int_to_ptr.vmem [resolvable:$true] %s35
      %41 = dma.hbm_to_vmem [thread:$0]  %s1, 512, %s36, [#allocation10], 256, 256, 16
    $region9: #{tpu_custom_call.1} parent=1 // pred_fallthru
      _
    // Predicated region
    $region10: #{tpu_custom_call.1} parent=1 // pred_check
      _
    $region11: #{tpu_custom_call.1} parent=1 // pred_check_branch
      %43 = sbr.rel (0) target = $region13
    $region12: #{tpu_custom_call.1} parent=1 // pred_region
      %s45 = ssub.s32 4096, 4096
      %46 = vsyncadd [#allocation10], %s45
      %s47 = sshll.u32 [#allocation11], 4
      %s48 = int_to_ptr.vmem [resolvable:$true] %s47
      %53 = dma.hbm_to_vmem [thread:$0]  %s2, 4096, %s48, [#allocation10], 256, 256, 16
    $region13: #{tpu_custom_call.1} parent=1 // pred_fallthru
      _
    // Predicated region
    $region14: #{tpu_custom_call.1} parent=1 // pred_check
      _
    $region15: #{tpu_custom_call.1} parent=1 // pred_check_branch
      %55 = sbr.rel (0) target = $region17
    $region16: #{tpu_custom_call.1} parent=1 // pred_region
      _
    $region17: #{tpu_custom_call.1} parent=1 // pred_fallthru
      _
    // Predicated region
    $region18: #{tpu_custom_call.1} parent=1 // pred_check
      _
    $region19: #{tpu_custom_call.1} parent=1 // pred_check_branch
      %57 = sbr.rel (0) target = $region21
    $region20: #{tpu_custom_call.1} parent=1 // pred_region
      %s59 = ssub.s32 1024, 1024
      %60 = vsyncadd [#allocation13], %s59
      %s61 = sshll.u32 [#allocation12], 4
      %s62 = int_to_ptr.vmem [resolvable:$true] %s61
      %67 = dma.hbm_to_vmem [thread:$0]  %s4, 1024, %s62, [#allocation13], 64, 64, 4
    $region21: #{tpu_custom_call.1} parent=1 // pred_fallthru
      _
    // Predicated region
    $region22: #{tpu_custom_call.1} parent=1 // pred_check
      _
    $region23: #{tpu_custom_call.1} parent=1 // pred_check_branch
      %69 = sbr.rel (0) target = $region25
    $region24: #{tpu_custom_call.1} parent=1 // pred_region
      _
    $region25: #{tpu_custom_call.1} parent=1 // pred_fallthru
      _
    // Predicated region
    $region26: #{tpu_custom_call.1} parent=1 // pred_check
      _
    $region27: #{tpu_custom_call.1} parent=1 // pred_check_branch
      %71 = sbr.rel (0) target = $region29
    $region28: #{tpu_custom_call.1} parent=1 // pred_region
      %72 = dma.done [#allocation7], 1024
    $region29: #{tpu_custom_call.1} parent=1 // pred_fallthru
      _
    // Predicated region
    $region30: #{tpu_custom_call.1} parent=1 // pred_check
      _
    $region31: #{tpu_custom_call.1} parent=1 // pred_check_branch
      %74 = sbr.rel (0) target = $region33
    $region32: #{tpu_custom_call.1} parent=1 // pred_region
      %75 = dma.done [#allocation10], 512
    $region33: #{tpu_custom_call.1} parent=1 // pred_fallthru
      _
    // Predicated region
    $region34: #{tpu_custom_call.1} parent=1 // pred_check
      _
    $region35: #{tpu_custom_call.1} parent=1 // pred_check_branch
      %77 = sbr.rel (0) target = $region37
    $region36: #{tpu_custom_call.1} parent=1 // pred_region
      %78 = dma.done [#allocation10], 4096
    $region37: #{tpu_custom_call.1} parent=1 // pred_fallthru
      _
    // Predicated region
    $region38: #{tpu_custom_call.1} parent=1 // pred_check
      _
    $region39: #{tpu_custom_call.1} parent=1 // pred_check_branch
      %80 = sbr.rel (0) target = $region41
    $region40: #{tpu_custom_call.1} parent=1 // pred_region
      %81 = dma.done [#allocation13], 1024
    $region41: #{tpu_custom_call.1} parent=1 // pred_fallthru
      _
    %p83 = scmp.eq.s32.totalorder 0, 0
    // Predicated region
    $region42: #{tpu_custom_call.1} parent=1 // pred_check
      %p84 = pneg %p83
    $region43: #{tpu_custom_call.1} parent=1 // pred_check_branch
      %86 = sbr.rel (%p84) target = $region45
    $region44: #{tpu_custom_call.1} parent=1 // pred_region
      %87 = vst [vmem:[#allocation2] sm:$0xff] 0.0
      %88 = vst [vmem:[#allocation3] sm:$0xff] 0.0
    $region45: #{tpu_custom_call.1} parent=1 // pred_fallthru
      _
    %v89 = vld [vmem:[#allocation6] sm:$0xff]
    %v90 = vld [vmem:[#allocation6 + $0x8] sm:$0xff]
    %v91 = vld [vmem:[#allocation6 + $0x10] sm:$0xff]
    %v92 = vld [vmem:[#allocation6 + $0x18] sm:$0xff]
    %v93 = vld [vmem:[#allocation6 + $0x20] sm:$0xff]
    %v94 = vld [vmem:[#allocation6 + $0x28] sm:$0xff]
    %v95 = vld [vmem:[#allocation6 + $0x30] sm:$0xff]
    %v96 = vld [vmem:[#allocation6 + $0x38] sm:$0xff]
    %v97 = vpack.c.bf16 %v90, %v89
    %v98 = vpack.c.bf16 %v92, %v91
    %v99 = vpack.c.bf16 %v94, %v93
    %v100 = vpack.c.bf16 %v96, %v95
    %v101 = vld [vmem:[#allocation9] sm:$0xff]
    %v102 = vld [vmem:[#allocation9 + $0x8] sm:$0xff]
    %v103 = vld [vmem:[#allocation9 + $0x10] sm:$0xff]
    %v104 = vld [vmem:[#allocation9 + $0x18] sm:$0xff]
    %v105 = vld [vmem:[%s3] sm:$0xf]
    %v107 = vlaneseq
    %v108 = vshrl.u32 %v107, 7
    %v109 = vsub.s32 0, %v108
    %v110 = vrot.slane %v105, %v109
    %v111 = vlaneseq
    %v112 = vshrl.u32 %v111, 7
    %v113 = vsub.s32 1, %v112
    %v114 = vrot.slane %v105, %v113
    %v115 = vlaneseq
    %v116 = vshrl.u32 %v115, 7
    %v117 = vsub.s32 2, %v116
    %v118 = vrot.slane %v105, %v117
    %v119 = vlaneseq
    %v120 = vshrl.u32 %v119, 7
    %v121 = vsub.s32 3, %v120
    %v122 = vrot.slane %v105, %v121
    %v131 = vunpack.c.l.b16 %v101
    %v132 = vunpack.c.h.b16 %v101
    %v133 = vunpack.c.l.b16 %v102
    %v134 = vunpack.c.h.b16 %v102
    %v135 = vunpack.c.l.b16 %v103
    %v136 = vunpack.c.h.b16 %v103
    %v137 = vunpack.c.l.b16 %v104
    %v138 = vunpack.c.h.b16 %v104
    %v139 = vpack.c.b16 %v135, %v131
    %v140 = vpack.c.b16 %v136, %v132
    %v141 = vpack.c.b16 %v137, %v133
    %v142 = vpack.c.b16 %v138, %v134
    %vm147 = vcmask 130048
    %v149 = vsel %vm147, %v97, 0
    %v152 = vsel %vm147, %v98, 0
    %v155 = vsel %vm147, %v99, 0
    %v158 = vsel %vm147, %v100, 0
    %160 = vmatprep.subr.bf16.mxu0 %v140
    %161 = vmatpush1.bf16.msra.mxu0 %v139
    %162 = vmatprep.subr.bf16.mxu0 0
    %163 = vmatpush1.bf16.msra.mxu0 0
    %164 = vmatprep.subr.bf16.mxu0 0
    %165 = vmatpush1.bf16.msra.mxu0 0
    %166 = vmatprep.subr.bf16.mxu0 0
    %167 = vmatpush1.bf16.msra.mxu0 0
    %168 = vmatprep.subr.bf16.mxu0 0
    %169 = vmatpush1.bf16.msra.mxu0 0
    %170 = vmatprep.subr.bf16.mxu0 0
    %171 = vmatpush1.bf16.msra.mxu0 0
    %172 = vmatprep.subr.bf16.mxu0 0
    %173 = vmatpush1.bf16.msra.mxu0 0
    %174 = vmatprep.subr.bf16.mxu0 0
    %175 = vmatpush1.bf16.msra.mxu0 0
    %176 = vmatprep.subr.bf16.mxu0 0
    %177 = vmatpush1.bf16.msra.mxu0 0
    %178 = vmatprep.subr.bf16.mxu0 0
    %179 = vmatpush1.bf16.msra.mxu0 0
    %180 = vmatprep.subr.bf16.mxu0 0
    %181 = vmatpush1.bf16.msra.mxu0 0
    %182 = vmatprep.subr.bf16.mxu0 0
    %183 = vmatpush1.bf16.msra.mxu0 0
    %184 = vmatprep.subr.bf16.mxu0 0
    %185 = vmatpush1.bf16.msra.mxu0 0
    %186 = vmatprep.subr.bf16.mxu0 0
    %187 = vmatpush1.bf16.msra.mxu0 0
    %188 = vmatprep.subr.bf16.mxu0 0
    %189 = vmatpush1.bf16.msra.mxu0 0
    %190 = vmatprep.subr.bf16.mxu0 0
    %191 = vmatpush1.bf16.msra.mxu0 0
    %192 = vmatprep.mubr.bf16.mxu0 0
    %193 = vmatmul.mubr.bf16.gmra.mrb[0].mxu0 %v149
    %v194 = vpop.f32.mrb[0].mxu0
    %v195 = vadd.f32 %v110, %v194
    %v196 = vpop.f32.mrb[0].mxu0
    %v197 = vadd.f32 %v114, %v196
    %v198 = vpop.f32.mrb[0].mxu0
    %v199 = vadd.f32 %v110, %v198
    %v200 = vpop.f32.mrb[0].mxu0
    %v201 = vadd.f32 %v114, %v200
    %202 = vmatprep.mubr.bf16.mxu0 0
    %203 = vmatmul.mubr.bf16.gmra.mrb[0].mxu0 %v152
    %v204 = vpop.f32.mrb[0].mxu0
    %v205 = vadd.f32 %v110, %v204
    %v206 = vpop.f32.mrb[0].mxu0
    %v207 = vadd.f32 %v114, %v206
    %v208 = vpop.f32.mrb[0].mxu0
    %v209 = vadd.f32 %v110, %v208
    %v210 = vpop.f32.mrb[0].mxu0
    %v211 = vadd.f32 %v114, %v210
    %212 = vmatprep.mubr.bf16.mxu0 0
    %213 = vmatmul.mubr.bf16.gmra.mrb[0].mxu0 %v155
    %v214 = vpop.f32.mrb[0].mxu0
    %v215 = vadd.f32 %v110, %v214
    %v216 = vpop.f32.mrb[0].mxu0
    %v217 = vadd.f32 %v114, %v216
    %v218 = vpop.f32.mrb[0].mxu0
    %v219 = vadd.f32 %v110, %v218
    %v220 = vpop.f32.mrb[0].mxu0
    %v221 = vadd.f32 %v114, %v220
    %222 = vmatprep.mubr.bf16.mxu0 0
    %223 = vmatmul.mubr.bf16.gmra.mrb[0].mxu0 %v158
    %v224 = vpop.f32.mrb[0].mxu0
    %v225 = vadd.f32 %v110, %v224
    %v226 = vpop.f32.mrb[0].mxu0
    %v227 = vadd.f32 %v114, %v226
    %v228 = vpop.f32.mrb[0].mxu0
    %v229 = vadd.f32 %v110, %v228
    %v230 = vpop.f32.mrb[0].mxu0
    %v231 = vadd.f32 %v114, %v230
    %232 = vdwg.mxu0
    %233 = vmatprep.subr.bf16.mxu0 %v142
    %234 = vmatpush1.bf16.msra.mxu0 %v141
    %235 = vmatprep.subr.bf16.mxu0 0
    %236 = vmatpush1.bf16.msra.mxu0 0
    %237 = vmatprep.subr.bf16.mxu0 0
    %238 = vmatpush1.bf16.msra.mxu0 0
    %239 = vmatprep.subr.bf16.mxu0 0
    %240 = vmatpush1.bf16.msra.mxu0 0
    %241 = vmatprep.subr.bf16.mxu0 0
    %242 = vmatpush1.bf16.msra.mxu0 0
    %243 = vmatprep.subr.bf16.mxu0 0
    %244 = vmatpush1.bf16.msra.mxu0 0
    %245 = vmatprep.subr.bf16.mxu0 0
    %246 = vmatpush1.bf16.msra.mxu0 0
    %247 = vmatprep.subr.bf16.mxu0 0
    %248 = vmatpush1.bf16.msra.mxu0 0
    %249 = vmatprep.subr.bf16.mxu0 0
    %250 = vmatpush1.bf16.msra.mxu0 0
    %251 = vmatprep.subr.bf16.mxu0 0
    %252 = vmatpush1.bf16.msra.mxu0 0
    %253 = vmatprep.subr.bf16.mxu0 0
    %254 = vmatpush1.bf16.msra.mxu0 0
    %255 = vmatprep.subr.bf16.mxu0 0
    %256 = vmatpush1.bf16.msra.mxu0 0
    %257 = vmatprep.subr.bf16.mxu0 0
    %258 = vmatpush1.bf16.msra.mxu0 0
    %259 = vmatprep.subr.bf16.mxu0 0
    %260 = vmatpush1.bf16.msra.mxu0 0
    %261 = vmatprep.subr.bf16.mxu0 0
    %262 = vmatpush1.bf16.msra.mxu0 0
    %263 = vmatprep.subr.bf16.mxu0 0
    %264 = vmatpush1.bf16.msra.mxu0 0
    %265 = vmatprep.mubr.bf16.mxu0 0
    %266 = vmatmul.mubr.bf16.gmra.mrb[0].mxu0 %v149
    %v267 = vpop.f32.mrb[0].mxu0
    %v268 = vadd.f32 %v118, %v267
    %v269 = vpop.f32.mrb[0].mxu0
    %v270 = vadd.f32 %v122, %v269
    %v271 = vpop.f32.mrb[0].mxu0
    %v272 = vadd.f32 %v118, %v271
    %v273 = vpop.f32.mrb[0].mxu0
    %v274 = vadd.f32 %v122, %v273
    %275 = vmatprep.mubr.bf16.mxu0 0
    %276 = vmatmul.mubr.bf16.gmra.mrb[0].mxu0 %v152
    %v277 = vpop.f32.mrb[0].mxu0
    %v278 = vadd.f32 %v118, %v277
    %v279 = vpop.f32.mrb[0].mxu0
    %v280 = vadd.f32 %v122, %v279
    %v281 = vpop.f32.mrb[0].mxu0
    %v282 = vadd.f32 %v118, %v281
    %v283 = vpop.f32.mrb[0].mxu0
    %v284 = vadd.f32 %v122, %v283
    %285 = vmatprep.mubr.bf16.mxu0 0
    %286 = vmatmul.mubr.bf16.gmra.mrb[0].mxu0 %v155
    %v287 = vpop.f32.mrb[0].mxu0
    %v288 = vadd.f32 %v118, %v287
    %v289 = vpop.f32.mrb[0].mxu0
    %v290 = vadd.f32 %v122, %v289
    %v291 = vpop.f32.mrb[0].mxu0
    %v292 = vadd.f32 %v118, %v291
    %v293 = vpop.f32.mrb[0].mxu0
    %v294 = vadd.f32 %v122, %v293
    %295 = vmatprep.mubr.bf16.mxu0 0
    %296 = vmatmul.mubr.bf16.gmra.mrb[0].mxu0 %v158
    %v297 = vpop.f32.mrb[0].mxu0
    %v298 = vadd.f32 %v118, %v297
    %v299 = vpop.f32.mrb[0].mxu0
    %v300 = vadd.f32 %v122, %v299
    %v301 = vpop.f32.mrb[0].mxu0
    %v302 = vadd.f32 %v118, %v301
    %v303 = vpop.f32.mrb[0].mxu0
    %v304 = vadd.f32 %v122, %v303
    %305 = vdwg.mxu0
    %306 = vst [vmem:[#allocation4] sm:$0xff] %v195
    %307 = vst [vmem:[#allocation4 + $0x8] sm:$0xff] %v197
    %308 = vst [vmem:[#allocation4 + $0x10] sm:$0xff] %v268
    %309 = vst [vmem:[#allocation4 + $0x18] sm:$0xff] %v270
    %310 = vst [vmem:[#allocation4 + $0x20] sm:$0xff] %v199
    %311 = vst [vmem:[#allocation4 + $0x28] sm:$0xff] %v201
    %312 = vst [vmem:[#allocation4 + $0x30] sm:$0xff] %v272
    %313 = vst [vmem:[#allocation4 + $0x38] sm:$0xff] %v274
    %314 = vst [vmem:[#allocation4 + $0x40] sm:$0xff] %v205
    %315 = vst [vmem:[#allocation4 + $0x48] sm:$0xff] %v207
    %316 = vst [vmem:[#allocation4 + $0x50] sm:$0xff] %v278
    %317 = vst [vmem:[#allocation4 + $0x58] sm:$0xff] %v280
    %318 = vst [vmem:[#allocation4 + $0x60] sm:$0xff] %v209
    %319 = vst [vmem:[#allocation4 + $0x68] sm:$0xff] %v211
    %320 = vst [vmem:[#allocation4 + $0x70] sm:$0xff] %v282
    %321 = vst [vmem:[#allocation4 + $0x78] sm:$0xff] %v284
    %322 = vst [vmem:[#allocation4 + $0x80] sm:$0xff] %v215
    %323 = vst [vmem:[#allocation4 + $0x88] sm:$0xff] %v217
    %324 = vst [vmem:[#allocation4 + $0x90] sm:$0xff] %v288
    %325 = vst [vmem:[#allocation4 + $0x98] sm:$0xff] %v290
    %326 = vst [vmem:[#allocation4 + $0xa0] sm:$0xff] %v219
    %327 = vst [vmem:[#allocation4 + $0xa8] sm:$0xff] %v221
    %328 = vst [vmem:[#allocation4 + $0xb0] sm:$0xff] %v292
    %329 = vst [vmem:[#allocation4 + $0xb8] sm:$0xff] %v294
    %330 = vst [vmem:[#allocation4 + $0xc0] sm:$0xff] %v225
    %331 = vst [vmem:[#allocation4 + $0xc8] sm:$0xff] %v227
    %332 = vst [vmem:[#allocation4 + $0xd0] sm:$0xff] %v298
    %333 = vst [vmem:[#allocation4 + $0xd8] sm:$0xff] %v300
    %334 = vst [vmem:[#allocation4 + $0xe0] sm:$0xff] %v229
    %335 = vst [vmem:[#allocation4 + $0xe8] sm:$0xff] %v231
    %336 = vst [vmem:[#allocation4 + $0xf0] sm:$0xff] %v302
    %337 = vst [vmem:[#allocation4 + $0xf8] sm:$0xff] %v304
    %v338 = vld [vmem:[#allocation2] sm:$0xff]
    %v339 = vld [vmem:[#allocation3] sm:$0xff]
    %v340 = vpack.c.bf16 %v338, %v338
    %v341 = vld [vmem:[#allocation4] ss:$8 sm:$0xf]
    %s342 = scalar_lea.vmem [#allocation4], 32
    %v343 = vld [vmem:[%s342] ss:$8 sm:$0xf]
    %s344 = scalar_lea.vmem [#allocation4], 64
    %v345 = vld [vmem:[%s344] ss:$8 sm:$0xf]
    %s346 = scalar_lea.vmem [#allocation4], 96
    %v347 = vld [vmem:[%s346] ss:$8 sm:$0xf]
    %s348 = scalar_lea.vmem [#allocation4], 128
    %v349 = vld [vmem:[%s348] ss:$8 sm:$0xf]
    %s350 = scalar_lea.vmem [#allocation4], 160
    %v351 = vld [vmem:[%s350] ss:$8 sm:$0xf]
    %s352 = scalar_lea.vmem [#allocation4], 192
    %v353 = vld [vmem:[%s352] ss:$8 sm:$0xf]
    %s354 = scalar_lea.vmem [#allocation4], 224
    %v355 = vld [vmem:[%s354] ss:$8 sm:$0xf]
    %v356 = vld [vmem:[#allocation11] sm:$0xff]
    %v357 = vld [vmem:[#allocation11 + $0x8] sm:$0xff]
    %v358 = vld [vmem:[#allocation11 + $0x10] sm:$0xff]
    %v359 = vld [vmem:[#allocation11 + $0x18] sm:$0xff]
    %v360 = vld [vmem:[#allocation11 + $0x20] sm:$0xff]
    %v361 = vld [vmem:[#allocation11 + $0x28] sm:$0xff]
    %v362 = vld [vmem:[#allocation11 + $0x30] sm:$0xff]
    %v363 = vld [vmem:[#allocation11 + $0x38] sm:$0xff]
    %v364 = vld [vmem:[#allocation11 + $0x40] sm:$0xff]
    %v365 = vld [vmem:[#allocation11 + $0x48] sm:$0xff]
    %v366 = vld [vmem:[#allocation11 + $0x50] sm:$0xff]
    %v367 = vld [vmem:[#allocation11 + $0x58] sm:$0xff]
    %v368 = vld [vmem:[#allocation11 + $0x60] sm:$0xff]
    %v369 = vld [vmem:[#allocation11 + $0x68] sm:$0xff]
    %v370 = vld [vmem:[#allocation11 + $0x70] sm:$0xff]
    %v371 = vld [vmem:[#allocation11 + $0x78] sm:$0xff]
    %v372 = vld [vmem:[#allocation11 + $0x80] sm:$0xff]
    %v373 = vld [vmem:[#allocation11 + $0x88] sm:$0xff]
    %v374 = vld [vmem:[#allocation11 + $0x90] sm:$0xff]
    %v375 = vld [vmem:[#allocation11 + $0x98] sm:$0xff]
    %v376 = vld [vmem:[#allocation11 + $0xa0] sm:$0xff]
    %v377 = vld [vmem:[#allocation11 + $0xa8] sm:$0xff]
    %v378 = vld [vmem:[#allocation11 + $0xb0] sm:$0xff]
    %v379 = vld [vmem:[#allocation11 + $0xb8] sm:$0xff]
    %v380 = vld [vmem:[#allocation11 + $0xc0] sm:$0xff]
    %v381 = vld [vmem:[#allocation11 + $0xc8] sm:$0xff]
    %v382 = vld [vmem:[#allocation11 + $0xd0] sm:$0xff]
    %v383 = vld [vmem:[#allocation11 + $0xd8] sm:$0xff]
    %v384 = vld [vmem:[#allocation11 + $0xe0] sm:$0xff]
    %v385 = vld [vmem:[#allocation11 + $0xe8] sm:$0xff]
    %v386 = vld [vmem:[#allocation11 + $0xf0] sm:$0xff]
    %v387 = vld [vmem:[#allocation11 + $0xf8] sm:$0xff]
    %v420 = vunpack.c.l.b16 %v356
    %v421 = vunpack.c.h.b16 %v356
    %v422 = vunpack.c.l.b16 %v357
    %v423 = vunpack.c.h.b16 %v357
    %v424 = vunpack.c.l.b16 %v358
    %v425 = vunpack.c.h.b16 %v358
    %v426 = vunpack.c.l.b16 %v359
    %v427 = vunpack.c.h.b16 %v359
    %v428 = vunpack.c.l.b16 %v360
    %v429 = vunpack.c.h.b16 %v360
    %v430 = vunpack.c.l.b16 %v361
    %v431 = vunpack.c.h.b16 %v361
    %v432 = vunpack.c.l.b16 %v362
    %v433 = vunpack.c.h.b16 %v362
    %v434 = vunpack.c.l.b16 %v363
    %v435 = vunpack.c.h.b16 %v363
    %v436 = vunpack.c.l.b16 %v364
    %v437 = vunpack.c.h.b16 %v364
    %v438 = vunpack.c.l.b16 %v365
    %v439 = vunpack.c.h.b16 %v365
    %v440 = vunpack.c.l.b16 %v366
    %v441 = vunpack.c.h.b16 %v366
    %v442 = vunpack.c.l.b16 %v367
    %v443 = vunpack.c.h.b16 %v367
    %v444 = vunpack.c.l.b16 %v368
    %v445 = vunpack.c.h.b16 %v368
    %v446 = vunpack.c.l.b16 %v369
    %v447 = vunpack.c.h.b16 %v369
    %v448 = vunpack.c.l.b16 %v370
    %v449 = vunpack.c.h.b16 %v370
    %v450 = vunpack.c.l.b16 %v371
    %v451 = vunpack.c.h.b16 %v371
    %v452 = vunpack.c.l.b16 %v372
    %v453 = vunpack.c.h.b16 %v372
    %v454 = vunpack.c.l.b16 %v373
    %v455 = vunpack.c.h.b16 %v373
    %v456 = vunpack.c.l.b16 %v374
    %v457 = vunpack.c.h.b16 %v374
    %v458 = vunpack.c.l.b16 %v375
    %v459 = vunpack.c.h.b16 %v375
    %v460 = vunpack.c.l.b16 %v376
    %v461 = vunpack.c.h.b16 %v376
    %v462 = vunpack.c.l.b16 %v377
    %v463 = vunpack.c.h.b16 %v377
    %v464 = vunpack.c.l.b16 %v378
    %v465 = vunpack.c.h.b16 %v378
    %v466 = vunpack.c.l.b16 %v379
    %v467 = vunpack.c.h.b16 %v379
    %v468 = vunpack.c.l.b16 %v380
    %v469 = vunpack.c.h.b16 %v380
    %v470 = vunpack.c.l.b16 %v381
    %v471 = vunpack.c.h.b16 %v381
    %v472 = vunpack.c.l.b16 %v382
    %v473 = vunpack.c.h.b16 %v382
    %v474 = vunpack.c.l.b16 %v383
    %v475 = vunpack.c.h.b16 %v383
    %v476 = vunpack.c.l.b16 %v384
    %v477 = vunpack.c.h.b16 %v384
    %v478 = vunpack.c.l.b16 %v385
    %v479 = vunpack.c.h.b16 %v385
    %v480 = vunpack.c.l.b16 %v386
    %v481 = vunpack.c.h.b16 %v386
    %v482 = vunpack.c.l.b16 %v387
    %v483 = vunpack.c.h.b16 %v387
    %v484 = vpack.c.b16 %v424, %v420
    %v485 = vpack.c.b16 %v425, %v421
    %v486 = vpack.c.b16 %v426, %v422
    %v487 = vpack.c.b16 %v427, %v423
    %v488 = vpack.c.b16 %v432, %v428
    %v489 = vpack.c.b16 %v433, %v429
    %v490 = vpack.c.b16 %v434, %v430
    %v491 = vpack.c.b16 %v435, %v431
    %v492 = vpack.c.b16 %v440, %v436
    %v493 = vpack.c.b16 %v441, %v437
    %v494 = vpack.c.b16 %v442, %v438
    %v495 = vpack.c.b16 %v443, %v439
    %v496 = vpack.c.b16 %v448, %v444
    %v497 = vpack.c.b16 %v449, %v445
    %v498 = vpack.c.b16 %v450, %v446
    %v499 = vpack.c.b16 %v451, %v447
    %v500 = vpack.c.b16 %v456, %v452
    %v501 = vpack.c.b16 %v457, %v453
    %v502 = vpack.c.b16 %v458, %v454
    %v503 = vpack.c.b16 %v459, %v455
    %v504 = vpack.c.b16 %v464, %v460
    %v505 = vpack.c.b16 %v465, %v461
    %v506 = vpack.c.b16 %v466, %v462
    %v507 = vpack.c.b16 %v467, %v463
    %v508 = vpack.c.b16 %v472, %v468
    %v509 = vpack.c.b16 %v473, %v469
    %v510 = vpack.c.b16 %v474, %v470
    %v511 = vpack.c.b16 %v475, %v471
    %v512 = vpack.c.b16 %v480, %v476
    %v513 = vpack.c.b16 %v481, %v477
    %v514 = vpack.c.b16 %v482, %v478
    %v515 = vpack.c.b16 %v483, %v479
    %548 = vmatprep.subr.bf16.mxu0 %v485
    %549 = vmatpush1.bf16.msra.mxu0 %v484
    %550 = vmatprep.subr.bf16.mxu0 %v489
    %551 = vmatpush1.bf16.msra.mxu0 %v488
    %552 = vmatprep.subr.bf16.mxu0 %v493
    %553 = vmatpush1.bf16.msra.mxu0 %v492
    %554 = vmatprep.subr.bf16.mxu0 %v497
    %555 = vmatpush1.bf16.msra.mxu0 %v496
    %556 = vmatprep.subr.bf16.mxu0 %v501
    %557 = vmatpush1.bf16.msra.mxu0 %v500
    %558 = vmatprep.subr.bf16.mxu0 %v505
    %559 = vmatpush1.bf16.msra.mxu0 %v504
    %560 = vmatprep.subr.bf16.mxu0 %v509
    %561 = vmatpush1.bf16.msra.mxu0 %v508
    %562 = vmatprep.subr.bf16.mxu0 %v513
    %563 = vmatpush1.bf16.msra.mxu0 %v512
    %564 = vmatprep.subr.bf16.mxu0 0
    %565 = vmatpush1.bf16.msra.mxu0 0
    %566 = vmatprep.subr.bf16.mxu0 0
    %567 = vmatpush1.bf16.msra.mxu0 0
    %568 = vmatprep.subr.bf16.mxu0 0
    %569 = vmatpush1.bf16.msra.mxu0 0
    %570 = vmatprep.subr.bf16.mxu0 0
    %571 = vmatpush1.bf16.msra.mxu0 0
    %572 = vmatprep.subr.bf16.mxu0 0
    %573 = vmatpush1.bf16.msra.mxu0 0
    %574 = vmatprep.subr.bf16.mxu0 0
    %575 = vmatpush1.bf16.msra.mxu0 0
    %576 = vmatprep.subr.bf16.mxu0 0
    %577 = vmatpush1.bf16.msra.mxu0 0
    %578 = vmatprep.subr.bf16.mxu0 0
    %579 = vmatpush1.bf16.msra.mxu0 0
    %580 = vmatprep.mubr.bf16.mxu0 0
    %581 = vmatmul.mubr.bf16.gmra.mrb[0].mxu0 %v340
    %v582 = vpop.f32.mrb[0].mxu0
    %v583 = vadd.f32 0.0, %v582
    %v584 = vpop.f32.mrb[0].mxu0
    %v585 = vadd.f32 0.0, %v584
    %v586 = vpop.f32.mrb[0].mxu0
    %v587 = vpop.f32.mrb[0].mxu0
    %588 = vdwg.mxu0
    %589 = vmatprep.subr.bf16.mxu0 %v487
    %590 = vmatpush1.bf16.msra.mxu0 %v486
    %591 = vmatprep.subr.bf16.mxu0 %v491
    %592 = vmatpush1.bf16.msra.mxu0 %v490
    %593 = vmatprep.subr.bf16.mxu0 %v495
    %594 = vmatpush1.bf16.msra.mxu0 %v494
    %595 = vmatprep.subr.bf16.mxu0 %v499
    %596 = vmatpush1.bf16.msra.mxu0 %v498
    %597 = vmatprep.subr.bf16.mxu0 %v503
    %598 = vmatpush1.bf16.msra.mxu0 %v502
    %599 = vmatprep.subr.bf16.mxu0 %v507
    %600 = vmatpush1.bf16.msra.mxu0 %v506
    %601 = vmatprep.subr.bf16.mxu0 %v511
    %602 = vmatpush1.bf16.msra.mxu0 %v510
    %603 = vmatprep.subr.bf16.mxu0 %v515
    %604 = vmatpush1.bf16.msra.mxu0 %v514
    %605 = vmatprep.subr.bf16.mxu0 0
    %606 = vmatpush1.bf16.msra.mxu0 0
    %607 = vmatprep.subr.bf16.mxu0 0
    %608 = vmatpush1.bf16.msra.mxu0 0
    %609 = vmatprep.subr.bf16.mxu0 0
    %610 = vmatpush1.bf16.msra.mxu0 0
    %611 = vmatprep.subr.bf16.mxu0 0
    %612 = vmatpush1.bf16.msra.mxu0 0
    %613 = vmatprep.subr.bf16.mxu0 0
    %614 = vmatpush1.bf16.msra.mxu0 0
    %615 = vmatprep.subr.bf16.mxu0 0
    %616 = vmatpush1.bf16.msra.mxu0 0
    %617 = vmatprep.subr.bf16.mxu0 0
    %618 = vmatpush1.bf16.msra.mxu0 0
    %619 = vmatprep.subr.bf16.mxu0 0
    %620 = vmatpush1.bf16.msra.mxu0 0
    %621 = vmatprep.mubr.bf16.mxu0 0
    %622 = vmatmul.mubr.bf16.gmra.mrb[0].mxu0 %v340
    %v623 = vpop.f32.mrb[0].mxu0
    %v624 = vadd.f32 0.0, %v623
    %v625 = vpop.f32.mrb[0].mxu0
    %v626 = vadd.f32 0.0, %v625
    %v627 = vpop.f32.mrb[0].mxu0
    %v628 = vpop.f32.mrb[0].mxu0
    %629 = vdwg.mxu0
    %v634 = vcombine.low %v583, %v585
    %v635 = vcombine.high %v583, %v585
    %v636 = vcombine.low %v624, %v626
    %v637 = vcombine.high %v624, %v626
    %v639 = vunpack.c.l.s4 1966171168
    %v640 = vunpack.c.0.s8 %v639
    %v641 = vlaneseq
    %v642 = vshrl.u32 %v641, 7
    %v643 = vsub.s32 %v640, %v642
    %v644 = vrot.slane %v634, %v643
    %v646 = vunpack.c.l.s4 1966171168
    %v647 = vunpack.c.0.s8 %v646
    %v648 = vlaneseq
    %v649 = vshrl.u32 %v648, 7
    %v650 = vsub.s32 %v647, %v649
    %v651 = vrot.slane %v635, %v650
    %v653 = vunpack.c.l.s4 1966171168
    %v654 = vunpack.c.0.s8 %v653
    %v655 = vlaneseq
    %v656 = vshrl.u32 %v655, 7
    %v657 = vsub.s32 %v654, %v656
    %v658 = vrot.slane %v636, %v657
    %v660 = vunpack.c.l.s4 1966171168
    %v661 = vunpack.c.0.s8 %v660
    %v662 = vlaneseq
    %v663 = vshrl.u32 %v662, 7
    %v664 = vsub.s32 %v661, %v663
    %v665 = vrot.slane %v637, %v664
    %v666 = vcombine.low %v644, %v658
    %v667 = vcombine.high %v644, %v658
    %v668 = vcombine.low %v651, %v665
    %v669 = vcombine.high %v651, %v665
    %v671 = vunpack.c.l.s4 1966171168
    %v672 = vunpack.c.0.s8 %v671
    %v673 = vlaneseq
    %v674 = vshrl.u32 %v673, 7
    %v675 = vsub.s32 %v672, %v674
    %v676 = vrot.slane %v666, %v675
    %v678 = vunpack.c.l.s4 1966171168
    %v679 = vunpack.c.0.s8 %v678
    %v680 = vlaneseq
    %v681 = vshrl.u32 %v680, 7
    %v682 = vsub.s32 %v679, %v681
    %v683 = vrot.slane %v668, %v682
    %v685 = vunpack.c.l.s4 1966171168
    %v686 = vunpack.c.0.s8 %v685
    %v687 = vlaneseq
    %v688 = vshrl.u32 %v687, 7
    %v689 = vsub.s32 %v686, %v688
    %v690 = vrot.slane %v667, %v689
    %v692 = vunpack.c.l.s4 1966171168
    %v693 = vunpack.c.0.s8 %v692
    %v694 = vlaneseq
    %v695 = vshrl.u32 %v694, 7
    %v696 = vsub.s32 %v693, %v695
    %v697 = vrot.slane %v669, %v696
    %v698 = vcombine.high %v676, %v676
    %v699 = vcombine.high %v683, %v683
    %v700 = vcombine.high %v690, %v690
    %v701 = vcombine.high %v697, %v697
    %v710 = vadd.f32 %v341, %v676
    %v711 = vadd.f32 %v343, %v690
    %v712 = vadd.f32 %v345, %v698
    %v713 = vadd.f32 %v347, %v700
    %v714 = vadd.f32 %v349, %v683
    %v715 = vadd.f32 %v351, %v697
    %v716 = vadd.f32 %v353, %v699
    %v717 = vadd.f32 %v355, %v701
    %v718 = vxor.u32 %v710, 2147483648
    %v719 = vxor.u32 %v711, 2147483648
    %v720 = vxor.u32 %v712, 2147483648
    %v721 = vxor.u32 %v713, 2147483648
    %v722 = vxor.u32 %v714, 2147483648
    %v723 = vxor.u32 %v715, 2147483648
    %v724 = vxor.u32 %v716, 2147483648
    %v725 = vxor.u32 %v717, 2147483648
    %v726 = vmul.f32 %v718, 1.442695
    %v727 = vpow.pop %v726
    %v728 = vmul.f32 %v719, 1.442695
    %v729 = vpow.pop %v728
    %v730 = vmul.f32 %v720, 1.442695
    %v731 = vpow.pop %v730
    %v732 = vmul.f32 %v721, 1.442695
    %v733 = vpow.pop %v732
    %v734 = vmul.f32 %v722, 1.442695
    %v735 = vpow.pop %v734
    %v736 = vmul.f32 %v723, 1.442695
    %v737 = vpow.pop %v736
    %v738 = vmul.f32 %v724, 1.442695
    %v739 = vpow.pop %v738
    %v740 = vmul.f32 %v725, 1.442695
    %v741 = vpow.pop %v740
    %v742 = vadd.f32 %v727, 1.0
    %v743 = vadd.f32 %v729, 1.0
    %v744 = vadd.f32 %v731, 1.0
    %v745 = vadd.f32 %v733, 1.0
    %v746 = vadd.f32 %v735, 1.0
    %v747 = vadd.f32 %v737, 1.0
    %v748 = vadd.f32 %v739, 1.0
    %v749 = vadd.f32 %v741, 1.0
    %v750 = vrcp.pop %v742
    %v751 = vmul.f32 1.0, %v750
    %v752 = vrcp.pop %v743
    %v753 = vmul.f32 1.0, %v752
    %v754 = vrcp.pop %v744
    %v755 = vmul.f32 1.0, %v754
    %v756 = vrcp.pop %v745
    %v757 = vmul.f32 1.0, %v756
    %v758 = vrcp.pop %v746
    %v759 = vmul.f32 1.0, %v758
    %v760 = vrcp.pop %v747
    %v761 = vmul.f32 1.0, %v760
    %v762 = vrcp.pop %v748
    %v763 = vmul.f32 1.0, %v762
    %v764 = vrcp.pop %v749
    %v765 = vmul.f32 1.0, %v764
    %v774 = vrot.slane %v710, 1
    %v775 = vrot.slane %v711, 1
    %v776 = vrot.slane %v712, 1
    %v777 = vrot.slane %v713, 1
    %v778 = vrot.slane %v714, 1
    %v779 = vrot.slane %v715, 1
    %v780 = vrot.slane %v716, 1
    %v781 = vrot.slane %v717, 1
    %v790 = vxor.u32 %v774, 2147483648
    %v791 = vxor.u32 %v775, 2147483648
    %v792 = vxor.u32 %v776, 2147483648
    %v793 = vxor.u32 %v777, 2147483648
    %v794 = vxor.u32 %v778, 2147483648
    %v795 = vxor.u32 %v779, 2147483648
    %v796 = vxor.u32 %v780, 2147483648
    %v797 = vxor.u32 %v781, 2147483648
    %v798 = vmul.f32 %v790, 1.442695
    %v799 = vpow.pop %v798
    %v800 = vmul.f32 %v791, 1.442695
    %v801 = vpow.pop %v800
    %v802 = vmul.f32 %v792, 1.442695
    %v803 = vpow.pop %v802
    %v804 = vmul.f32 %v793, 1.442695
    %v805 = vpow.pop %v804
    %v806 = vmul.f32 %v794, 1.442695
    %v807 = vpow.pop %v806
    %v808 = vmul.f32 %v795, 1.442695
    %v809 = vpow.pop %v808
    %v810 = vmul.f32 %v796, 1.442695
    %v811 = vpow.pop %v810
    %v812 = vmul.f32 %v797, 1.442695
    %v813 = vpow.pop %v812
    %v814 = vadd.f32 %v799, 1.0
    %v815 = vadd.f32 %v801, 1.0
    %v816 = vadd.f32 %v803, 1.0
    %v817 = vadd.f32 %v805, 1.0
    %v818 = vadd.f32 %v807, 1.0
    %v819 = vadd.f32 %v809, 1.0
    %v820 = vadd.f32 %v811, 1.0
    %v821 = vadd.f32 %v813, 1.0
    %v822 = vrcp.pop %v814
    %v823 = vmul.f32 1.0, %v822
    %v824 = vrcp.pop %v815
    %v825 = vmul.f32 1.0, %v824
    %v826 = vrcp.pop %v816
    %v827 = vmul.f32 1.0, %v826
    %v828 = vrcp.pop %v817
    %v829 = vmul.f32 1.0, %v828
    %v830 = vrcp.pop %v818
    %v831 = vmul.f32 1.0, %v830
    %v832 = vrcp.pop %v819
    %v833 = vmul.f32 1.0, %v832
    %v834 = vrcp.pop %v820
    %v835 = vmul.f32 1.0, %v834
    %v836 = vrcp.pop %v821
    %v837 = vmul.f32 1.0, %v836
    %v838 = vrot.slane %v710, 2
    %v839 = vrot.slane %v711, 2
    %v840 = vrot.slane %v712, 2
    %v841 = vrot.slane %v713, 2
    %v842 = vrot.slane %v714, 2
    %v843 = vrot.slane %v715, 2
    %v844 = vrot.slane %v716, 2
    %v845 = vrot.slane %v717, 2
    %v854 = vtanh.pop %v838
    %v855 = vtanh.pop %v839
    %v856 = vtanh.pop %v840
    %v857 = vtanh.pop %v841
    %v858 = vtanh.pop %v842
    %v859 = vtanh.pop %v843
    %v860 = vtanh.pop %v844
    %v861 = vtanh.pop %v845
    %v862 = vrot.slane %v710, 3
    %v863 = vrot.slane %v711, 3
    %v864 = vrot.slane %v712, 3
    %v865 = vrot.slane %v713, 3
    %v866 = vrot.slane %v714, 3
    %v867 = vrot.slane %v715, 3
    %v868 = vrot.slane %v716, 3
    %v869 = vrot.slane %v717, 3
    %v878 = vxor.u32 %v862, 2147483648
    %v879 = vxor.u32 %v863, 2147483648
    %v880 = vxor.u32 %v864, 2147483648
    %v881 = vxor.u32 %v865, 2147483648
    %v882 = vxor.u32 %v866, 2147483648
    %v883 = vxor.u32 %v867, 2147483648
    %v884 = vxor.u32 %v868, 2147483648
    %v885 = vxor.u32 %v869, 2147483648
    %v886 = vmul.f32 %v878, 1.442695
    %v887 = vpow.pop %v886
    %v888 = vmul.f32 %v879, 1.442695
    %v889 = vpow.pop %v888
    %v890 = vmul.f32 %v880, 1.442695
    %v891 = vpow.pop %v890
    %v892 = vmul.f32 %v881, 1.442695
    %v893 = vpow.pop %v892
    %v894 = vmul.f32 %v882, 1.442695
    %v895 = vpow.pop %v894
    %v896 = vmul.f32 %v883, 1.442695
    %v897 = vpow.pop %v896
    %v898 = vmul.f32 %v884, 1.442695
    %v899 = vpow.pop %v898
    %v900 = vmul.f32 %v885, 1.442695
    %v901 = vpow.pop %v900
    %v902 = vadd.f32 %v887, 1.0
    %v903 = vadd.f32 %v889, 1.0
    %v904 = vadd.f32 %v891, 1.0
    %v905 = vadd.f32 %v893, 1.0
    %v906 = vadd.f32 %v895, 1.0
    %v907 = vadd.f32 %v897, 1.0
    %v908 = vadd.f32 %v899, 1.0
    %v909 = vadd.f32 %v901, 1.0
    %v910 = vrcp.pop %v902
    %v911 = vmul.f32 1.0, %v910
    %v912 = vrcp.pop %v903
    %v913 = vmul.f32 1.0, %v912
    %v914 = vrcp.pop %v904
    %v915 = vmul.f32 1.0, %v914
    %v916 = vrcp.pop %v905
    %v917 = vmul.f32 1.0, %v916
    %v918 = vrcp.pop %v906
    %v919 = vmul.f32 1.0, %v918
    %v920 = vrcp.pop %v907
    %v921 = vmul.f32 1.0, %v920
    %v922 = vrcp.pop %v908
    %v923 = vmul.f32 1.0, %v922
    %v924 = vrcp.pop %v909
    %v925 = vmul.f32 1.0, %v924
    %v927 = vcombine.high %v339, %v339
    %v929 = vunpack.c.l.s4 1966171168
    %v930 = vunpack.c.0.s8 %v929
    %v931 = vlaneseq
    %v932 = vshrl.u32 %v931, 7
    %v933 = vsub.s32 %v930, %v932
    %v934 = vrot.slane %v339, %v933
    %v936 = vunpack.c.l.s4 1966171168
    %v937 = vunpack.c.0.s8 %v936
    %v938 = vlaneseq
    %v939 = vshrl.u32 %v938, 7
    %v940 = vsub.s32 %v937, %v939
    %v941 = vrot.slane %v927, %v940
    %v942 = vcombine.high %v934, %v934
    %v943 = vcombine.high %v941, %v941
    %v945 = vunpack.c.l.s4 1966171168
    %v946 = vunpack.c.0.s8 %v945
    %v947 = vlaneseq
    %v948 = vshrl.u32 %v947, 7
    %v949 = vsub.s32 %v946, %v948
    %v950 = vrot.slane %v934, %v949
    %v952 = vunpack.c.l.s4 1966171168
    %v953 = vunpack.c.0.s8 %v952
    %v954 = vlaneseq
    %v955 = vshrl.u32 %v954, 7
    %v956 = vsub.s32 %v953, %v955
    %v957 = vrot.slane %v941, %v956
    %v959 = vunpack.c.l.s4 1966171168
    %v960 = vunpack.c.0.s8 %v959
    %v961 = vlaneseq
    %v962 = vshrl.u32 %v961, 7
    %v963 = vsub.s32 %v960, %v962
    %v964 = vrot.slane %v942, %v963
    %v966 = vunpack.c.l.s4 1966171168
    %v967 = vunpack.c.0.s8 %v966
    %v968 = vlaneseq
    %v969 = vshrl.u32 %v968, 7
    %v970 = vsub.s32 %v967, %v969
    %v971 = vrot.slane %v943, %v970
    %v972 = vcombine.high %v950, %v950
    %v973 = vcombine.high %v957, %v957
    %v974 = vcombine.high %v964, %v964
    %v975 = vcombine.high %v971, %v971
    %v984 = vmul.f32 %v823, %v950
    %v985 = vmul.f32 %v825, %v964
    %v986 = vmul.f32 %v827, %v972
    %v987 = vmul.f32 %v829, %v974
    %v988 = vmul.f32 %v831, %v957
    %v989 = vmul.f32 %v833, %v971
    %v990 = vmul.f32 %v835, %v973
    %v991 = vmul.f32 %v837, %v975
    %v992 = vmul.f32 %v751, %v854
    %v993 = vmul.f32 %v753, %v855
    %v994 = vmul.f32 %v755, %v856
    %v995 = vmul.f32 %v757, %v857
    %v996 = vmul.f32 %v759, %v858
    %v997 = vmul.f32 %v761, %v859
    %v998 = vmul.f32 %v763, %v860
    %v999 = vmul.f32 %v765, %v861
    %v1000 = vadd.f32 %v984, %v992
    %v1001 = vadd.f32 %v985, %v993
    %v1002 = vadd.f32 %v986, %v994
    %v1003 = vadd.f32 %v987, %v995
    %v1004 = vadd.f32 %v988, %v996
    %v1005 = vadd.f32 %v989, %v997
    %v1006 = vadd.f32 %v990, %v998
    %v1007 = vadd.f32 %v991, %v999
    %v1008 = vtanh.pop %v1000
    %v1009 = vtanh.pop %v1001
    %v1010 = vtanh.pop %v1002
    %v1011 = vtanh.pop %v1003
    %v1012 = vtanh.pop %v1004
    %v1013 = vtanh.pop %v1005
    %v1014 = vtanh.pop %v1006
    %v1015 = vtanh.pop %v1007
    %v1016 = vmul.f32 %v911, %v1008
    %v1017 = vmul.f32 %v913, %v1009
    %v1018 = vmul.f32 %v915, %v1010
    %v1019 = vmul.f32 %v917, %v1011
    %v1020 = vmul.f32 %v919, %v1012
    %v1021 = vmul.f32 %v921, %v1013
    %v1022 = vmul.f32 %v923, %v1014
    %v1023 = vmul.f32 %v925, %v1015
    %1024 = vst [vmem:[#allocation5] sm:$0x1] %v1016
    %1025 = vst [vmem:[#allocation5 + $0x8] sm:$0x1] %v1017
    %1026 = vst [vmem:[#allocation5 + $0x10] sm:$0x1] %v1018
    %1027 = vst [vmem:[#allocation5 + $0x18] sm:$0x1] %v1019
    %1028 = vst [vmem:[#allocation5 + $0x20] sm:$0x1] %v1020
    %1029 = vst [vmem:[#allocation5 + $0x28] sm:$0x1] %v1021
    %1030 = vst [vmem:[#allocation5 + $0x30] sm:$0x1] %v1022
    %1031 = vst [vmem:[#allocation5 + $0x38] sm:$0x1] %v1023
    %v1032 = vpack.c.bf16 %v1016, %v1016
    %v1033 = vpack.c.bf16 %v1017, %v1017
    %v1034 = vpack.c.bf16 %v1018, %v1018
    %v1035 = vpack.c.bf16 %v1019, %v1019
    %v1036 = vpack.c.bf16 %v1020, %v1020
    %v1037 = vpack.c.bf16 %v1021, %v1021
    %v1038 = vpack.c.bf16 %v1022, %v1022
    %v1039 = vpack.c.bf16 %v1023, %v1023
    %s1040 = scalar_lea.vmem [#allocation4], 1
    %v1041 = vld [vmem:[%s1040] ss:$8 sm:$0xf]
    %s1042 = scalar_lea.vmem [#allocation4], 33
    %v1043 = vld [vmem:[%s1042] ss:$8 sm:$0xf]
    %s1044 = scalar_lea.vmem [#allocation4], 65
    %v1045 = vld [vmem:[%s1044] ss:$8 sm:$0xf]
    %s1046 = scalar_lea.vmem [#allocation4], 97
    %v1047 = vld [vmem:[%s1046] ss:$8 sm:$0xf]
    %s1048 = scalar_lea.vmem [#allocation4], 129
    %v1049 = vld [vmem:[%s1048] ss:$8 sm:$0xf]
    %s1050 = scalar_lea.vmem [#allocation4], 161
    %v1051 = vld [vmem:[%s1050] ss:$8 sm:$0xf]
    %s1052 = scalar_lea.vmem [#allocation4], 193
    %v1053 = vld [vmem:[%s1052] ss:$8 sm:$0xf]
    %s1054 = scalar_lea.vmem [#allocation4], 225
    %v1055 = vld [vmem:[%s1054] ss:$8 sm:$0xf]
    %v1056 = vld [vmem:[#allocation11] sm:$0xff]
    %v1057 = vld [vmem:[#allocation11 + $0x8] sm:$0xff]
    %v1058 = vld [vmem:[#allocation11 + $0x10] sm:$0xff]
    %v1059 = vld [vmem:[#allocation11 + $0x18] sm:$0xff]
    %v1060 = vld [vmem:[#allocation11 + $0x20] sm:$0xff]
    %v1061 = vld [vmem:[#allocation11 + $0x28] sm:$0xff]
    %v1062 = vld [vmem:[#allocation11 + $0x30] sm:$0xff]
    %v1063 = vld [vmem:[#allocation11 + $0x38] sm:$0xff]
    %v1064 = vld [vmem:[#allocation11 + $0x40] sm:$0xff]
    %v1065 = vld [vmem:[#allocation11 + $0x48] sm:$0xff]
    %v1066 = vld [vmem:[#allocation11 + $0x50] sm:$0xff]
    %v1067 = vld [vmem:[#allocation11 + $0x58] sm:$0xff]
    %v1068 = vld [vmem:[#allocation11 + $0x60] sm:$0xff]
    %v1069 = vld [vmem:[#allocation11 + $0x68] sm:$0xff]
    %v1070 = vld [vmem:[#allocation11 + $0x70] sm:$0xff]
    %v1071 = vld [vmem:[#allocation11 + $0x78] sm:$0xff]
    %v1072 = vld [vmem:[#allocation11 + $0x80] sm:$0xff]
    %v1073 = vld [vmem:[#allocation11 + $0x88] sm:$0xff]
    %v1074 = vld [vmem:[#allocation11 + $0x90] sm:$0xff]
    %v1075 = vld [vmem:[#allocation11 + $0x98] sm:$0xff]
    %v1076 = vld [vmem:[#allocation11 + $0xa0] sm:$0xff]
    %v1077 = vld [vmem:[#allocation11 + $0xa8] sm:$0xff]
    %v1078 = vld [vmem:[#allocation11 + $0xb0] sm:$0xff]
    %v1079 = vld [vmem:[#allocation11 + $0xb8] sm:$0xff]
    %v1080 = vld [vmem:[#allocation11 + $0xc0] sm:$0xff]
    %v1081 = vld [vmem:[#allocation11 + $0xc8] sm:$0xff]
    %v1082 = vld [vmem:[#allocation11 + $0xd0] sm:$0xff]
    %v1083 = vld [vmem:[#allocation11 + $0xd8] sm:$0xff]
    %v1084 = vld [vmem:[#allocation11 + $0xe0] sm:$0xff]
    %v1085 = vld [vmem:[#allocation11 + $0xe8] sm:$0xff]
    %v1086 = vld [vmem:[#allocation11 + $0xf0] sm:$0xff]
    %v1087 = vld [vmem:[#allocation11 + $0xf8] sm:$0xff]
    %v1096 = vunpack.c.l.b16 %v1032
    %v1097 = vunpack.c.l.b16 %v1033
    %v1098 = vunpack.c.l.b16 %v1034
    %v1099 = vunpack.c.l.b16 %v1035
    %v1100 = vunpack.c.l.b16 %v1036
    %v1101 = vunpack.c.l.b16 %v1037
    %v1102 = vunpack.c.l.b16 %v1038
    %v1103 = vunpack.c.l.b16 %v1039
    %v1104 = vrot.slane %v1097, 7
    %vm1105 = vcmask 1041409
    %v1106 = vsel %vm1105, %v1104, %v1096
    %v1107 = vrot.slane %v1098, 6
    %vm1108 = vcmask 1042434
    %v1109 = vsel %vm1108, %v1107, %v1106
    %v1110 = vrot.slane %v1099, 5
    %vm1111 = vcmask 1043459
    %v1112 = vsel %vm1111, %v1110, %v1109
    %v1113 = vrot.slane %v1100, 4
    %vm1114 = vcmask 1044484
    %v1115 = vsel %vm1114, %v1113, %v1112
    %v1116 = vrot.slane %v1101, 3
    %vm1117 = vcmask 1045509
    %v1118 = vsel %vm1117, %v1116, %v1115
    %v1119 = vrot.slane %v1102, 2
    %vm1120 = vcmask 1046534
    %v1121 = vsel %vm1120, %v1119, %v1118
    %v1122 = vrot.slane %v1103, 1
    %vm1123 = vcmask 1047559
    %v1124 = vsel %vm1123, %v1122, %v1121
    %v1125 = vpack.c.b16 %v1124, %v1124
    %v1159 = vunpack.c.l.b16 %v1056
    %v1160 = vunpack.c.h.b16 %v1056
    %v1161 = vunpack.c.l.b16 %v1057
    %v1162 = vunpack.c.h.b16 %v1057
    %v1163 = vunpack.c.l.b16 %v1058
    %v1164 = vunpack.c.h.b16 %v1058
    %v1165 = vunpack.c.l.b16 %v1059
    %v1166 = vunpack.c.h.b16 %v1059
    %v1167 = vunpack.c.l.b16 %v1060
    %v1168 = vunpack.c.h.b16 %v1060
    %v1169 = vunpack.c.l.b16 %v1061
    %v1170 = vunpack.c.h.b16 %v1061
    %v1171 = vunpack.c.l.b16 %v1062
    %v1172 = vunpack.c.h.b16 %v1062
    %v1173 = vunpack.c.l.b16 %v1063
    %v1174 = vunpack.c.h.b16 %v1063
    %v1175 = vunpack.c.l.b16 %v1064
    %v1176 = vunpack.c.h.b16 %v1064
    %v1177 = vunpack.c.l.b16 %v1065
    %v1178 = vunpack.c.h.b16 %v1065
    %v1179 = vunpack.c.l.b16 %v1066
    %v1180 = vunpack.c.h.b16 %v1066
    %v1181 = vunpack.c.l.b16 %v1067
    %v1182 = vunpack.c.h.b16 %v1067
    %v1183 = vunpack.c.l.b16 %v1068
    %v1184 = vunpack.c.h.b16 %v1068
    %v1185 = vunpack.c.l.b16 %v1069
    %v1186 = vunpack.c.h.b16 %v1069
    %v1187 = vunpack.c.l.b16 %v1070
    %v1188 = vunpack.c.h.b16 %v1070
    %v1189 = vunpack.c.l.b16 %v1071
    %v1190 = vunpack.c.h.b16 %v1071
    %v1191 = vunpack.c.l.b16 %v1072
    %v1192 = vunpack.c.h.b16 %v1072
    %v1193 = vunpack.c.l.b16 %v1073
    %v1194 = vunpack.c.h.b16 %v1073
    %v1195 = vunpack.c.l.b16 %v1074
    %v1196 = vunpack.c.h.b16 %v1074
    %v1197 = vunpack.c.l.b16 %v1075
    %v1198 = vunpack.c.h.b16 %v1075
    %v1199 = vunpack.c.l.b16 %v1076
    %v1200 = vunpack.c.h.b16 %v1076
    %v1201 = vunpack.c.l.b16 %v1077
    %v1202 = vunpack.c.h.b16 %v1077
    %v1203 = vunpack.c.l.b16 %v1078
    %v1204 = vunpack.c.h.b16 %v1078
    %v1205 = vunpack.c.l.b16 %v1079
    %v1206 = vunpack.c.h.b16 %v1079
    %v1207 = vunpack.c.l.b16 %v1080
    %v1208 = vunpack.c.h.b16 %v1080
    %v1209 = vunpack.c.l.b16 %v1081
    %v1210 = vunpack.c.h.b16 %v1081
    %v1211 = vunpack.c.l.b16 %v1082
    %v1212 = vunpack.c.h.b16 %v1082
    %v1213 = vunpack.c.l.b16 %v1083
    %v1214 = vunpack.c.h.b16 %v1083
    %v1215 = vunpack.c.l.b16 %v1084
    %v1216 = vunpack.c.h.b16 %v1084
    %v1217 = vunpack.c.l.b16 %v1085
    %v1218 = vunpack.c.h.b16 %v1085
    %v1219 = vunpack.c.l.b16 %v1086
    %v1220 = vunpack.c.h.b16 %v1086
    %v1221 = vunpack.c.l.b16 %v1087
    %v1222 = vunpack.c.h.b16 %v1087
    %v1223 = vpack.c.b16 %v1163, %v1159
    %v1224 = vpack.c.b16 %v1164, %v1160
    %v1225 = vpack.c.b16 %v1165, %v1161
    %v1226 = vpack.c.b16 %v1166, %v1162
    %v1227 = vpack.c.b16 %v1171, %v1167
    %v1228 = vpack.c.b16 %v1172, %v1168
    %v1229 = vpack.c.b16 %v1173, %v1169
    %v1230 = vpack.c.b16 %v1174, %v1170
    %v1231 = vpack.c.b16 %v1179, %v1175
    %v1232 = vpack.c.b16 %v1180, %v1176
    %v1233 = vpack.c.b16 %v1181, %v1177
    %v1234 = vpack.c.b16 %v1182, %v1178
    %v1235 = vpack.c.b16 %v1187, %v1183
    %v1236 = vpack.c.b16 %v1188, %v1184
    %v1237 = vpack.c.b16 %v1189, %v1185
    %v1238 = vpack.c.b16 %v1190, %v1186
    %v1239 = vpack.c.b16 %v1195, %v1191
    %v1240 = vpack.c.b16 %v1196, %v1192
    %v1241 = vpack.c.b16 %v1197, %v1193
    %v1242 = vpack.c.b16 %v1198, %v1194
    %v1243 = vpack.c.b16 %v1203, %v1199
    %v1244 = vpack.c.b16 %v1204, %v1200
    %v1245 = vpack.c.b16 %v1205, %v1201
    %v1246 = vpack.c.b16 %v1206, %v1202
    %v1247 = vpack.c.b16 %v1211, %v1207
    %v1248 = vpack.c.b16 %v1212, %v1208
    %v1249 = vpack.c.b16 %v1213, %v1209
    %v1250 = vpack.c.b16 %v1214, %v1210
    %v1251 = vpack.c.b16 %v1219, %v1215
    %v1252 = vpack.c.b16 %v1220, %v1216
    %v1253 = vpack.c.b16 %v1221, %v1217
    %v1254 = vpack.c.b16 %v1222, %v1218
    %1287 = vmatprep.subr.bf16.mxu0 %v1224
    %1288 = vmatpush1.bf16.msra.mxu0 %v1223
    %1289 = vmatprep.subr.bf16.mxu0 %v1228
    %1290 = vmatpush1.bf16.msra.mxu0 %v1227
    %1291 = vmatprep.subr.bf16.mxu0 %v1232
    %1292 = vmatpush1.bf16.msra.mxu0 %v1231
    %1293 = vmatprep.subr.bf16.mxu0 %v1236
    %1294 = vmatpush1.bf16.msra.mxu0 %v1235
    %1295 = vmatprep.subr.bf16.mxu0 %v1240
    %1296 = vmatpush1.bf16.msra.mxu0 %v1239
    %1297 = vmatprep.subr.bf16.mxu0 %v1244
    %1298 = vmatpush1.bf16.msra.mxu0 %v1243
    %1299 = vmatprep.subr.bf16.mxu0 %v1248
    %1300 = vmatpush1.bf16.msra.mxu0 %v1247
    %1301 = vmatprep.subr.bf16.mxu0 %v1252
    %1302 = vmatpush1.bf16.msra.mxu0 %v1251
    %1303 = vmatprep.subr.bf16.mxu0 0
    %1304 = vmatpush1.bf16.msra.mxu0 0
    %1305 = vmatprep.subr.bf16.mxu0 0
    %1306 = vmatpush1.bf16.msra.mxu0 0
    %1307 = vmatprep.subr.bf16.mxu0 0
    %1308 = vmatpush1.bf16.msra.mxu0 0
    %1309 = vmatprep.subr.bf16.mxu0 0
    %1310 = vmatpush1.bf16.msra.mxu0 0
    %1311 = vmatprep.subr.bf16.mxu0 0
    %1312 = vmatpush1.bf16.msra.mxu0 0
    %1313 = vmatprep.subr.bf16.mxu0 0
    %1314 = vmatpush1.bf16.msra.mxu0 0
    %1315 = vmatprep.subr.bf16.mxu0 0
    %1316 = vmatpush1.bf16.msra.mxu0 0
    %1317 = vmatprep.subr.bf16.mxu0 0
    %1318 = vmatpush1.bf16.msra.mxu0 0
    %1319 = vmatprep.mubr.bf16.mxu0 0
    %1320 = vmatmul.mubr.bf16.gmra.mrb[0].mxu0 %v1125
    %v1321 = vpop.f32.mrb[0].mxu0
    %v1322 = vadd.f32 0.0, %v1321
    %v1323 = vpop.f32.mrb[0].mxu0
    %v1324 = vadd.f32 0.0, %v1323
    %v1325 = vpop.f32.mrb[0].mxu0
    %v1326 = vpop.f32.mrb[0].mxu0
    %1327 = vdwg.mxu0
    %1328 = vmatprep.subr.bf16.mxu0 %v1226
    %1329 = vmatpush1.bf16.msra.mxu0 %v1225
    %1330 = vmatprep.subr.bf16.mxu0 %v1230
    %1331 = vmatpush1.bf16.msra.mxu0 %v1229
    %1332 = vmatprep.subr.bf16.mxu0 %v1234
    %1333 = vmatpush1.bf16.msra.mxu0 %v1233
    %1334 = vmatprep.subr.bf16.mxu0 %v1238
    %1335 = vmatpush1.bf16.msra.mxu0 %v1237
    %1336 = vmatprep.subr.bf16.mxu0 %v1242
    %1337 = vmatpush1.bf16.msra.mxu0 %v1241
    %1338 = vmatprep.subr.bf16.mxu0 %v1246
    %1339 = vmatpush1.bf16.msra.mxu0 %v1245
    %1340 = vmatprep.subr.bf16.mxu0 %v1250
    %1341 = vmatpush1.bf16.msra.mxu0 %v1249
    %1342 = vmatprep.subr.bf16.mxu0 %v1254
    %1343 = vmatpush1.bf16.msra.mxu0 %v1253
    %1344 = vmatprep.subr.bf16.mxu0 0
    %1345 = vmatpush1.bf16.msra.mxu0 0
    %1346 = vmatprep.subr.bf16.mxu0 0
    %1347 = vmatpush1.bf16.msra.mxu0 0
    %1348 = vmatprep.subr.bf16.mxu0 0
    %1349 = vmatpush1.bf16.msra.mxu0 0
    %1350 = vmatprep.subr.bf16.mxu0 0
    %1351 = vmatpush1.bf16.msra.mxu0 0
    %1352 = vmatprep.subr.bf16.mxu0 0
    %1353 = vmatpush1.bf16.msra.mxu0 0
    %1354 = vmatprep.subr.bf16.mxu0 0
    %1355 = vmatpush1.bf16.msra.mxu0 0
    %1356 = vmatprep.subr.bf16.mxu0 0
    %1357 = vmatpush1.bf16.msra.mxu0 0
    %1358 = vmatprep.subr.bf16.mxu0 0
    %1359 = vmatpush1.bf16.msra.mxu0 0
    %1360 = vmatprep.mubr.bf16.mxu0 0
    %1361 = vmatmul.mubr.bf16.gmra.mrb[0].mxu0 %v1125
    %v1362 = vpop.f32.mrb[0].mxu0
    %v1363 = vadd.f32 0.0, %v1362
    %v1364 = vpop.f32.mrb[0].mxu0
    %v1365 = vadd.f32 0.0, %v1364
    %v1366 = vpop.f32.mrb[0].mxu0
    %v1367 = vpop.f32.mrb[0].mxu0
    %1368 = vdwg.mxu0
    %v1373 = vcombine.low %v1322, %v1324
    %v1374 = vcombine.high %v1322, %v1324
    %v1375 = vcombine.low %v1363, %v1365
    %v1376 = vcombine.high %v1363, %v1365
    %v1378 = vunpack.c.l.s4 1966171168
    %v1379 = vunpack.c.0.s8 %v1378
    %v1380 = vlaneseq
    %v1381 = vshrl.u32 %v1380, 7
    %v1382 = vsub.s32 %v1379, %v1381
    %v1383 = vrot.slane %v1373, %v1382
    %v1385 = vunpack.c.l.s4 1966171168
    %v1386 = vunpack.c.0.s8 %v1385
    %v1387 = vlaneseq
    %v1388 = vshrl.u32 %v1387, 7
    %v1389 = vsub.s32 %v1386, %v1388
    %v1390 = vrot.slane %v1374, %v1389
    %v1392 = vunpack.c.l.s4 1966171168
    %v1393 = vunpack.c.0.s8 %v1392
    %v1394 = vlaneseq
    %v1395 = vshrl.u32 %v1394, 7
    %v1396 = vsub.s32 %v1393, %v1395
    %v1397 = vrot.slane %v1375, %v1396
    %v1399 = vunpack.c.l.s4 1966171168
    %v1400 = vunpack.c.0.s8 %v1399
    %v1401 = vlaneseq
    %v1402 = vshrl.u32 %v1401, 7
    %v1403 = vsub.s32 %v1400, %v1402
    %v1404 = vrot.slane %v1376, %v1403
    %v1405 = vcombine.low %v1383, %v1397
    %v1406 = vcombine.high %v1383, %v1397
    %v1407 = vcombine.low %v1390, %v1404
    %v1408 = vcombine.high %v1390, %v1404
    %v1410 = vunpack.c.l.s4 1966171168
    %v1411 = vunpack.c.0.s8 %v1410
    %v1412 = vlaneseq
    %v1413 = vshrl.u32 %v1412, 7
    %v1414 = vsub.s32 %v1411, %v1413
    %v1415 = vrot.slane %v1405, %v1414
    %v1417 = vunpack.c.l.s4 1966171168
    %v1418 = vunpack.c.0.s8 %v1417
    %v1419 = vlaneseq
    %v1420 = vshrl.u32 %v1419, 7
    %v1421 = vsub.s32 %v1418, %v1420
    %v1422 = vrot.slane %v1407, %v1421
    %v1424 = vunpack.c.l.s4 1966171168
    %v1425 = vunpack.c.0.s8 %v1424
    %v1426 = vlaneseq
    %v1427 = vshrl.u32 %v1426, 7
    %v1428 = vsub.s32 %v1425, %v1427
    %v1429 = vrot.slane %v1406, %v1428
    %v1431 = vunpack.c.l.s4 1966171168
    %v1432 = vunpack.c.0.s8 %v1431
    %v1433 = vlaneseq
    %v1434 = vshrl.u32 %v1433, 7
    %v1435 = vsub.s32 %v1432, %v1434
    %v1436 = vrot.slane %v1408, %v1435
    %v1437 = vcombine.high %v1415, %v1415
    %v1438 = vcombine.high %v1422, %v1422
    %v1439 = vcombine.high %v1429, %v1429
    %v1440 = vcombine.high %v1436, %v1436
    %v1449 = vadd.f32 %v1041, %v1415
    %v1450 = vadd.f32 %v1043, %v1429
    %v1451 = vadd.f32 %v1045, %v1437
    %v1452 = vadd.f32 %v1047, %v1439
    %v1453 = vadd.f32 %v1049, %v1422
    %v1454 = vadd.f32 %v1051, %v1436
    %v1455 = vadd.f32 %v1053, %v1438
    %v1456 = vadd.f32 %v1055, %v1440
    %v1457 = vxor.u32 %v1449, 2147483648
    %v1458 = vxor.u32 %v1450, 2147483648
    %v1459 = vxor.u32 %v1451, 2147483648
    %v1460 = vxor.u32 %v1452, 2147483648
    %v1461 = vxor.u32 %v1453, 2147483648
    %v1462 = vxor.u32 %v1454, 2147483648
    %v1463 = vxor.u32 %v1455, 2147483648
    %v1464 = vxor.u32 %v1456, 2147483648
    %v1465 = vmul.f32 %v1457, 1.442695
    %v1466 = vpow.pop %v1465
    %v1467 = vmul.f32 %v1458, 1.442695
    %v1468 = vpow.pop %v1467
    %v1469 = vmul.f32 %v1459, 1.442695
    %v1470 = vpow.pop %v1469
    %v1471 = vmul.f32 %v1460, 1.442695
    %v1472 = vpow.pop %v1471
    %v1473 = vmul.f32 %v1461, 1.442695
    %v1474 = vpow.pop %v1473
    %v1475 = vmul.f32 %v1462, 1.442695
    %v1476 = vpow.pop %v1475
    %v1477 = vmul.f32 %v1463, 1.442695
    %v1478 = vpow.pop %v1477
    %v1479 = vmul.f32 %v1464, 1.442695
    %v1480 = vpow.pop %v1479
    %v1481 = vadd.f32 %v1466, 1.0
    %v1482 = vadd.f32 %v1468, 1.0
    %v1483 = vadd.f32 %v1470, 1.0
    %v1484 = vadd.f32 %v1472, 1.0
    %v1485 = vadd.f32 %v1474, 1.0
    %v1486 = vadd.f32 %v1476, 1.0
    %v1487 = vadd.f32 %v1478, 1.0
    %v1488 = vadd.f32 %v1480, 1.0
    %v1489 = vrcp.pop %v1481
    %v1490 = vmul.f32 1.0, %v1489
    %v1491 = vrcp.pop %v1482
    %v1492 = vmul.f32 1.0, %v1491
    %v1493 = vrcp.pop %v1483
    %v1494 = vmul.f32 1.0, %v1493
    %v1495 = vrcp.pop %v1484
    %v1496 = vmul.f32 1.0, %v1495
    %v1497 = vrcp.pop %v1485
    %v1498 = vmul.f32 1.0, %v1497
    %v1499 = vrcp.pop %v1486
    %v1500 = vmul.f32 1.0, %v1499
    %v1501 = vrcp.pop %v1487
    %v1502 = vmul.f32 1.0, %v1501
    %v1503 = vrcp.pop %v1488
    %v1504 = vmul.f32 1.0, %v1503
    %v1513 = vrot.slane %v1449, 1
    %v1514 = vrot.slane %v1450, 1
    %v1515 = vrot.slane %v1451, 1
    %v1516 = vrot.slane %v1452, 1
    %v1517 = vrot.slane %v1453, 1
    %v1518 = vrot.slane %v1454, 1
    %v1519 = vrot.slane %v1455, 1
    %v1520 = vrot.slane %v1456, 1
    %v1529 = vxor.u32 %v1513, 2147483648
    %v1530 = vxor.u32 %v1514, 2147483648
    %v1531 = vxor.u32 %v1515, 2147483648
    %v1532 = vxor.u32 %v1516, 2147483648
    %v1533 = vxor.u32 %v1517, 2147483648
    %v1534 = vxor.u32 %v1518, 2147483648
    %v1535 = vxor.u32 %v1519, 2147483648
    %v1536 = vxor.u32 %v1520, 2147483648
    %v1537 = vmul.f32 %v1529, 1.442695
    %v1538 = vpow.pop %v1537
    %v1539 = vmul.f32 %v1530, 1.442695
    %v1540 = vpow.pop %v1539
    %v1541 = vmul.f32 %v1531, 1.442695
    %v1542 = vpow.pop %v1541
    %v1543 = vmul.f32 %v1532, 1.442695
    %v1544 = vpow.pop %v1543
    %v1545 = vmul.f32 %v1533, 1.442695
    %v1546 = vpow.pop %v1545
    %v1547 = vmul.f32 %v1534, 1.442695
    %v1548 = vpow.pop %v1547
    %v1549 = vmul.f32 %v1535, 1.442695
    %v1550 = vpow.pop %v1549
    %v1551 = vmul.f32 %v1536, 1.442695
    %v1552 = vpow.pop %v1551
    %v1553 = vadd.f32 %v1538, 1.0
    %v1554 = vadd.f32 %v1540, 1.0
    %v1555 = vadd.f32 %v1542, 1.0
    %v1556 = vadd.f32 %v1544, 1.0
    %v1557 = vadd.f32 %v1546, 1.0
    %v1558 = vadd.f32 %v1548, 1.0
    %v1559 = vadd.f32 %v1550, 1.0
    %v1560 = vadd.f32 %v1552, 1.0
    %v1561 = vrcp.pop %v1553
    %v1562 = vmul.f32 1.0, %v1561
    %v1563 = vrcp.pop %v1554
    %v1564 = vmul.f32 1.0, %v1563
    %v1565 = vrcp.pop %v1555
    %v1566 = vmul.f32 1.0, %v1565
    %v1567 = vrcp.pop %v1556
    %v1568 = vmul.f32 1.0, %v1567
    %v1569 = vrcp.pop %v1557
    %v1570 = vmul.f32 1.0, %v1569
    %v1571 = vrcp.pop %v1558
    %v1572 = vmul.f32 1.0, %v1571
    %v1573 = vrcp.pop %v1559
    %v1574 = vmul.f32 1.0, %v1573
    %v1575 = vrcp.pop %v1560
    %v1576 = vmul.f32 1.0, %v1575
    %v1577 = vrot.slane %v1449, 2
    %v1578 = vrot.slane %v1450, 2
    %v1579 = vrot.slane %v1451, 2
    %v1580 = vrot.slane %v1452, 2
    %v1581 = vrot.slane %v1453, 2
    %v1582 = vrot.slane %v1454, 2
    %v1583 = vrot.slane %v1455, 2
    %v1584 = vrot.slane %v1456, 2
    %v1593 = vtanh.pop %v1577
    %v1594 = vtanh.pop %v1578
    %v1595 = vtanh.pop %v1579
    %v1596 = vtanh.pop %v1580
    %v1597 = vtanh.pop %v1581
    %v1598 = vtanh.pop %v1582
    %v1599 = vtanh.pop %v1583
    %v1600 = vtanh.pop %v1584
    %v1601 = vrot.slane %v1449, 3
    %v1602 = vrot.slane %v1450, 3
    %v1603 = vrot.slane %v1451, 3
    %v1604 = vrot.slane %v1452, 3
    %v1605 = vrot.slane %v1453, 3
    %v1606 = vrot.slane %v1454, 3
    %v1607 = vrot.slane %v1455, 3
    %v1608 = vrot.slane %v1456, 3
    %v1617 = vxor.u32 %v1601, 2147483648
    %v1618 = vxor.u32 %v1602, 2147483648
    %v1619 = vxor.u32 %v1603, 2147483648
    %v1620 = vxor.u32 %v1604, 2147483648
    %v1621 = vxor.u32 %v1605, 2147483648
    %v1622 = vxor.u32 %v1606, 2147483648
    %v1623 = vxor.u32 %v1607, 2147483648
    %v1624 = vxor.u32 %v1608, 2147483648
    %v1625 = vmul.f32 %v1617, 1.442695
    %v1626 = vpow.pop %v1625
    %v1627 = vmul.f32 %v1618, 1.442695
    %v1628 = vpow.pop %v1627
    %v1629 = vmul.f32 %v1619, 1.442695
    %v1630 = vpow.pop %v1629
    %v1631 = vmul.f32 %v1620, 1.442695
    %v1632 = vpow.pop %v1631
    %v1633 = vmul.f32 %v1621, 1.442695
    %v1634 = vpow.pop %v1633
    %v1635 = vmul.f32 %v1622, 1.442695
    %v1636 = vpow.pop %v1635
    %v1637 = vmul.f32 %v1623, 1.442695
    %v1638 = vpow.pop %v1637
    %v1639 = vmul.f32 %v1624, 1.442695
    %v1640 = vpow.pop %v1639
    %v1641 = vadd.f32 %v1626, 1.0
    %v1642 = vadd.f32 %v1628, 1.0
    %v1643 = vadd.f32 %v1630, 1.0
    %v1644 = vadd.f32 %v1632, 1.0
    %v1645 = vadd.f32 %v1634, 1.0
    %v1646 = vadd.f32 %v1636, 1.0
    %v1647 = vadd.f32 %v1638, 1.0
    %v1648 = vadd.f32 %v1640, 1.0
    %v1649 = vrcp.pop %v1641
    %v1650 = vmul.f32 1.0, %v1649
    %v1651 = vrcp.pop %v1642
    %v1652 = vmul.f32 1.0, %v1651
    %v1653 = vrcp.pop %v1643
    %v1654 = vmul.f32 1.0, %v1653
    %v1655 = vrcp.pop %v1644
    %v1656 = vmul.f32 1.0, %v1655
    %v1657 = vrcp.pop %v1645
    %v1658 = vmul.f32 1.0, %v1657
    %v1659 = vrcp.pop %v1646
    %v1660 = vmul.f32 1.0, %v1659
    %v1661 = vrcp.pop %v1647
    %v1662 = vmul.f32 1.0, %v1661
    %v1663 = vrcp.pop %v1648
    %v1664 = vmul.f32 1.0, %v1663
    %v1665 = vmul.f32 %v1562, %v1000
    %v1666 = vmul.f32 %v1564, %v1001
    %v1667 = vmul.f32 %v1566, %v1002
    %v1668 = vmul.f32 %v1568, %v1003
    %v1669 = vmul.f32 %v1570, %v1004
    %v1670 = vmul.f32 %v1572, %v1005
    %v1671 = vmul.f32 %v1574, %v1006
    %v1672 = vmul.f32 %v1576, %v1007
    %v1673 = vmul.f32 %v1490, %v1593
    %v1674 = vmul.f32 %v1492, %v1594
    %v1675 = vmul.f32 %v1494, %v1595
    %v1676 = vmul.f32 %v1496, %v1596
    %v1677 = vmul.f32 %v1498, %v1597
    %v1678 = vmul.f32 %v1500, %v1598
    %v1679 = vmul.f32 %v1502, %v1599
    %v1680 = vmul.f32 %v1504, %v1600
    %v1681 = vadd.f32 %v1665, %v1673
    %v1682 = vadd.f32 %v1666, %v1674
    %v1683 = vadd.f32 %v1667, %v1675
    %v1684 = vadd.f32 %v1668, %v1676
    %v1685 = vadd.f32 %v1669, %v1677
    %v1686 = vadd.f32 %v1670, %v1678
    %v1687 = vadd.f32 %v1671, %v1679
    %v1688 = vadd.f32 %v1672, %v1680
    %v1689 = vtanh.pop %v1681
    %v1690 = vtanh.pop %v1682
    %v1691 = vtanh.pop %v1683
    %v1692 = vtanh.pop %v1684
    %v1693 = vtanh.pop %v1685
    %v1694 = vtanh.pop %v1686
    %v1695 = vtanh.pop %v1687
    %v1696 = vtanh.pop %v1688
    %v1697 = vmul.f32 %v1650, %v1689
    %v1698 = vmul.f32 %v1652, %v1690
    %v1699 = vmul.f32 %v1654, %v1691
    %v1700 = vmul.f32 %v1656, %v1692
    %v1701 = vmul.f32 %v1658, %v1693
    %v1702 = vmul.f32 %v1660, %v1694
    %v1703 = vmul.f32 %v1662, %v1695
    %v1704 = vmul.f32 %v1664, %v1696
    %1705 = vst [vmem:[#allocation5 + $0x1] sm:$0x1] %v1697
    %1706 = vst [vmem:[#allocation5 + $0x9] sm:$0x1] %v1698
    %1707 = vst [vmem:[#allocation5 + $0x11] sm:$0x1] %v1699
    %1708 = vst [vmem:[#allocation5 + $0x19] sm:$0x1] %v1700
    %1709 = vst [vmem:[#allocation5 + $0x21] sm:$0x1] %v1701
    %1710 = vst [vmem:[#allocation5 + $0x29] sm:$0x1] %v1702
    %1711 = vst [vmem:[#allocation5 + $0x31] sm:$0x1] %v1703
    %1712 = vst [vmem:[#allocation5 + $0x39] sm:$0x1] %v1704
    %v1713 = vpack.c.bf16 %v1697, %v1697
    %v1714 = vpack.c.bf16 %v1698, %v1698
    %v1715 = vpack.c.bf16 %v1699, %v1699
    %v1716 = vpack.c.bf16 %v1700, %v1700
    %v1717 = vpack.c.bf16 %v1701, %v1701
    %v1718 = vpack.c.bf16 %v1702, %v1702
    %v1719 = vpack.c.bf16 %v1703, %v1703
    %v1720 = vpack.c.bf16 %v1704, %v1704
    %s1721 = scalar_lea.vmem [#allocation4], 2
    %v1722 = vld [vmem:[%s1721] ss:$8 sm:$0xf]
    %s1723 = scalar_lea.vmem [#allocation4], 34
    %v1724 = vld [vmem:[%s1723] ss:$8 sm:$0xf]
    %s1725 = scalar_lea.vmem [#allocation4], 66
    %v1726 = vld [vmem:[%s1725] ss:$8 sm:$0xf]
    %s1727 = scalar_lea.vmem [#allocation4], 98
    %v1728 = vld [vmem:[%s1727] ss:$8 sm:$0xf]
    %s1729 = scalar_lea.vmem [#allocation4], 130
    %v1730 = vld [vmem:[%s1729] ss:$8 sm:$0xf]
    %s1731 = scalar_lea.vmem [#allocation4], 162
    %v1732 = vld [vmem:[%s1731] ss:$8 sm:$0xf]
    %s1733 = scalar_lea.vmem [#allocation4], 194
    %v1734 = vld [vmem:[%s1733] ss:$8 sm:$0xf]
    %s1735 = scalar_lea.vmem [#allocation4], 226
    %v1736 = vld [vmem:[%s1735] ss:$8 sm:$0xf]
    %v1737 = vld [vmem:[#allocation11] sm:$0xff]
    %v1738 = vld [vmem:[#allocation11 + $0x8] sm:$0xff]
    %v1739 = vld [vmem:[#allocation11 + $0x10] sm:$0xff]
    %v1740 = vld [vmem:[#allocation11 + $0x18] sm:$0xff]
    %v1741 = vld [vmem:[#allocation11 + $0x20] sm:$0xff]
    %v1742 = vld [vmem:[#allocation11 + $0x28] sm:$0xff]
    %v1743 = vld [vmem:[#allocation11 + $0x30] sm:$0xff]
    %v1744 = vld [vmem:[#allocation11 + $0x38] sm:$0xff]
    %v1745 = vld [vmem:[#allocation11 + $0x40] sm:$0xff]
    %v1746 = vld [vmem:[#allocation11 + $0x48] sm:$0xff]
    %v1747 = vld [vmem:[#allocation11 + $0x50] sm:$0xff]
    %v1748 = vld [vmem:[#allocation11 + $0x58] sm:$0xff]
    %v1749 = vld [vmem:[#allocation11 + $0x60] sm:$0xff]
    %v1750 = vld [vmem:[#allocation11 + $0x68] sm:$0xff]
    %v1751 = vld [vmem:[#allocation11 + $0x70] sm:$0xff]
    %v1752 = vld [vmem:[#allocation11 + $0x78] sm:$0xff]
    %v1753 = vld [vmem:[#allocation11 + $0x80] sm:$0xff]
    %v1754 = vld [vmem:[#allocation11 + $0x88] sm:$0xff]
    %v1755 = vld [vmem:[#allocation11 + $0x90] sm:$0xff]
    %v1756 = vld [vmem:[#allocation11 + $0x98] sm:$0xff]
    %v1757 = vld [vmem:[#allocation11 + $0xa0] sm:$0xff]
    %v1758 = vld [vmem:[#allocation11 + $0xa8] sm:$0xff]
    %v1759 = vld [vmem:[#allocation11 + $0xb0] sm:$0xff]
    %v1760 = vld [vmem:[#allocation11 + $0xb8] sm:$0xff]
    %v1761 = vld [vmem:[#allocation11 + $0xc0] sm:$0xff]
    %v1762 = vld [vmem:[#allocation11 + $0xc8] sm:$0xff]
    %v1763 = vld [vmem:[#allocation11 + $0xd0] sm:$0xff]
    %v1764 = vld [vmem:[#allocation11 + $0xd8] sm:$0xff]
    %v1765 = vld [vmem:[#allocation11 + $0xe0] sm:$0xff]
    %v1766 = vld [vmem:[#allocation11 + $0xe8] sm:$0xff]
    %v1767 = vld [vmem:[#allocation11 + $0xf0] sm:$0xff]
    %v1768 = vld [vmem:[#allocation11 + $0xf8] sm:$0xff]
    %v1777 = vunpack.c.l.b16 %v1713
    %v1778 = vunpack.c.l.b16 %v1714
    %v1779 = vunpack.c.l.b16 %v1715
    %v1780 = vunpack.c.l.b16 %v1716
    %v1781 = vunpack.c.l.b16 %v1717
    %v1782 = vunpack.c.l.b16 %v1718
    %v1783 = vunpack.c.l.b16 %v1719
    %v1784 = vunpack.c.l.b16 %v1720
    %v1785 = vrot.slane %v1778, 7
    %v1786 = vsel %vm1105, %v1785, %v1777
    %v1787 = vrot.slane %v1779, 6
    %v1788 = vsel %vm1108, %v1787, %v1786
    %v1789 = vrot.slane %v1780, 5
    %v1790 = vsel %vm1111, %v1789, %v1788
    %v1791 = vrot.slane %v1781, 4
    %v1792 = vsel %vm1114, %v1791, %v1790
    %v1793 = vrot.slane %v1782, 3
    %v1794 = vsel %vm1117, %v1793, %v1792
    %v1795 = vrot.slane %v1783, 2
    %v1796 = vsel %vm1120, %v1795, %v1794
    %v1797 = vrot.slane %v1784, 1
    %v1798 = vsel %vm1123, %v1797, %v1796
    %v1799 = vpack.c.b16 %v1798, %v1798
    %v1833 = vunpack.c.l.b16 %v1737
    %v1834 = vunpack.c.h.b16 %v1737
    %v1835 = vunpack.c.l.b16 %v1738
    %v1836 = vunpack.c.h.b16 %v1738
    %v1837 = vunpack.c.l.b16 %v1739
    %v1838 = vunpack.c.h.b16 %v1739
    %v1839 = vunpack.c.l.b16 %v1740
    %v1840 = vunpack.c.h.b16 %v1740
    %v1841 = vunpack.c.l.b16 %v1741
    %v1842 = vunpack.c.h.b16 %v1741
    %v1843 = vunpack.c.l.b16 %v1742
    %v1844 = vunpack.c.h.b16 %v1742
    %v1845 = vunpack.c.l.b16 %v1743
    %v1846 = vunpack.c.h.b16 %v1743
    %v1847 = vunpack.c.l.b16 %v1744
    %v1848 = vunpack.c.h.b16 %v1744
    %v1849 = vunpack.c.l.b16 %v1745
    %v1850 = vunpack.c.h.b16 %v1745
    %v1851 = vunpack.c.l.b16 %v1746
    %v1852 = vunpack.c.h.b16 %v1746
    %v1853 = vunpack.c.l.b16 %v1747
    %v1854 = vunpack.c.h.b16 %v1747
    %v1855 = vunpack.c.l.b16 %v1748
    %v1856 = vunpack.c.h.b16 %v1748
    %v1857 = vunpack.c.l.b16 %v1749
    %v1858 = vunpack.c.h.b16 %v1749
    %v1859 = vunpack.c.l.b16 %v1750
    %v1860 = vunpack.c.h.b16 %v1750
    %v1861 = vunpack.c.l.b16 %v1751
    %v1862 = vunpack.c.h.b16 %v1751
    %v1863 = vunpack.c.l.b16 %v1752
    %v1864 = vunpack.c.h.b16 %v1752
    %v1865 = vunpack.c.l.b16 %v1753
    %v1866 = vunpack.c.h.b16 %v1753
    %v1867 = vunpack.c.l.b16 %v1754
    %v1868 = vunpack.c.h.b16 %v1754
    %v1869 = vunpack.c.l.b16 %v1755
    %v1870 = vunpack.c.h.b16 %v1755
    %v1871 = vunpack.c.l.b16 %v1756
    %v1872 = vunpack.c.h.b16 %v1756
    %v1873 = vunpack.c.l.b16 %v1757
    %v1874 = vunpack.c.h.b16 %v1757
    %v1875 = vunpack.c.l.b16 %v1758
    %v1876 = vunpack.c.h.b16 %v1758
    %v1877 = vunpack.c.l.b16 %v1759
    %v1878 = vunpack.c.h.b16 %v1759
    %v1879 = vunpack.c.l.b16 %v1760
    %v1880 = vunpack.c.h.b16 %v1760
    %v1881 = vunpack.c.l.b16 %v1761
    %v1882 = vunpack.c.h.b16 %v1761
    %v1883 = vunpack.c.l.b16 %v1762
    %v1884 = vunpack.c.h.b16 %v1762
    %v1885 = vunpack.c.l.b16 %v1763
    %v1886 = vunpack.c.h.b16 %v1763
    %v1887 = vunpack.c.l.b16 %v1764
    %v1888 = vunpack.c.h.b16 %v1764
    %v1889 = vunpack.c.l.b16 %v1765
    %v1890 = vunpack.c.h.b16 %v1765
    %v1891 = vunpack.c.l.b16 %v1766
    %v1892 = vunpack.c.h.b16 %v1766
    %v1893 = vunpack.c.l.b16 %v1767
    %v1894 = vunpack.c.h.b16 %v1767
    %v1895 = vunpack.c.l.b16 %v1768
    %v1896 = vunpack.c.h.b16 %v1768
    %v1897 = vpack.c.b16 %v1837, %v1833
    %v1898 = vpack.c.b16 %v1838, %v1834
    %v1899 = vpack.c.b16 %v1839, %v1835
    %v1900 = vpack.c.b16 %v1840, %v1836
    %v1901 = vpack.c.b16 %v1845, %v1841
    %v1902 = vpack.c.b16 %v1846, %v1842
    %v1903 = vpack.c.b16 %v1847, %v1843
    %v1904 = vpack.c.b16 %v1848, %v1844
    %v1905 = vpack.c.b16 %v1853, %v1849
    %v1906 = vpack.c.b16 %v1854, %v1850
    %v1907 = vpack.c.b16 %v1855, %v1851
    %v1908 = vpack.c.b16 %v1856, %v1852
    %v1909 = vpack.c.b16 %v1861, %v1857
    %v1910 = vpack.c.b16 %v1862, %v1858
    %v1911 = vpack.c.b16 %v1863, %v1859
    %v1912 = vpack.c.b16 %v1864, %v1860
    %v1913 = vpack.c.b16 %v1869, %v1865
    %v1914 = vpack.c.b16 %v1870, %v1866
    %v1915 = vpack.c.b16 %v1871, %v1867
    %v1916 = vpack.c.b16 %v1872, %v1868
    %v1917 = vpack.c.b16 %v1877, %v1873
    %v1918 = vpack.c.b16 %v1878, %v1874
    %v1919 = vpack.c.b16 %v1879, %v1875
    %v1920 = vpack.c.b16 %v1880, %v1876
    %v1921 = vpack.c.b16 %v1885, %v1881
    %v1922 = vpack.c.b16 %v1886, %v1882
    %v1923 = vpack.c.b16 %v1887, %v1883
    %v1924 = vpack.c.b16 %v1888, %v1884
    %v1925 = vpack.c.b16 %v1893, %v1889
    %v1926 = vpack.c.b16 %v1894, %v1890
    %v1927 = vpack.c.b16 %v1895, %v1891
    %v1928 = vpack.c.b16 %v1896, %v1892
    %1961 = vmatprep.subr.bf16.mxu0 %v1898
    %1962 = vmatpush1.bf16.msra.mxu0 %v1897
    %1963 = vmatprep.subr.bf16.mxu0 %v1902
    %1964 = vmatpush1.bf16.msra.mxu0 %v1901
    %1965 = vmatprep.subr.bf16.mxu0 %v1906
    %1966 = vmatpush1.bf16.msra.mxu0 %v1905
    %1967 = vmatprep.subr.bf16.mxu0 %v1910
    %1968 = vmatpush1.bf16.msra.mxu0 %v1909
    %1969 = vmatprep.subr.bf16.mxu0 %v1914
    %1970 = vmatpush1.bf16.msra.mxu0 %v1913
    %1971 = vmatprep.subr.bf16.mxu0 %v1918
    %1972 = vmatpush1.bf16.msra.mxu0 %v1917
    %1973 = vmatprep.subr.bf16.mxu0 %v1922
    %1974 = vmatpush1.bf16.msra.mxu0 %v1921
    %1975 = vmatprep.subr.bf16.mxu0 %v1926
    %1976 = vmatpush1.bf16.msra.mxu0 %v1925
    %1977 = vmatprep.subr.bf16.mxu0 0
    %1978 = vmatpush1.bf16.msra.mxu0 0
    %1979 = vmatprep.subr.bf16.mxu0 0
    %1980 = vmatpush1.bf16.msra.mxu0 0
    %1981 = vmatprep.subr.bf16.mxu0 0
    %1982 = vmatpush1.bf16.msra.mxu0 0
    %1983 = vmatprep.subr.bf16.mxu0 0
    %1984 = vmatpush1.bf16.msra.mxu0 0
    %1985 = vmatprep.subr.bf16.mxu0 0
    %1986 = vmatpush1.bf16.msra.mxu0 0
    %1987 = vmatprep.subr.bf16.mxu0 0
    %1988 = vmatpush1.bf16.msra.mxu0 0
    %1989 = vmatprep.subr.bf16.mxu0 0
    %1990 = vmatpush1.bf16.msra.mxu0 0
    %1991 = vmatprep.subr.bf16.mxu0 0
    %1992 = vmatpush1.bf16.msra.mxu0 0
    %1993 = vmatprep.mubr.bf16.mxu0 0
    %1994 = vmatmul.mubr.bf16.gmra.mrb[0].mxu0 %v1799
    %v1995 = vpop.f32.mrb[0].mxu0
    %v1996 = vadd.f32 0.0, %v1995
    %v1997 = vpop.f32.mrb[0].mxu0
    %v1998 = vadd.f32 0.0, %v1997
    %v1999 = vpop.f32.mrb[0].mxu0
    %v2000 = vpop.f32.mrb[0].mxu0
    %2001 = vdwg.mxu0
    %2002 = vmatprep.subr.bf16.mxu0 %v1900
    %2003 = vmatpush1.bf16.msra.mxu0 %v1899
    %2004 = vmatprep.subr.bf16.mxu0 %v1904
    %2005 = vmatpush1.bf16.msra.mxu0 %v1903
    %2006 = vmatprep.subr.bf16.mxu0 %v1908
    %2007 = vmatpush1.bf16.msra.mxu0 %v1907
    %2008 = vmatprep.subr.bf16.mxu0 %v1912
    %2009 = vmatpush1.bf16.msra.mxu0 %v1911
    %2010 = vmatprep.subr.bf16.mxu0 %v1916
    %2011 = vmatpush1.bf16.msra.mxu0 %v1915
    %2012 = vmatprep.subr.bf16.mxu0 %v1920
    %2013 = vmatpush1.bf16.msra.mxu0 %v1919
    %2014 = vmatprep.subr.bf16.mxu0 %v1924
    %2015 = vmatpush1.bf16.msra.mxu0 %v1923
    %2016 = vmatprep.subr.bf16.mxu0 %v1928
    %2017 = vmatpush1.bf16.msra.mxu0 %v1927
    %2018 = vmatprep.subr.bf16.mxu0 0
    %2019 = vmatpush1.bf16.msra.mxu0 0
    %2020 = vmatprep.subr.bf16.mxu0 0
    %2021 = vmatpush1.bf16.msra.mxu0 0
    %2022 = vmatprep.subr.bf16.mxu0 0
    %2023 = vmatpush1.bf16.msra.mxu0 0
    %2024 = vmatprep.subr.bf16.mxu0 0
    %2025 = vmatpush1.bf16.msra.mxu0 0
    %2026 = vmatprep.subr.bf16.mxu0 0
    %2027 = vmatpush1.bf16.msra.mxu0 0
    %2028 = vmatprep.subr.bf16.mxu0 0
    %2029 = vmatpush1.bf16.msra.mxu0 0
    %2030 = vmatprep.subr.bf16.mxu0 0
    %2031 = vmatpush1.bf16.msra.mxu0 0
    %2032 = vmatprep.subr.bf16.mxu0 0
    %2033 = vmatpush1.bf16.msra.mxu0 0
    %2034 = vmatprep.mubr.bf16.mxu0 0
    %2035 = vmatmul.mubr.bf16.gmra.mrb[0].mxu0 %v1799
    %v2036 = vpop.f32.mrb[0].mxu0
    %v2037 = vadd.f32 0.0, %v2036
    %v2038 = vpop.f32.mrb[0].mxu0
    %v2039 = vadd.f32 0.0, %v2038
    %v2040 = vpop.f32.mrb[0].mxu0
    %v2041 = vpop.f32.mrb[0].mxu0
    %2042 = vdwg.mxu0
    %v2047 = vcombine.low %v1996, %v1998
    %v2048 = vcombine.high %v1996, %v1998
    %v2049 = vcombine.low %v2037, %v2039
    %v2050 = vcombine.high %v2037, %v2039
    %v2052 = vunpack.c.l.s4 1966171168
    %v2053 = vunpack.c.0.s8 %v2052
    %v2054 = vlaneseq
    %v2055 = vshrl.u32 %v2054, 7
    %v2056 = vsub.s32 %v2053, %v2055
    %v2057 = vrot.slane %v2047, %v2056
    %v2059 = vunpack.c.l.s4 1966171168
    %v2060 = vunpack.c.0.s8 %v2059
    %v2061 = vlaneseq
    %v2062 = vshrl.u32 %v2061, 7
    %v2063 = vsub.s32 %v2060, %v2062
    %v2064 = vrot.slane %v2048, %v2063
    %v2066 = vunpack.c.l.s4 1966171168
    %v2067 = vunpack.c.0.s8 %v2066
    %v2068 = vlaneseq
    %v2069 = vshrl.u32 %v2068, 7
    %v2070 = vsub.s32 %v2067, %v2069
    %v2071 = vrot.slane %v2049, %v2070
    %v2073 = vunpack.c.l.s4 1966171168
    %v2074 = vunpack.c.0.s8 %v2073
    %v2075 = vlaneseq
    %v2076 = vshrl.u32 %v2075, 7
    %v2077 = vsub.s32 %v2074, %v2076
    %v2078 = vrot.slane %v2050, %v2077
    %v2079 = vcombine.low %v2057, %v2071
    %v2080 = vcombine.high %v2057, %v2071
    %v2081 = vcombine.low %v2064, %v2078
    %v2082 = vcombine.high %v2064, %v2078
    %v2084 = vunpack.c.l.s4 1966171168
    %v2085 = vunpack.c.0.s8 %v2084
    %v2086 = vlaneseq
    %v2087 = vshrl.u32 %v2086, 7
    %v2088 = vsub.s32 %v2085, %v2087
    %v2089 = vrot.slane %v2079, %v2088
    %v2091 = vunpack.c.l.s4 1966171168
    %v2092 = vunpack.c.0.s8 %v2091
    %v2093 = vlaneseq
    %v2094 = vshrl.u32 %v2093, 7
    %v2095 = vsub.s32 %v2092, %v2094
    %v2096 = vrot.slane %v2081, %v2095
    %v2098 = vunpack.c.l.s4 1966171168
    %v2099 = vunpack.c.0.s8 %v2098
    %v2100 = vlaneseq
    %v2101 = vshrl.u32 %v2100, 7
    %v2102 = vsub.s32 %v2099, %v2101
    %v2103 = vrot.slane %v2080, %v2102
    %v2105 = vunpack.c.l.s4 1966171168
    %v2106 = vunpack.c.0.s8 %v2105
    %v2107 = vlaneseq
    %v2108 = vshrl.u32 %v2107, 7
    %v2109 = vsub.s32 %v2106, %v2108
    %v2110 = vrot.slane %v2082, %v2109
    %v2111 = vcombine.high %v2089, %v2089
    %v2112 = vcombine.high %v2096, %v2096
    %v2113 = vcombine.high %v2103, %v2103
    %v2114 = vcombine.high %v2110, %v2110
    %v2123 = vadd.f32 %v1722, %v2089
    %v2124 = vadd.f32 %v1724, %v2103
    %v2125 = vadd.f32 %v1726, %v2111
    %v2126 = vadd.f32 %v1728, %v2113
    %v2127 = vadd.f32 %v1730, %v2096
    %v2128 = vadd.f32 %v1732, %v2110
    %v2129 = vadd.f32 %v1734, %v2112
    %v2130 = vadd.f32 %v1736, %v2114
    %v2131 = vxor.u32 %v2123, 2147483648
    %v2132 = vxor.u32 %v2124, 2147483648
    %v2133 = vxor.u32 %v2125, 2147483648
    %v2134 = vxor.u32 %v2126, 2147483648
    %v2135 = vxor.u32 %v2127, 2147483648
    %v2136 = vxor.u32 %v2128, 2147483648
    %v2137 = vxor.u32 %v2129, 2147483648
    %v2138 = vxor.u32 %v2130, 2147483648
    %v2139 = vmul.f32 %v2131, 1.442695
    %v2140 = vpow.pop %v2139
    %v2141 = vmul.f32 %v2132, 1.442695
    %v2142 = vpow.pop %v2141
    %v2143 = vmul.f32 %v2133, 1.442695
    %v2144 = vpow.pop %v2143
    %v2145 = vmul.f32 %v2134, 1.442695
    %v2146 = vpow.pop %v2145
    %v2147 = vmul.f32 %v2135, 1.442695
    %v2148 = vpow.pop %v2147
    %v2149 = vmul.f32 %v2136, 1.442695
    %v2150 = vpow.pop %v2149
    %v2151 = vmul.f32 %v2137, 1.442695
    %v2152 = vpow.pop %v2151
    %v2153 = vmul.f32 %v2138, 1.442695
    %v2154 = vpow.pop %v2153
    %v2155 = vadd.f32 %v2140, 1.0
    %v2156 = vadd.f32 %v2142, 1.0
    %v2157 = vadd.f32 %v2144, 1.0
    %v2158 = vadd.f32 %v2146, 1.0
    %v2159 = vadd.f32 %v2148, 1.0
    %v2160 = vadd.f32 %v2150, 1.0
    %v2161 = vadd.f32 %v2152, 1.0
    %v2162 = vadd.f32 %v2154, 1.0
    %v2163 = vrcp.pop %v2155
    %v2164 = vmul.f32 1.0, %v2163
    %v2165 = vrcp.pop %v2156
    %v2166 = vmul.f32 1.0, %v2165
    %v2167 = vrcp.pop %v2157
    %v2168 = vmul.f32 1.0, %v2167
    %v2169 = vrcp.pop %v2158
    %v2170 = vmul.f32 1.0, %v2169
    %v2171 = vrcp.pop %v2159
    %v2172 = vmul.f32 1.0, %v2171
    %v2173 = vrcp.pop %v2160
    %v2174 = vmul.f32 1.0, %v2173
    %v2175 = vrcp.pop %v2161
    %v2176 = vmul.f32 1.0, %v2175
    %v2177 = vrcp.pop %v2162
    %v2178 = vmul.f32 1.0, %v2177
    %v2187 = vrot.slane %v2123, 1
    %v2188 = vrot.slane %v2124, 1
    %v2189 = vrot.slane %v2125, 1
    %v2190 = vrot.slane %v2126, 1
    %v2191 = vrot.slane %v2127, 1
    %v2192 = vrot.slane %v2128, 1
    %v2193 = vrot.slane %v2129, 1
    %v2194 = vrot.slane %v2130, 1
    %v2203 = vxor.u32 %v2187, 2147483648
    %v2204 = vxor.u32 %v2188, 2147483648
    %v2205 = vxor.u32 %v2189, 2147483648
    %v2206 = vxor.u32 %v2190, 2147483648
    %v2207 = vxor.u32 %v2191, 2147483648
    %v2208 = vxor.u32 %v2192, 2147483648
    %v2209 = vxor.u32 %v2193, 2147483648
    %v2210 = vxor.u32 %v2194, 2147483648
    %v2211 = vmul.f32 %v2203, 1.442695
    %v2212 = vpow.pop %v2211
    %v2213 = vmul.f32 %v2204, 1.442695
    %v2214 = vpow.pop %v2213
    %v2215 = vmul.f32 %v2205, 1.442695
    %v2216 = vpow.pop %v2215
    %v2217 = vmul.f32 %v2206, 1.442695
    %v2218 = vpow.pop %v2217
    %v2219 = vmul.f32 %v2207, 1.442695
    %v2220 = vpow.pop %v2219
    %v2221 = vmul.f32 %v2208, 1.442695
    %v2222 = vpow.pop %v2221
    %v2223 = vmul.f32 %v2209, 1.442695
    %v2224 = vpow.pop %v2223
    %v2225 = vmul.f32 %v2210, 1.442695
    %v2226 = vpow.pop %v2225
    %v2227 = vadd.f32 %v2212, 1.0
    %v2228 = vadd.f32 %v2214, 1.0
    %v2229 = vadd.f32 %v2216, 1.0
    %v2230 = vadd.f32 %v2218, 1.0
    %v2231 = vadd.f32 %v2220, 1.0
    %v2232 = vadd.f32 %v2222, 1.0
    %v2233 = vadd.f32 %v2224, 1.0
    %v2234 = vadd.f32 %v2226, 1.0
    %v2235 = vrcp.pop %v2227
    %v2236 = vmul.f32 1.0, %v2235
    %v2237 = vrcp.pop %v2228
    %v2238 = vmul.f32 1.0, %v2237
    %v2239 = vrcp.pop %v2229
    %v2240 = vmul.f32 1.0, %v2239
    %v2241 = vrcp.pop %v2230
    %v2242 = vmul.f32 1.0, %v2241
    %v2243 = vrcp.pop %v2231
    %v2244 = vmul.f32 1.0, %v2243
    %v2245 = vrcp.pop %v2232
    %v2246 = vmul.f32 1.0, %v2245
    %v2247 = vrcp.pop %v2233
    %v2248 = vmul.f32 1.0, %v2247
    %v2249 = vrcp.pop %v2234
    %v2250 = vmul.f32 1.0, %v2249
    %v2251 = vrot.slane %v2123, 2
    %v2252 = vrot.slane %v2124, 2
    %v2253 = vrot.slane %v2125, 2
    %v2254 = vrot.slane %v2126, 2
    %v2255 = vrot.slane %v2127, 2
    %v2256 = vrot.slane %v2128, 2
    %v2257 = vrot.slane %v2129, 2
    %v2258 = vrot.slane %v2130, 2
    %v2267 = vtanh.pop %v2251
    %v2268 = vtanh.pop %v2252
    %v2269 = vtanh.pop %v2253
    %v2270 = vtanh.pop %v2254
    %v2271 = vtanh.pop %v2255
    %v2272 = vtanh.pop %v2256
    %v2273 = vtanh.pop %v2257
    %v2274 = vtanh.pop %v2258
    %v2275 = vrot.slane %v2123, 3
    %v2276 = vrot.slane %v2124, 3
    %v2277 = vrot.slane %v2125, 3
    %v2278 = vrot.slane %v2126, 3
    %v2279 = vrot.slane %v2127, 3
    %v2280 = vrot.slane %v2128, 3
    %v2281 = vrot.slane %v2129, 3
    %v2282 = vrot.slane %v2130, 3
    %v2291 = vxor.u32 %v2275, 2147483648
    %v2292 = vxor.u32 %v2276, 2147483648
    %v2293 = vxor.u32 %v2277, 2147483648
    %v2294 = vxor.u32 %v2278, 2147483648
    %v2295 = vxor.u32 %v2279, 2147483648
    %v2296 = vxor.u32 %v2280, 2147483648
    %v2297 = vxor.u32 %v2281, 2147483648
    %v2298 = vxor.u32 %v2282, 2147483648
    %v2299 = vmul.f32 %v2291, 1.442695
    %v2300 = vpow.pop %v2299
    %v2301 = vmul.f32 %v2292, 1.442695
    %v2302 = vpow.pop %v2301
    %v2303 = vmul.f32 %v2293, 1.442695
    %v2304 = vpow.pop %v2303
    %v2305 = vmul.f32 %v2294, 1.442695
    %v2306 = vpow.pop %v2305
    %v2307 = vmul.f32 %v2295, 1.442695
    %v2308 = vpow.pop %v2307
    %v2309 = vmul.f32 %v2296, 1.442695
    %v2310 = vpow.pop %v2309
    %v2311 = vmul.f32 %v2297, 1.442695
    %v2312 = vpow.pop %v2311
    %v2313 = vmul.f32 %v2298, 1.442695
    %v2314 = vpow.pop %v2313
    %v2315 = vadd.f32 %v2300, 1.0
    %v2316 = vadd.f32 %v2302, 1.0
    %v2317 = vadd.f32 %v2304, 1.0
    %v2318 = vadd.f32 %v2306, 1.0
    %v2319 = vadd.f32 %v2308, 1.0
    %v2320 = vadd.f32 %v2310, 1.0
    %v2321 = vadd.f32 %v2312, 1.0
    %v2322 = vadd.f32 %v2314, 1.0
    %v2323 = vrcp.pop %v2315
    %v2324 = vmul.f32 1.0, %v2323
    %v2325 = vrcp.pop %v2316
    %v2326 = vmul.f32 1.0, %v2325
    %v2327 = vrcp.pop %v2317
    %v2328 = vmul.f32 1.0, %v2327
    %v2329 = vrcp.pop %v2318
    %v2330 = vmul.f32 1.0, %v2329
    %v2331 = vrcp.pop %v2319
    %v2332 = vmul.f32 1.0, %v2331
    %v2333 = vrcp.pop %v2320
    %v2334 = vmul.f32 1.0, %v2333
    %v2335 = vrcp.pop %v2321
    %v2336 = vmul.f32 1.0, %v2335
    %v2337 = vrcp.pop %v2322
    %v2338 = vmul.f32 1.0, %v2337
    %v2339 = vmul.f32 %v2236, %v1681
    %v2340 = vmul.f32 %v2238, %v1682
    %v2341 = vmul.f32 %v2240, %v1683
    %v2342 = vmul.f32 %v2242, %v1684
    %v2343 = vmul.f32 %v2244, %v1685
    %v2344 = vmul.f32 %v2246, %v1686
    %v2345 = vmul.f32 %v2248, %v1687
    %v2346 = vmul.f32 %v2250, %v1688
    %v2347 = vmul.f32 %v2164, %v2267
    %v2348 = vmul.f32 %v2166, %v2268
    %v2349 = vmul.f32 %v2168, %v2269
    %v2350 = vmul.f32 %v2170, %v2270
    %v2351 = vmul.f32 %v2172, %v2271
    %v2352 = vmul.f32 %v2174, %v2272
    %v2353 = vmul.f32 %v2176, %v2273
    %v2354 = vmul.f32 %v2178, %v2274
    %v2355 = vadd.f32 %v2339, %v2347
    %v2356 = vadd.f32 %v2340, %v2348
    %v2357 = vadd.f32 %v2341, %v2349
    %v2358 = vadd.f32 %v2342, %v2350
    %v2359 = vadd.f32 %v2343, %v2351
    %v2360 = vadd.f32 %v2344, %v2352
    %v2361 = vadd.f32 %v2345, %v2353
    %v2362 = vadd.f32 %v2346, %v2354
    %v2363 = vtanh.pop %v2355
    %v2364 = vtanh.pop %v2356
    %v2365 = vtanh.pop %v2357
    %v2366 = vtanh.pop %v2358
    %v2367 = vtanh.pop %v2359
    %v2368 = vtanh.pop %v2360
    %v2369 = vtanh.pop %v2361
    %v2370 = vtanh.pop %v2362
    %v2371 = vmul.f32 %v2324, %v2363
    %v2372 = vmul.f32 %v2326, %v2364
    %v2373 = vmul.f32 %v2328, %v2365
    %v2374 = vmul.f32 %v2330, %v2366
    %v2375 = vmul.f32 %v2332, %v2367
    %v2376 = vmul.f32 %v2334, %v2368
    %v2377 = vmul.f32 %v2336, %v2369
    %v2378 = vmul.f32 %v2338, %v2370
    %2379 = vst [vmem:[#allocation5 + $0x2] sm:$0x1] %v2371
    %2380 = vst [vmem:[#allocation5 + $0xa] sm:$0x1] %v2372
    %2381 = vst [vmem:[#allocation5 + $0x12] sm:$0x1] %v2373
    %2382 = vst [vmem:[#allocation5 + $0x1a] sm:$0x1] %v2374
    %2383 = vst [vmem:[#allocation5 + $0x22] sm:$0x1] %v2375
    %2384 = vst [vmem:[#allocation5 + $0x2a] sm:$0x1] %v2376
    %2385 = vst [vmem:[#allocation5 + $0x32] sm:$0x1] %v2377
    %2386 = vst [vmem:[#allocation5 + $0x3a] sm:$0x1] %v2378
    %v2387 = vpack.c.bf16 %v2371, %v2371
    %v2388 = vpack.c.bf16 %v2372, %v2372
    %v2389 = vpack.c.bf16 %v2373, %v2373
    %v2390 = vpack.c.bf16 %v2374, %v2374
    %v2391 = vpack.c.bf16 %v2375, %v2375
    %v2392 = vpack.c.bf16 %v2376, %v2376
    %v2393 = vpack.c.bf16 %v2377, %v2377
    %v2394 = vpack.c.bf16 %v2378, %v2378
    %s2395 = scalar_lea.vmem [#allocation4], 3
    %v2396 = vld [vmem:[%s2395] ss:$8 sm:$0xf]
    %s2397 = scalar_lea.vmem [#allocation4], 35
    %v2398 = vld [vmem:[%s2397] ss:$8 sm:$0xf]
    %s2399 = scalar_lea.vmem [#allocation4], 67
    %v2400 = vld [vmem:[%s2399] ss:$8 sm:$0xf]
    %s2401 = scalar_lea.vmem [#allocation4], 99
    %v2402 = vld [vmem:[%s2401] ss:$8 sm:$0xf]
    %s2403 = scalar_lea.vmem [#allocation4], 131
    %v2404 = vld [vmem:[%s2403] ss:$8 sm:$0xf]
    %s2405 = scalar_lea.vmem [#allocation4], 163
    %v2406 = vld [vmem:[%s2405] ss:$8 sm:$0xf]
    %s2407 = scalar_lea.vmem [#allocation4], 195
    %v2408 = vld [vmem:[%s2407] ss:$8 sm:$0xf]
    %s2409 = scalar_lea.vmem [#allocation4], 227
    %v2410 = vld [vmem:[%s2409] ss:$8 sm:$0xf]
    %v2411 = vld [vmem:[#allocation11] sm:$0xff]
    %v2412 = vld [vmem:[#allocation11 + $0x8] sm:$0xff]
    %v2413 = vld [vmem:[#allocation11 + $0x10] sm:$0xff]
    %v2414 = vld [vmem:[#allocation11 + $0x18] sm:$0xff]
    %v2415 = vld [vmem:[#allocation11 + $0x20] sm:$0xff]
    %v2416 = vld [vmem:[#allocation11 + $0x28] sm:$0xff]
    %v2417 = vld [vmem:[#allocation11 + $0x30] sm:$0xff]
    %v2418 = vld [vmem:[#allocation11 + $0x38] sm:$0xff]
    %v2419 = vld [vmem:[#allocation11 + $0x40] sm:$0xff]
    %v2420 = vld [vmem:[#allocation11 + $0x48] sm:$0xff]
    %v2421 = vld [vmem:[#allocation11 + $0x50] sm:$0xff]
    %v2422 = vld [vmem:[#allocation11 + $0x58] sm:$0xff]
    %v2423 = vld [vmem:[#allocation11 + $0x60] sm:$0xff]
    %v2424 = vld [vmem:[#allocation11 + $0x68] sm:$0xff]
    %v2425 = vld [vmem:[#allocation11 + $0x70] sm:$0xff]
    %v2426 = vld [vmem:[#allocation11 + $0x78] sm:$0xff]
    %v2427 = vld [vmem:[#allocation11 + $0x80] sm:$0xff]
    %v2428 = vld [vmem:[#allocation11 + $0x88] sm:$0xff]
    %v2429 = vld [vmem:[#allocation11 + $0x90] sm:$0xff]
    %v2430 = vld [vmem:[#allocation11 + $0x98] sm:$0xff]
    %v2431 = vld [vmem:[#allocation11 + $0xa0] sm:$0xff]
    %v2432 = vld [vmem:[#allocation11 + $0xa8] sm:$0xff]
    %v2433 = vld [vmem:[#allocation11 + $0xb0] sm:$0xff]
    %v2434 = vld [vmem:[#allocation11 + $0xb8] sm:$0xff]
    %v2435 = vld [vmem:[#allocation11 + $0xc0] sm:$0xff]
    %v2436 = vld [vmem:[#allocation11 + $0xc8] sm:$0xff]
    %v2437 = vld [vmem:[#allocation11 + $0xd0] sm:$0xff]
    %v2438 = vld [vmem:[#allocation11 + $0xd8] sm:$0xff]
    %v2439 = vld [vmem:[#allocation11 + $0xe0] sm:$0xff]
    %v2440 = vld [vmem:[#allocation11 + $0xe8] sm:$0xff]
    %v2441 = vld [vmem:[#allocation11 + $0xf0] sm:$0xff]
    %v2442 = vld [vmem:[#allocation11 + $0xf8] sm:$0xff]
    %v2451 = vunpack.c.l.b16 %v2387
    %v2452 = vunpack.c.l.b16 %v2388
    %v2453 = vunpack.c.l.b16 %v2389
    %v2454 = vunpack.c.l.b16 %v2390
    %v2455 = vunpack.c.l.b16 %v2391
    %v2456 = vunpack.c.l.b16 %v2392
    %v2457 = vunpack.c.l.b16 %v2393
    %v2458 = vunpack.c.l.b16 %v2394
    %v2459 = vrot.slane %v2452, 7
    %v2460 = vsel %vm1105, %v2459, %v2451
    %v2461 = vrot.slane %v2453, 6
    %v2462 = vsel %vm1108, %v2461, %v2460
    %v2463 = vrot.slane %v2454, 5
    %v2464 = vsel %vm1111, %v2463, %v2462
    %v2465 = vrot.slane %v2455, 4
    %v2466 = vsel %vm1114, %v2465, %v2464
    %v2467 = vrot.slane %v2456, 3
    %v2468 = vsel %vm1117, %v2467, %v2466
    %v2469 = vrot.slane %v2457, 2
    %v2470 = vsel %vm1120, %v2469, %v2468
    %v2471 = vrot.slane %v2458, 1
    %v2472 = vsel %vm1123, %v2471, %v2470
    %v2473 = vpack.c.b16 %v2472, %v2472
    %v2507 = vunpack.c.l.b16 %v2411
    %v2508 = vunpack.c.h.b16 %v2411
    %v2509 = vunpack.c.l.b16 %v2412
    %v2510 = vunpack.c.h.b16 %v2412
    %v2511 = vunpack.c.l.b16 %v2413
    %v2512 = vunpack.c.h.b16 %v2413
    %v2513 = vunpack.c.l.b16 %v2414
    %v2514 = vunpack.c.h.b16 %v2414
    %v2515 = vunpack.c.l.b16 %v2415
    %v2516 = vunpack.c.h.b16 %v2415
    %v2517 = vunpack.c.l.b16 %v2416
    %v2518 = vunpack.c.h.b16 %v2416
    %v2519 = vunpack.c.l.b16 %v2417
    %v2520 = vunpack.c.h.b16 %v2417
    %v2521 = vunpack.c.l.b16 %v2418
    %v2522 = vunpack.c.h.b16 %v2418
    %v2523 = vunpack.c.l.b16 %v2419
    %v2524 = vunpack.c.h.b16 %v2419
    %v2525 = vunpack.c.l.b16 %v2420
    %v2526 = vunpack.c.h.b16 %v2420
    %v2527 = vunpack.c.l.b16 %v2421
    %v2528 = vunpack.c.h.b16 %v2421
    %v2529 = vunpack.c.l.b16 %v2422
    %v2530 = vunpack.c.h.b16 %v2422
    %v2531 = vunpack.c.l.b16 %v2423
    %v2532 = vunpack.c.h.b16 %v2423
    %v2533 = vunpack.c.l.b16 %v2424
    %v2534 = vunpack.c.h.b16 %v2424
    %v2535 = vunpack.c.l.b16 %v2425
    %v2536 = vunpack.c.h.b16 %v2425
    %v2537 = vunpack.c.l.b16 %v2426
    %v2538 = vunpack.c.h.b16 %v2426
    %v2539 = vunpack.c.l.b16 %v2427
    %v2540 = vunpack.c.h.b16 %v2427
    %v2541 = vunpack.c.l.b16 %v2428
    %v2542 = vunpack.c.h.b16 %v2428
    %v2543 = vunpack.c.l.b16 %v2429
    %v2544 = vunpack.c.h.b16 %v2429
    %v2545 = vunpack.c.l.b16 %v2430
    %v2546 = vunpack.c.h.b16 %v2430
    %v2547 = vunpack.c.l.b16 %v2431
    %v2548 = vunpack.c.h.b16 %v2431
    %v2549 = vunpack.c.l.b16 %v2432
    %v2550 = vunpack.c.h.b16 %v2432
    %v2551 = vunpack.c.l.b16 %v2433
    %v2552 = vunpack.c.h.b16 %v2433
    %v2553 = vunpack.c.l.b16 %v2434
    %v2554 = vunpack.c.h.b16 %v2434
    %v2555 = vunpack.c.l.b16 %v2435
    %v2556 = vunpack.c.h.b16 %v2435
    %v2557 = vunpack.c.l.b16 %v2436
    %v2558 = vunpack.c.h.b16 %v2436
    %v2559 = vunpack.c.l.b16 %v2437
    %v2560 = vunpack.c.h.b16 %v2437
    %v2561 = vunpack.c.l.b16 %v2438
    %v2562 = vunpack.c.h.b16 %v2438
    %v2563 = vunpack.c.l.b16 %v2439
    %v2564 = vunpack.c.h.b16 %v2439
    %v2565 = vunpack.c.l.b16 %v2440
    %v2566 = vunpack.c.h.b16 %v2440
    %v2567 = vunpack.c.l.b16 %v2441
    %v2568 = vunpack.c.h.b16 %v2441
    %v2569 = vunpack.c.l.b16 %v2442
    %v2570 = vunpack.c.h.b16 %v2442
    %v2571 = vpack.c.b16 %v2511, %v2507
    %v2572 = vpack.c.b16 %v2512, %v2508
    %v2573 = vpack.c.b16 %v2513, %v2509
    %v2574 = vpack.c.b16 %v2514, %v2510
    %v2575 = vpack.c.b16 %v2519, %v2515
    %v2576 = vpack.c.b16 %v2520, %v2516
    %v2577 = vpack.c.b16 %v2521, %v2517
    %v2578 = vpack.c.b16 %v2522, %v2518
    %v2579 = vpack.c.b16 %v2527, %v2523
    %v2580 = vpack.c.b16 %v2528, %v2524
    %v2581 = vpack.c.b16 %v2529, %v2525
    %v2582 = vpack.c.b16 %v2530, %v2526
    %v2583 = vpack.c.b16 %v2535, %v2531
    %v2584 = vpack.c.b16 %v2536, %v2532
    %v2585 = vpack.c.b16 %v2537, %v2533
    %v2586 = vpack.c.b16 %v2538, %v2534
    %v2587 = vpack.c.b16 %v2543, %v2539
    %v2588 = vpack.c.b16 %v2544, %v2540
    %v2589 = vpack.c.b16 %v2545, %v2541
    %v2590 = vpack.c.b16 %v2546, %v2542
    %v2591 = vpack.c.b16 %v2551, %v2547
    %v2592 = vpack.c.b16 %v2552, %v2548
    %v2593 = vpack.c.b16 %v2553, %v2549
    %v2594 = vpack.c.b16 %v2554, %v2550
    %v2595 = vpack.c.b16 %v2559, %v2555
    %v2596 = vpack.c.b16 %v2560, %v2556
    %v2597 = vpack.c.b16 %v2561, %v2557
    %v2598 = vpack.c.b16 %v2562, %v2558
    %v2599 = vpack.c.b16 %v2567, %v2563
    %v2600 = vpack.c.b16 %v2568, %v2564
    %v2601 = vpack.c.b16 %v2569, %v2565
    %v2602 = vpack.c.b16 %v2570, %v2566
    %2635 = vmatprep.subr.bf16.mxu0 %v2572
    %2636 = vmatpush1.bf16.msra.mxu0 %v2571
    %2637 = vmatprep.subr.bf16.mxu0 %v2576
    %2638 = vmatpush1.bf16.msra.mxu0 %v2575
    %2639 = vmatprep.subr.bf16.mxu0 %v2580
    %2640 = vmatpush1.bf16.msra.mxu0 %v2579
    %2641 = vmatprep.subr.bf16.mxu0 %v2584
    %2642 = vmatpush1.bf16.msra.mxu0 %v2583
    %2643 = vmatprep.subr.bf16.mxu0 %v2588
    %2644 = vmatpush1.bf16.msra.mxu0 %v2587
    %2645 = vmatprep.subr.bf16.mxu0 %v2592
    %2646 = vmatpush1.bf16.msra.mxu0 %v2591
    %2647 = vmatprep.subr.bf16.mxu0 %v2596
    %2648 = vmatpush1.bf16.msra.mxu0 %v2595
    %2649 = vmatprep.subr.bf16.mxu0 %v2600
    %2650 = vmatpush1.bf16.msra.mxu0 %v2599
    %2651 = vmatprep.subr.bf16.mxu0 0
    %2652 = vmatpush1.bf16.msra.mxu0 0
    %2653 = vmatprep.subr.bf16.mxu0 0
    %2654 = vmatpush1.bf16.msra.mxu0 0
    %2655 = vmatprep.subr.bf16.mxu0 0
    %2656 = vmatpush1.bf16.msra.mxu0 0
    %2657 = vmatprep.subr.bf16.mxu0 0
    %2658 = vmatpush1.bf16.msra.mxu0 0
    %2659 = vmatprep.subr.bf16.mxu0 0
    %2660 = vmatpush1.bf16.msra.mxu0 0
    %2661 = vmatprep.subr.bf16.mxu0 0
    %2662 = vmatpush1.bf16.msra.mxu0 0
    %2663 = vmatprep.subr.bf16.mxu0 0
    %2664 = vmatpush1.bf16.msra.mxu0 0
    %2665 = vmatprep.subr.bf16.mxu0 0
    %2666 = vmatpush1.bf16.msra.mxu0 0
    %2667 = vmatprep.mubr.bf16.mxu0 0
    %2668 = vmatmul.mubr.bf16.gmra.mrb[0].mxu0 %v2473
    %v2669 = vpop.f32.mrb[0].mxu0
    %v2670 = vadd.f32 0.0, %v2669
    %v2671 = vpop.f32.mrb[0].mxu0
    %v2672 = vadd.f32 0.0, %v2671
    %v2673 = vpop.f32.mrb[0].mxu0
    %v2674 = vpop.f32.mrb[0].mxu0
    %2675 = vdwg.mxu0
    %2676 = vmatprep.subr.bf16.mxu0 %v2574
    %2677 = vmatpush1.bf16.msra.mxu0 %v2573
    %2678 = vmatprep.subr.bf16.mxu0 %v2578
    %2679 = vmatpush1.bf16.msra.mxu0 %v2577
    %2680 = vmatprep.subr.bf16.mxu0 %v2582
    %2681 = vmatpush1.bf16.msra.mxu0 %v2581
    %2682 = vmatprep.subr.bf16.mxu0 %v2586
    %2683 = vmatpush1.bf16.msra.mxu0 %v2585
    %2684 = vmatprep.subr.bf16.mxu0 %v2590
    %2685 = vmatpush1.bf16.msra.mxu0 %v2589
    %2686 = vmatprep.subr.bf16.mxu0 %v2594
    %2687 = vmatpush1.bf16.msra.mxu0 %v2593
    %2688 = vmatprep.subr.bf16.mxu0 %v2598
    %2689 = vmatpush1.bf16.msra.mxu0 %v2597
    %2690 = vmatprep.subr.bf16.mxu0 %v2602
    %2691 = vmatpush1.bf16.msra.mxu0 %v2601
    %2692 = vmatprep.subr.bf16.mxu0 0
    %2693 = vmatpush1.bf16.msra.mxu0 0
    %2694 = vmatprep.subr.bf16.mxu0 0
    %2695 = vmatpush1.bf16.msra.mxu0 0
    %2696 = vmatprep.subr.bf16.mxu0 0
    %2697 = vmatpush1.bf16.msra.mxu0 0
    %2698 = vmatprep.subr.bf16.mxu0 0
    %2699 = vmatpush1.bf16.msra.mxu0 0
    %2700 = vmatprep.subr.bf16.mxu0 0
    %2701 = vmatpush1.bf16.msra.mxu0 0
    %2702 = vmatprep.subr.bf16.mxu0 0
    %2703 = vmatpush1.bf16.msra.mxu0 0
    %2704 = vmatprep.subr.bf16.mxu0 0
    %2705 = vmatpush1.bf16.msra.mxu0 0
    %2706 = vmatprep.subr.bf16.mxu0 0
    %2707 = vmatpush1.bf16.msra.mxu0 0
    %2708 = vmatprep.mubr.bf16.mxu0 0
    %2709 = vmatmul.mubr.bf16.gmra.mrb[0].mxu0 %v2473
    %v2710 = vpop.f32.mrb[0].mxu0
    %v2711 = vadd.f32 0.0, %v2710
    %v2712 = vpop.f32.mrb[0].mxu0
    %v2713 = vadd.f32 0.0, %v2712
    %v2714 = vpop.f32.mrb[0].mxu0
    %v2715 = vpop.f32.mrb[0].mxu0
    %2716 = vdwg.mxu0
    %v2721 = vcombine.low %v2670, %v2672
    %v2722 = vcombine.high %v2670, %v2672
    %v2723 = vcombine.low %v2711, %v2713
    %v2724 = vcombine.high %v2711, %v2713
    %v2726 = vunpack.c.l.s4 1966171168
    %v2727 = vunpack.c.0.s8 %v2726
    %v2728 = vlaneseq
    %v2729 = vshrl.u32 %v2728, 7
    %v2730 = vsub.s32 %v2727, %v2729
    %v2731 = vrot.slane %v2721, %v2730
    %v2733 = vunpack.c.l.s4 1966171168
    %v2734 = vunpack.c.0.s8 %v2733
    %v2735 = vlaneseq
    %v2736 = vshrl.u32 %v2735, 7
    %v2737 = vsub.s32 %v2734, %v2736
    %v2738 = vrot.slane %v2722, %v2737
    %v2740 = vunpack.c.l.s4 1966171168
    %v2741 = vunpack.c.0.s8 %v2740
    %v2742 = vlaneseq
    %v2743 = vshrl.u32 %v2742, 7
    %v2744 = vsub.s32 %v2741, %v2743
    %v2745 = vrot.slane %v2723, %v2744
    %v2747 = vunpack.c.l.s4 1966171168
    %v2748 = vunpack.c.0.s8 %v2747
    %v2749 = vlaneseq
    %v2750 = vshrl.u32 %v2749, 7
    %v2751 = vsub.s32 %v2748, %v2750
    %v2752 = vrot.slane %v2724, %v2751
    %v2753 = vcombine.low %v2731, %v2745
    %v2754 = vcombine.high %v2731, %v2745
    %v2755 = vcombine.low %v2738, %v2752
    %v2756 = vcombine.high %v2738, %v2752
    %v2758 = vunpack.c.l.s4 1966171168
    %v2759 = vunpack.c.0.s8 %v2758
    %v2760 = vlaneseq
    %v2761 = vshrl.u32 %v2760, 7
    %v2762 = vsub.s32 %v2759, %v2761
    %v2763 = vrot.slane %v2753, %v2762
    %v2765 = vunpack.c.l.s4 1966171168
    %v2766 = vunpack.c.0.s8 %v2765
    %v2767 = vlaneseq
    %v2768 = vshrl.u32 %v2767, 7
    %v2769 = vsub.s32 %v2766, %v2768
    %v2770 = vrot.slane %v2755, %v2769
    %v2772 = vunpack.c.l.s4 1966171168
    %v2773 = vunpack.c.0.s8 %v2772
    %v2774 = vlaneseq
    %v2775 = vshrl.u32 %v2774, 7
    %v2776 = vsub.s32 %v2773, %v2775
    %v2777 = vrot.slane %v2754, %v2776
    %v2779 = vunpack.c.l.s4 1966171168
    %v2780 = vunpack.c.0.s8 %v2779
    %v2781 = vlaneseq
    %v2782 = vshrl.u32 %v2781, 7
    %v2783 = vsub.s32 %v2780, %v2782
    %v2784 = vrot.slane %v2756, %v2783
    %v2785 = vcombine.high %v2763, %v2763
    %v2786 = vcombine.high %v2770, %v2770
    %v2787 = vcombine.high %v2777, %v2777
    %v2788 = vcombine.high %v2784, %v2784
    %v2797 = vadd.f32 %v2396, %v2763
    %v2798 = vadd.f32 %v2398, %v2777
    %v2799 = vadd.f32 %v2400, %v2785
    %v2800 = vadd.f32 %v2402, %v2787
    %v2801 = vadd.f32 %v2404, %v2770
    %v2802 = vadd.f32 %v2406, %v2784
    %v2803 = vadd.f32 %v2408, %v2786
    %v2804 = vadd.f32 %v2410, %v2788
    %v2805 = vxor.u32 %v2797, 2147483648
    %v2806 = vxor.u32 %v2798, 2147483648
    %v2807 = vxor.u32 %v2799, 2147483648
    %v2808 = vxor.u32 %v2800, 2147483648
    %v2809 = vxor.u32 %v2801, 2147483648
    %v2810 = vxor.u32 %v2802, 2147483648
    %v2811 = vxor.u32 %v2803, 2147483648
    %v2812 = vxor.u32 %v2804, 2147483648
    %v2813 = vmul.f32 %v2805, 1.442695
    %v2814 = vpow.pop %v2813
    %v2815 = vmul.f32 %v2806, 1.442695
    %v2816 = vpow.pop %v2815
    %v2817 = vmul.f32 %v2807, 1.442695
    %v2818 = vpow.pop %v2817
    %v2819 = vmul.f32 %v2808, 1.442695
    %v2820 = vpow.pop %v2819
    %v2821 = vmul.f32 %v2809, 1.442695
    %v2822 = vpow.pop %v2821
    %v2823 = vmul.f32 %v2810, 1.442695
    %v2824 = vpow.pop %v2823
    %v2825 = vmul.f32 %v2811, 1.442695
    %v2826 = vpow.pop %v2825
    %v2827 = vmul.f32 %v2812, 1.442695
    %v2828 = vpow.pop %v2827
    %v2829 = vadd.f32 %v2814, 1.0
    %v2830 = vadd.f32 %v2816, 1.0
    %v2831 = vadd.f32 %v2818, 1.0
    %v2832 = vadd.f32 %v2820, 1.0
    %v2833 = vadd.f32 %v2822, 1.0
    %v2834 = vadd.f32 %v2824, 1.0
    %v2835 = vadd.f32 %v2826, 1.0
    %v2836 = vadd.f32 %v2828, 1.0
    %v2837 = vrcp.pop %v2829
    %v2838 = vmul.f32 1.0, %v2837
    %v2839 = vrcp.pop %v2830
    %v2840 = vmul.f32 1.0, %v2839
    %v2841 = vrcp.pop %v2831
    %v2842 = vmul.f32 1.0, %v2841
    %v2843 = vrcp.pop %v2832
    %v2844 = vmul.f32 1.0, %v2843
    %v2845 = vrcp.pop %v2833
    %v2846 = vmul.f32 1.0, %v2845
    %v2847 = vrcp.pop %v2834
    %v2848 = vmul.f32 1.0, %v2847
    %v2849 = vrcp.pop %v2835
    %v2850 = vmul.f32 1.0, %v2849
    %v2851 = vrcp.pop %v2836
    %v2852 = vmul.f32 1.0, %v2851
    %v2861 = vrot.slane %v2797, 1
    %v2862 = vrot.slane %v2798, 1
    %v2863 = vrot.slane %v2799, 1
    %v2864 = vrot.slane %v2800, 1
    %v2865 = vrot.slane %v2801, 1
    %v2866 = vrot.slane %v2802, 1
    %v2867 = vrot.slane %v2803, 1
    %v2868 = vrot.slane %v2804, 1
    %v2877 = vxor.u32 %v2861, 2147483648
    %v2878 = vxor.u32 %v2862, 2147483648
    %v2879 = vxor.u32 %v2863, 2147483648
    %v2880 = vxor.u32 %v2864, 2147483648
    %v2881 = vxor.u32 %v2865, 2147483648
    %v2882 = vxor.u32 %v2866, 2147483648
    %v2883 = vxor.u32 %v2867, 2147483648
    %v2884 = vxor.u32 %v2868, 2147483648
    %v2885 = vmul.f32 %v2877, 1.442695
    %v2886 = vpow.pop %v2885
    %v2887 = vmul.f32 %v2878, 1.442695
    %v2888 = vpow.pop %v2887
    %v2889 = vmul.f32 %v2879, 1.442695
    %v2890 = vpow.pop %v2889
    %v2891 = vmul.f32 %v2880, 1.442695
    %v2892 = vpow.pop %v2891
    %v2893 = vmul.f32 %v2881, 1.442695
    %v2894 = vpow.pop %v2893
    %v2895 = vmul.f32 %v2882, 1.442695
    %v2896 = vpow.pop %v2895
    %v2897 = vmul.f32 %v2883, 1.442695
    %v2898 = vpow.pop %v2897
    %v2899 = vmul.f32 %v2884, 1.442695
    %v2900 = vpow.pop %v2899
    %v2901 = vadd.f32 %v2886, 1.0
    %v2902 = vadd.f32 %v2888, 1.0
    %v2903 = vadd.f32 %v2890, 1.0
    %v2904 = vadd.f32 %v2892, 1.0
    %v2905 = vadd.f32 %v2894, 1.0
    %v2906 = vadd.f32 %v2896, 1.0
    %v2907 = vadd.f32 %v2898, 1.0
    %v2908 = vadd.f32 %v2900, 1.0
    %v2909 = vrcp.pop %v2901
    %v2910 = vmul.f32 1.0, %v2909
    %v2911 = vrcp.pop %v2902
    %v2912 = vmul.f32 1.0, %v2911
    %v2913 = vrcp.pop %v2903
    %v2914 = vmul.f32 1.0, %v2913
    %v2915 = vrcp.pop %v2904
    %v2916 = vmul.f32 1.0, %v2915
    %v2917 = vrcp.pop %v2905
    %v2918 = vmul.f32 1.0, %v2917
    %v2919 = vrcp.pop %v2906
    %v2920 = vmul.f32 1.0, %v2919
    %v2921 = vrcp.pop %v2907
    %v2922 = vmul.f32 1.0, %v2921
    %v2923 = vrcp.pop %v2908
    %v2924 = vmul.f32 1.0, %v2923
    %v2925 = vrot.slane %v2797, 2
    %v2926 = vrot.slane %v2798, 2
    %v2927 = vrot.slane %v2799, 2
    %v2928 = vrot.slane %v2800, 2
    %v2929 = vrot.slane %v2801, 2
    %v2930 = vrot.slane %v2802, 2
    %v2931 = vrot.slane %v2803, 2
    %v2932 = vrot.slane %v2804, 2
    %v2941 = vtanh.pop %v2925
    %v2942 = vtanh.pop %v2926
    %v2943 = vtanh.pop %v2927
    %v2944 = vtanh.pop %v2928
    %v2945 = vtanh.pop %v2929
    %v2946 = vtanh.pop %v2930
    %v2947 = vtanh.pop %v2931
    %v2948 = vtanh.pop %v2932
    %v2949 = vrot.slane %v2797, 3
    %v2950 = vrot.slane %v2798, 3
    %v2951 = vrot.slane %v2799, 3
    %v2952 = vrot.slane %v2800, 3
    %v2953 = vrot.slane %v2801, 3
    %v2954 = vrot.slane %v2802, 3
    %v2955 = vrot.slane %v2803, 3
    %v2956 = vrot.slane %v2804, 3
    %v2965 = vxor.u32 %v2949, 2147483648
    %v2966 = vxor.u32 %v2950, 2147483648
    %v2967 = vxor.u32 %v2951, 2147483648
    %v2968 = vxor.u32 %v2952, 2147483648
    %v2969 = vxor.u32 %v2953, 2147483648
    %v2970 = vxor.u32 %v2954, 2147483648
    %v2971 = vxor.u32 %v2955, 2147483648
    %v2972 = vxor.u32 %v2956, 2147483648
    %v2973 = vmul.f32 %v2965, 1.442695
    %v2974 = vpow.pop %v2973
    %v2975 = vmul.f32 %v2966, 1.442695
    %v2976 = vpow.pop %v2975
    %v2977 = vmul.f32 %v2967, 1.442695
    %v2978 = vpow.pop %v2977
    %v2979 = vmul.f32 %v2968, 1.442695
    %v2980 = vpow.pop %v2979
    %v2981 = vmul.f32 %v2969, 1.442695
    %v2982 = vpow.pop %v2981
    %v2983 = vmul.f32 %v2970, 1.442695
    %v2984 = vpow.pop %v2983
    %v2985 = vmul.f32 %v2971, 1.442695
    %v2986 = vpow.pop %v2985
    %v2987 = vmul.f32 %v2972, 1.442695
    %v2988 = vpow.pop %v2987
    %v2989 = vadd.f32 %v2974, 1.0
    %v2990 = vadd.f32 %v2976, 1.0
    %v2991 = vadd.f32 %v2978, 1.0
    %v2992 = vadd.f32 %v2980, 1.0
    %v2993 = vadd.f32 %v2982, 1.0
    %v2994 = vadd.f32 %v2984, 1.0
    %v2995 = vadd.f32 %v2986, 1.0
    %v2996 = vadd.f32 %v2988, 1.0
    %v2997 = vrcp.pop %v2989
    %v2998 = vmul.f32 1.0, %v2997
    %v2999 = vrcp.pop %v2990
    %v3000 = vmul.f32 1.0, %v2999
    %v3001 = vrcp.pop %v2991
    %v3002 = vmul.f32 1.0, %v3001
    %v3003 = vrcp.pop %v2992
    %v3004 = vmul.f32 1.0, %v3003
    %v3005 = vrcp.pop %v2993
    %v3006 = vmul.f32 1.0, %v3005
    %v3007 = vrcp.pop %v2994
    %v3008 = vmul.f32 1.0, %v3007
    %v3009 = vrcp.pop %v2995
    %v3010 = vmul.f32 1.0, %v3009
    %v3011 = vrcp.pop %v2996
    %v3012 = vmul.f32 1.0, %v3011
    %v3013 = vmul.f32 %v2910, %v2355
    %v3014 = vmul.f32 %v2912, %v2356
    %v3015 = vmul.f32 %v2914, %v2357
    %v3016 = vmul.f32 %v2916, %v2358
    %v3017 = vmul.f32 %v2918, %v2359
    %v3018 = vmul.f32 %v2920, %v2360
    %v3019 = vmul.f32 %v2922, %v2361
    %v3020 = vmul.f32 %v2924, %v2362
    %v3021 = vmul.f32 %v2838, %v2941
    %v3022 = vmul.f32 %v2840, %v2942
    %v3023 = vmul.f32 %v2842, %v2943
    %v3024 = vmul.f32 %v2844, %v2944
    %v3025 = vmul.f32 %v2846, %v2945
    %v3026 = vmul.f32 %v2848, %v2946
    %v3027 = vmul.f32 %v2850, %v2947
    %v3028 = vmul.f32 %v2852, %v2948
    %v3029 = vadd.f32 %v3013, %v3021
    %v3030 = vadd.f32 %v3014, %v3022
    %v3031 = vadd.f32 %v3015, %v3023
    %v3032 = vadd.f32 %v3016, %v3024
    %v3033 = vadd.f32 %v3017, %v3025
    %v3034 = vadd.f32 %v3018, %v3026
    %v3035 = vadd.f32 %v3019, %v3027
    %v3036 = vadd.f32 %v3020, %v3028
    %v3037 = vtanh.pop %v3029
    %v3038 = vtanh.pop %v3030
    %v3039 = vtanh.pop %v3031
    %v3040 = vtanh.pop %v3032
    %v3041 = vtanh.pop %v3033
    %v3042 = vtanh.pop %v3034
    %v3043 = vtanh.pop %v3035
    %v3044 = vtanh.pop %v3036
    %v3045 = vmul.f32 %v2998, %v3037
    %v3046 = vmul.f32 %v3000, %v3038
    %v3047 = vmul.f32 %v3002, %v3039
    %v3048 = vmul.f32 %v3004, %v3040
    %v3049 = vmul.f32 %v3006, %v3041
    %v3050 = vmul.f32 %v3008, %v3042
    %v3051 = vmul.f32 %v3010, %v3043
    %v3052 = vmul.f32 %v3012, %v3044
    %3053 = vst [vmem:[#allocation5 + $0x3] sm:$0x1] %v3045
    %3054 = vst [vmem:[#allocation5 + $0xb] sm:$0x1] %v3046
    %3055 = vst [vmem:[#allocation5 + $0x13] sm:$0x1] %v3047
    %3056 = vst [vmem:[#allocation5 + $0x1b] sm:$0x1] %v3048
    %3057 = vst [vmem:[#allocation5 + $0x23] sm:$0x1] %v3049
    %3058 = vst [vmem:[#allocation5 + $0x2b] sm:$0x1] %v3050
    %3059 = vst [vmem:[#allocation5 + $0x33] sm:$0x1] %v3051
    %3060 = vst [vmem:[#allocation5 + $0x3b] sm:$0x1] %v3052
    %v3061 = vpack.c.bf16 %v3045, %v3045
    %v3062 = vpack.c.bf16 %v3046, %v3046
    %v3063 = vpack.c.bf16 %v3047, %v3047
    %v3064 = vpack.c.bf16 %v3048, %v3048
    %v3065 = vpack.c.bf16 %v3049, %v3049
    %v3066 = vpack.c.bf16 %v3050, %v3050
    %v3067 = vpack.c.bf16 %v3051, %v3051
    %v3068 = vpack.c.bf16 %v3052, %v3052
    %s3069 = scalar_lea.vmem [#allocation4], 4
    %v3070 = vld [vmem:[%s3069] ss:$8 sm:$0xf]
    %s3071 = scalar_lea.vmem [#allocation4], 36
    %v3072 = vld [vmem:[%s3071] ss:$8 sm:$0xf]
    %s3073 = scalar_lea.vmem [#allocation4], 68
    %v3074 = vld [vmem:[%s3073] ss:$8 sm:$0xf]
    %s3075 = scalar_lea.vmem [#allocation4], 100
    %v3076 = vld [vmem:[%s3075] ss:$8 sm:$0xf]
    %s3077 = scalar_lea.vmem [#allocation4], 132
    %v3078 = vld [vmem:[%s3077] ss:$8 sm:$0xf]
    %s3079 = scalar_lea.vmem [#allocation4], 164
    %v3080 = vld [vmem:[%s3079] ss:$8 sm:$0xf]
    %s3081 = scalar_lea.vmem [#allocation4], 196
    %v3082 = vld [vmem:[%s3081] ss:$8 sm:$0xf]
    %s3083 = scalar_lea.vmem [#allocation4], 228
    %v3084 = vld [vmem:[%s3083] ss:$8 sm:$0xf]
    %v3085 = vld [vmem:[#allocation11] sm:$0xff]
    %v3086 = vld [vmem:[#allocation11 + $0x8] sm:$0xff]
    %v3087 = vld [vmem:[#allocation11 + $0x10] sm:$0xff]
    %v3088 = vld [vmem:[#allocation11 + $0x18] sm:$0xff]
    %v3089 = vld [vmem:[#allocation11 + $0x20] sm:$0xff]
    %v3090 = vld [vmem:[#allocation11 + $0x28] sm:$0xff]
    %v3091 = vld [vmem:[#allocation11 + $0x30] sm:$0xff]
    %v3092 = vld [vmem:[#allocation11 + $0x38] sm:$0xff]
    %v3093 = vld [vmem:[#allocation11 + $0x40] sm:$0xff]
    %v3094 = vld [vmem:[#allocation11 + $0x48] sm:$0xff]
    %v3095 = vld [vmem:[#allocation11 + $0x50] sm:$0xff]
    %v3096 = vld [vmem:[#allocation11 + $0x58] sm:$0xff]
    %v3097 = vld [vmem:[#allocation11 + $0x60] sm:$0xff]
    %v3098 = vld [vmem:[#allocation11 + $0x68] sm:$0xff]
    %v3099 = vld [vmem:[#allocation11 + $0x70] sm:$0xff]
    %v3100 = vld [vmem:[#allocation11 + $0x78] sm:$0xff]
    %v3101 = vld [vmem:[#allocation11 + $0x80] sm:$0xff]
    %v3102 = vld [vmem:[#allocation11 + $0x88] sm:$0xff]
    %v3103 = vld [vmem:[#allocation11 + $0x90] sm:$0xff]
    %v3104 = vld [vmem:[#allocation11 + $0x98] sm:$0xff]
    %v3105 = vld [vmem:[#allocation11 + $0xa0] sm:$0xff]
    %v3106 = vld [vmem:[#allocation11 + $0xa8] sm:$0xff]
    %v3107 = vld [vmem:[#allocation11 + $0xb0] sm:$0xff]
    %v3108 = vld [vmem:[#allocation11 + $0xb8] sm:$0xff]
    %v3109 = vld [vmem:[#allocation11 + $0xc0] sm:$0xff]
    %v3110 = vld [vmem:[#allocation11 + $0xc8] sm:$0xff]
    %v3111 = vld [vmem:[#allocation11 + $0xd0] sm:$0xff]
    %v3112 = vld [vmem:[#allocation11 + $0xd8] sm:$0xff]
    %v3113 = vld [vmem:[#allocation11 + $0xe0] sm:$0xff]
    %v3114 = vld [vmem:[#allocation11 + $0xe8] sm:$0xff]
    %v3115 = vld [vmem:[#allocation11 + $0xf0] sm:$0xff]
    %v3116 = vld [vmem:[#allocation11 + $0xf8] sm:$0xff]
    %v3125 = vunpack.c.l.b16 %v3061
    %v3126 = vunpack.c.l.b16 %v3062
    %v3127 = vunpack.c.l.b16 %v3063
    %v3128 = vunpack.c.l.b16 %v3064
    %v3129 = vunpack.c.l.b16 %v3065
    %v3130 = vunpack.c.l.b16 %v3066
    %v3131 = vunpack.c.l.b16 %v3067
    %v3132 = vunpack.c.l.b16 %v3068
    %v3133 = vrot.slane %v3126, 7
    %v3134 = vsel %vm1105, %v3133, %v3125
    %v3135 = vrot.slane %v3127, 6
    %v3136 = vsel %vm1108, %v3135, %v3134
    %v3137 = vrot.slane %v3128, 5
    %v3138 = vsel %vm1111, %v3137, %v3136
    %v3139 = vrot.slane %v3129, 4
    %v3140 = vsel %vm1114, %v3139, %v3138
    %v3141 = vrot.slane %v3130, 3
    %v3142 = vsel %vm1117, %v3141, %v3140
    %v3143 = vrot.slane %v3131, 2
    %v3144 = vsel %vm1120, %v3143, %v3142
    %v3145 = vrot.slane %v3132, 1
    %v3146 = vsel %vm1123, %v3145, %v3144
    %v3147 = vpack.c.b16 %v3146, %v3146
    %v3181 = vunpack.c.l.b16 %v3085
    %v3182 = vunpack.c.h.b16 %v3085
    %v3183 = vunpack.c.l.b16 %v3086
    %v3184 = vunpack.c.h.b16 %v3086
    %v3185 = vunpack.c.l.b16 %v3087
    %v3186 = vunpack.c.h.b16 %v3087
    %v3187 = vunpack.c.l.b16 %v3088
    %v3188 = vunpack.c.h.b16 %v3088
    %v3189 = vunpack.c.l.b16 %v3089
    %v3190 = vunpack.c.h.b16 %v3089
    %v3191 = vunpack.c.l.b16 %v3090
    %v3192 = vunpack.c.h.b16 %v3090
    %v3193 = vunpack.c.l.b16 %v3091
    %v3194 = vunpack.c.h.b16 %v3091
    %v3195 = vunpack.c.l.b16 %v3092
    %v3196 = vunpack.c.h.b16 %v3092
    %v3197 = vunpack.c.l.b16 %v3093
    %v3198 = vunpack.c.h.b16 %v3093
    %v3199 = vunpack.c.l.b16 %v3094
    %v3200 = vunpack.c.h.b16 %v3094
    %v3201 = vunpack.c.l.b16 %v3095
    %v3202 = vunpack.c.h.b16 %v3095
    %v3203 = vunpack.c.l.b16 %v3096
    %v3204 = vunpack.c.h.b16 %v3096
    %v3205 = vunpack.c.l.b16 %v3097
    %v3206 = vunpack.c.h.b16 %v3097
    %v3207 = vunpack.c.l.b16 %v3098
    %v3208 = vunpack.c.h.b16 %v3098
    %v3209 = vunpack.c.l.b16 %v3099
    %v3210 = vunpack.c.h.b16 %v3099
    %v3211 = vunpack.c.l.b16 %v3100
    %v3212 = vunpack.c.h.b16 %v3100
    %v3213 = vunpack.c.l.b16 %v3101
    %v3214 = vunpack.c.h.b16 %v3101
    %v3215 = vunpack.c.l.b16 %v3102
    %v3216 = vunpack.c.h.b16 %v3102
    %v3217 = vunpack.c.l.b16 %v3103
    %v3218 = vunpack.c.h.b16 %v3103
    %v3219 = vunpack.c.l.b16 %v3104
    %v3220 = vunpack.c.h.b16 %v3104
    %v3221 = vunpack.c.l.b16 %v3105
    %v3222 = vunpack.c.h.b16 %v3105
    %v3223 = vunpack.c.l.b16 %v3106
    %v3224 = vunpack.c.h.b16 %v3106
    %v3225 = vunpack.c.l.b16 %v3107
    %v3226 = vunpack.c.h.b16 %v3107
    %v3227 = vunpack.c.l.b16 %v3108
    %v3228 = vunpack.c.h.b16 %v3108
    %v3229 = vunpack.c.l.b16 %v3109
    %v3230 = vunpack.c.h.b16 %v3109
    %v3231 = vunpack.c.l.b16 %v3110
    %v3232 = vunpack.c.h.b16 %v3110
    %v3233 = vunpack.c.l.b16 %v3111
    %v3234 = vunpack.c.h.b16 %v3111
    %v3235 = vunpack.c.l.b16 %v3112
    %v3236 = vunpack.c.h.b16 %v3112
    %v3237 = vunpack.c.l.b16 %v3113
    %v3238 = vunpack.c.h.b16 %v3113
    %v3239 = vunpack.c.l.b16 %v3114
    %v3240 = vunpack.c.h.b16 %v3114
    %v3241 = vunpack.c.l.b16 %v3115
    %v3242 = vunpack.c.h.b16 %v3115
    %v3243 = vunpack.c.l.b16 %v3116
    %v3244 = vunpack.c.h.b16 %v3116
    %v3245 = vpack.c.b16 %v3185, %v3181
    %v3246 = vpack.c.b16 %v3186, %v3182
    %v3247 = vpack.c.b16 %v3187, %v3183
    %v3248 = vpack.c.b16 %v3188, %v3184
    %v3249 = vpack.c.b16 %v3193, %v3189
    %v3250 = vpack.c.b16 %v3194, %v3190
    %v3251 = vpack.c.b16 %v3195, %v3191
    %v3252 = vpack.c.b16 %v3196, %v3192
    %v3253 = vpack.c.b16 %v3201, %v3197
    %v3254 = vpack.c.b16 %v3202, %v3198
    %v3255 = vpack.c.b16 %v3203, %v3199
    %v3256 = vpack.c.b16 %v3204, %v3200
    %v3257 = vpack.c.b16 %v3209, %v3205
    %v3258 = vpack.c.b16 %v3210, %v3206
    %v3259 = vpack.c.b16 %v3211, %v3207
    %v3260 = vpack.c.b16 %v3212, %v3208
    %v3261 = vpack.c.b16 %v3217, %v3213
    %v3262 = vpack.c.b16 %v3218, %v3214
    %v3263 = vpack.c.b16 %v3219, %v3215
    %v3264 = vpack.c.b16 %v3220, %v3216
    %v3265 = vpack.c.b16 %v3225, %v3221
    %v3266 = vpack.c.b16 %v3226, %v3222
    %v3267 = vpack.c.b16 %v3227, %v3223
    %v3268 = vpack.c.b16 %v3228, %v3224
    %v3269 = vpack.c.b16 %v3233, %v3229
    %v3270 = vpack.c.b16 %v3234, %v3230
    %v3271 = vpack.c.b16 %v3235, %v3231
    %v3272 = vpack.c.b16 %v3236, %v3232
    %v3273 = vpack.c.b16 %v3241, %v3237
    %v3274 = vpack.c.b16 %v3242, %v3238
    %v3275 = vpack.c.b16 %v3243, %v3239
    %v3276 = vpack.c.b16 %v3244, %v3240
    %3309 = vmatprep.subr.bf16.mxu0 %v3246
    %3310 = vmatpush1.bf16.msra.mxu0 %v3245
    %3311 = vmatprep.subr.bf16.mxu0 %v3250
    %3312 = vmatpush1.bf16.msra.mxu0 %v3249
    %3313 = vmatprep.subr.bf16.mxu0 %v3254
    %3314 = vmatpush1.bf16.msra.mxu0 %v3253
    %3315 = vmatprep.subr.bf16.mxu0 %v3258
    %3316 = vmatpush1.bf16.msra.mxu0 %v3257
    %3317 = vmatprep.subr.bf16.mxu0 %v3262
    %3318 = vmatpush1.bf16.msra.mxu0 %v3261
    %3319 = vmatprep.subr.bf16.mxu0 %v3266
    %3320 = vmatpush1.bf16.msra.mxu0 %v3265
    %3321 = vmatprep.subr.bf16.mxu0 %v3270
    %3322 = vmatpush1.bf16.msra.mxu0 %v3269
    %3323 = vmatprep.subr.bf16.mxu0 %v3274
    %3324 = vmatpush1.bf16.msra.mxu0 %v3273
    %3325 = vmatprep.subr.bf16.mxu0 0
    %3326 = vmatpush1.bf16.msra.mxu0 0
    %3327 = vmatprep.subr.bf16.mxu0 0
    %3328 = vmatpush1.bf16.msra.mxu0 0
    %3329 = vmatprep.subr.bf16.mxu0 0
    %3330 = vmatpush1.bf16.msra.mxu0 0
    %3331 = vmatprep.subr.bf16.mxu0 0
    %3332 = vmatpush1.bf16.msra.mxu0 0
    %3333 = vmatprep.subr.bf16.mxu0 0
    %3334 = vmatpush1.bf16.msra.mxu0 0
    %3335 = vmatprep.subr.bf16.mxu0 0
    %3336 = vmatpush1.bf16.msra.mxu0 0
    %3337 = vmatprep.subr.bf16.mxu0 0
    %3338 = vmatpush1.bf16.msra.mxu0 0
    %3339 = vmatprep.subr.bf16.mxu0 0
    %3340 = vmatpush1.bf16.msra.mxu0 0
    %3341 = vmatprep.mubr.bf16.mxu0 0
    %3342 = vmatmul.mubr.bf16.gmra.mrb[0].mxu0 %v3147
    %v3343 = vpop.f32.mrb[0].mxu0
    %v3344 = vadd.f32 0.0, %v3343
    %v3345 = vpop.f32.mrb[0].mxu0
    %v3346 = vadd.f32 0.0, %v3345
    %v3347 = vpop.f32.mrb[0].mxu0
    %v3348 = vpop.f32.mrb[0].mxu0
    %3349 = vdwg.mxu0
    %3350 = vmatprep.subr.bf16.mxu0 %v3248
    %3351 = vmatpush1.bf16.msra.mxu0 %v3247
    %3352 = vmatprep.subr.bf16.mxu0 %v3252
    %3353 = vmatpush1.bf16.msra.mxu0 %v3251
    %3354 = vmatprep.subr.bf16.mxu0 %v3256
    %3355 = vmatpush1.bf16.msra.mxu0 %v3255
    %3356 = vmatprep.subr.bf16.mxu0 %v3260
    %3357 = vmatpush1.bf16.msra.mxu0 %v3259
    %3358 = vmatprep.subr.bf16.mxu0 %v3264
    %3359 = vmatpush1.bf16.msra.mxu0 %v3263
    %3360 = vmatprep.subr.bf16.mxu0 %v3268
    %3361 = vmatpush1.bf16.msra.mxu0 %v3267
    %3362 = vmatprep.subr.bf16.mxu0 %v3272
    %3363 = vmatpush1.bf16.msra.mxu0 %v3271
    %3364 = vmatprep.subr.bf16.mxu0 %v3276
    %3365 = vmatpush1.bf16.msra.mxu0 %v3275
    %3366 = vmatprep.subr.bf16.mxu0 0
    %3367 = vmatpush1.bf16.msra.mxu0 0
    %3368 = vmatprep.subr.bf16.mxu0 0
    %3369 = vmatpush1.bf16.msra.mxu0 0
    %3370 = vmatprep.subr.bf16.mxu0 0
    %3371 = vmatpush1.bf16.msra.mxu0 0
    %3372 = vmatprep.subr.bf16.mxu0 0
    %3373 = vmatpush1.bf16.msra.mxu0 0
    %3374 = vmatprep.subr.bf16.mxu0 0
    %3375 = vmatpush1.bf16.msra.mxu0 0
    %3376 = vmatprep.subr.bf16.mxu0 0
    %3377 = vmatpush1.bf16.msra.mxu0 0
    %3378 = vmatprep.subr.bf16.mxu0 0
    %3379 = vmatpush1.bf16.msra.mxu0 0
    %3380 = vmatprep.subr.bf16.mxu0 0
    %3381 = vmatpush1.bf16.msra.mxu0 0
    %3382 = vmatprep.mubr.bf16.mxu0 0
    %3383 = vmatmul.mubr.bf16.gmra.mrb[0].mxu0 %v3147
    %v3384 = vpop.f32.mrb[0].mxu0
    %v3385 = vadd.f32 0.0, %v3384
    %v3386 = vpop.f32.mrb[0].mxu0
    %v3387 = vadd.f32 0.0, %v3386
    %v3388 = vpop.f32.mrb[0].mxu0
    %v3389 = vpop.f32.mrb[0].mxu0
    %3390 = vdwg.mxu0
    %v3395 = vcombine.low %v3344, %v3346
    %v3396 = vcombine.high %v3344, %v3346
    %v3397 = vcombine.low %v3385, %v3387
    %v3398 = vcombine.high %v3385, %v3387
    %v3400 = vunpack.c.l.s4 1966171168
    %v3401 = vunpack.c.0.s8 %v3400
    %v3402 = vlaneseq
    %v3403 = vshrl.u32 %v3402, 7
    %v3404 = vsub.s32 %v3401, %v3403
    %v3405 = vrot.slane %v3395, %v3404
    %v3407 = vunpack.c.l.s4 1966171168
    %v3408 = vunpack.c.0.s8 %v3407
    %v3409 = vlaneseq
    %v3410 = vshrl.u32 %v3409, 7
    %v3411 = vsub.s32 %v3408, %v3410
    %v3412 = vrot.slane %v3396, %v3411
    %v3414 = vunpack.c.l.s4 1966171168
    %v3415 = vunpack.c.0.s8 %v3414
    %v3416 = vlaneseq
    %v3417 = vshrl.u32 %v3416, 7
    %v3418 = vsub.s32 %v3415, %v3417
    %v3419 = vrot.slane %v3397, %v3418
    %v3421 = vunpack.c.l.s4 1966171168
    %v3422 = vunpack.c.0.s8 %v3421
    %v3423 = vlaneseq
    %v3424 = vshrl.u32 %v3423, 7
    %v3425 = vsub.s32 %v3422, %v3424
    %v3426 = vrot.slane %v3398, %v3425
    %v3427 = vcombine.low %v3405, %v3419
    %v3428 = vcombine.high %v3405, %v3419
    %v3429 = vcombine.low %v3412, %v3426
    %v3430 = vcombine.high %v3412, %v3426
    %v3432 = vunpack.c.l.s4 1966171168
    %v3433 = vunpack.c.0.s8 %v3432
    %v3434 = vlaneseq
    %v3435 = vshrl.u32 %v3434, 7
    %v3436 = vsub.s32 %v3433, %v3435
    %v3437 = vrot.slane %v3427, %v3436
    %v3439 = vunpack.c.l.s4 1966171168
    %v3440 = vunpack.c.0.s8 %v3439
    %v3441 = vlaneseq
    %v3442 = vshrl.u32 %v3441, 7
    %v3443 = vsub.s32 %v3440, %v3442
    %v3444 = vrot.slane %v3429, %v3443
    %v3446 = vunpack.c.l.s4 1966171168
    %v3447 = vunpack.c.0.s8 %v3446
    %v3448 = vlaneseq
    %v3449 = vshrl.u32 %v3448, 7
    %v3450 = vsub.s32 %v3447, %v3449
    %v3451 = vrot.slane %v3428, %v3450
    %v3453 = vunpack.c.l.s4 1966171168
    %v3454 = vunpack.c.0.s8 %v3453
    %v3455 = vlaneseq
    %v3456 = vshrl.u32 %v3455, 7
    %v3457 = vsub.s32 %v3454, %v3456
    %v3458 = vrot.slane %v3430, %v3457
    %v3459 = vcombine.high %v3437, %v3437
    %v3460 = vcombine.high %v3444, %v3444
    %v3461 = vcombine.high %v3451, %v3451
    %v3462 = vcombine.high %v3458, %v3458
    %v3471 = vadd.f32 %v3070, %v3437
    %v3472 = vadd.f32 %v3072, %v3451
    %v3473 = vadd.f32 %v3074, %v3459
    %v3474 = vadd.f32 %v3076, %v3461
    %v3475 = vadd.f32 %v3078, %v3444
    %v3476 = vadd.f32 %v3080, %v3458
    %v3477 = vadd.f32 %v3082, %v3460
    %v3478 = vadd.f32 %v3084, %v3462
    %v3479 = vxor.u32 %v3471, 2147483648
    %v3480 = vxor.u32 %v3472, 2147483648
    %v3481 = vxor.u32 %v3473, 2147483648
    %v3482 = vxor.u32 %v3474, 2147483648
    %v3483 = vxor.u32 %v3475, 2147483648
    %v3484 = vxor.u32 %v3476, 2147483648
    %v3485 = vxor.u32 %v3477, 2147483648
    %v3486 = vxor.u32 %v3478, 2147483648
    %v3487 = vmul.f32 %v3479, 1.442695
    %v3488 = vpow.pop %v3487
    %v3489 = vmul.f32 %v3480, 1.442695
    %v3490 = vpow.pop %v3489
    %v3491 = vmul.f32 %v3481, 1.442695
    %v3492 = vpow.pop %v3491
    %v3493 = vmul.f32 %v3482, 1.442695
    %v3494 = vpow.pop %v3493
    %v3495 = vmul.f32 %v3483, 1.442695
    %v3496 = vpow.pop %v3495
    %v3497 = vmul.f32 %v3484, 1.442695
    %v3498 = vpow.pop %v3497
    %v3499 = vmul.f32 %v3485, 1.442695
    %v3500 = vpow.pop %v3499
    %v3501 = vmul.f32 %v3486, 1.442695
    %v3502 = vpow.pop %v3501
    %v3503 = vadd.f32 %v3488, 1.0
    %v3504 = vadd.f32 %v3490, 1.0
    %v3505 = vadd.f32 %v3492, 1.0
    %v3506 = vadd.f32 %v3494, 1.0
    %v3507 = vadd.f32 %v3496, 1.0
    %v3508 = vadd.f32 %v3498, 1.0
    %v3509 = vadd.f32 %v3500, 1.0
    %v3510 = vadd.f32 %v3502, 1.0
    %v3511 = vrcp.pop %v3503
    %v3512 = vmul.f32 1.0, %v3511
    %v3513 = vrcp.pop %v3504
    %v3514 = vmul.f32 1.0, %v3513
    %v3515 = vrcp.pop %v3505
    %v3516 = vmul.f32 1.0, %v3515
    %v3517 = vrcp.pop %v3506
    %v3518 = vmul.f32 1.0, %v3517
    %v3519 = vrcp.pop %v3507
    %v3520 = vmul.f32 1.0, %v3519
    %v3521 = vrcp.pop %v3508
    %v3522 = vmul.f32 1.0, %v3521
    %v3523 = vrcp.pop %v3509
    %v3524 = vmul.f32 1.0, %v3523
    %v3525 = vrcp.pop %v3510
    %v3526 = vmul.f32 1.0, %v3525
    %v3535 = vrot.slane %v3471, 1
    %v3536 = vrot.slane %v3472, 1
    %v3537 = vrot.slane %v3473, 1
    %v3538 = vrot.slane %v3474, 1
    %v3539 = vrot.slane %v3475, 1
    %v3540 = vrot.slane %v3476, 1
    %v3541 = vrot.slane %v3477, 1
    %v3542 = vrot.slane %v3478, 1
    %v3551 = vxor.u32 %v3535, 2147483648
    %v3552 = vxor.u32 %v3536, 2147483648
    %v3553 = vxor.u32 %v3537, 2147483648
    %v3554 = vxor.u32 %v3538, 2147483648
    %v3555 = vxor.u32 %v3539, 2147483648
    %v3556 = vxor.u32 %v3540, 2147483648
    %v3557 = vxor.u32 %v3541, 2147483648
    %v3558 = vxor.u32 %v3542, 2147483648
    %v3559 = vmul.f32 %v3551, 1.442695
    %v3560 = vpow.pop %v3559
    %v3561 = vmul.f32 %v3552, 1.442695
    %v3562 = vpow.pop %v3561
    %v3563 = vmul.f32 %v3553, 1.442695
    %v3564 = vpow.pop %v3563
    %v3565 = vmul.f32 %v3554, 1.442695
    %v3566 = vpow.pop %v3565
    %v3567 = vmul.f32 %v3555, 1.442695
    %v3568 = vpow.pop %v3567
    %v3569 = vmul.f32 %v3556, 1.442695
    %v3570 = vpow.pop %v3569
    %v3571 = vmul.f32 %v3557, 1.442695
    %v3572 = vpow.pop %v3571
    %v3573 = vmul.f32 %v3558, 1.442695
    %v3574 = vpow.pop %v3573
    %v3575 = vadd.f32 %v3560, 1.0
    %v3576 = vadd.f32 %v3562, 1.0
    %v3577 = vadd.f32 %v3564, 1.0
    %v3578 = vadd.f32 %v3566, 1.0
    %v3579 = vadd.f32 %v3568, 1.0
    %v3580 = vadd.f32 %v3570, 1.0
    %v3581 = vadd.f32 %v3572, 1.0
    %v3582 = vadd.f32 %v3574, 1.0
    %v3583 = vrcp.pop %v3575
    %v3584 = vmul.f32 1.0, %v3583
    %v3585 = vrcp.pop %v3576
    %v3586 = vmul.f32 1.0, %v3585
    %v3587 = vrcp.pop %v3577
    %v3588 = vmul.f32 1.0, %v3587
    %v3589 = vrcp.pop %v3578
    %v3590 = vmul.f32 1.0, %v3589
    %v3591 = vrcp.pop %v3579
    %v3592 = vmul.f32 1.0, %v3591
    %v3593 = vrcp.pop %v3580
    %v3594 = vmul.f32 1.0, %v3593
    %v3595 = vrcp.pop %v3581
    %v3596 = vmul.f32 1.0, %v3595
    %v3597 = vrcp.pop %v3582
    %v3598 = vmul.f32 1.0, %v3597
    %v3599 = vrot.slane %v3471, 2
    %v3600 = vrot.slane %v3472, 2
    %v3601 = vrot.slane %v3473, 2
    %v3602 = vrot.slane %v3474, 2
    %v3603 = vrot.slane %v3475, 2
    %v3604 = vrot.slane %v3476, 2
    %v3605 = vrot.slane %v3477, 2
    %v3606 = vrot.slane %v3478, 2
    %v3615 = vtanh.pop %v3599
    %v3616 = vtanh.pop %v3600
    %v3617 = vtanh.pop %v3601
    %v3618 = vtanh.pop %v3602
    %v3619 = vtanh.pop %v3603
    %v3620 = vtanh.pop %v3604
    %v3621 = vtanh.pop %v3605
    %v3622 = vtanh.pop %v3606
    %v3623 = vrot.slane %v3471, 3
    %v3624 = vrot.slane %v3472, 3
    %v3625 = vrot.slane %v3473, 3
    %v3626 = vrot.slane %v3474, 3
    %v3627 = vrot.slane %v3475, 3
    %v3628 = vrot.slane %v3476, 3
    %v3629 = vrot.slane %v3477, 3
    %v3630 = vrot.slane %v3478, 3
    %v3639 = vxor.u32 %v3623, 2147483648
    %v3640 = vxor.u32 %v3624, 2147483648
    %v3641 = vxor.u32 %v3625, 2147483648
    %v3642 = vxor.u32 %v3626, 2147483648
    %v3643 = vxor.u32 %v3627, 2147483648
    %v3644 = vxor.u32 %v3628, 2147483648
    %v3645 = vxor.u32 %v3629, 2147483648
    %v3646 = vxor.u32 %v3630, 2147483648
    %v3647 = vmul.f32 %v3639, 1.442695
    %v3648 = vpow.pop %v3647
    %v3649 = vmul.f32 %v3640, 1.442695
    %v3650 = vpow.pop %v3649
    %v3651 = vmul.f32 %v3641, 1.442695
    %v3652 = vpow.pop %v3651
    %v3653 = vmul.f32 %v3642, 1.442695
    %v3654 = vpow.pop %v3653
    %v3655 = vmul.f32 %v3643, 1.442695
    %v3656 = vpow.pop %v3655
    %v3657 = vmul.f32 %v3644, 1.442695
    %v3658 = vpow.pop %v3657
    %v3659 = vmul.f32 %v3645, 1.442695
    %v3660 = vpow.pop %v3659
    %v3661 = vmul.f32 %v3646, 1.442695
    %v3662 = vpow.pop %v3661
    %v3663 = vadd.f32 %v3648, 1.0
    %v3664 = vadd.f32 %v3650, 1.0
    %v3665 = vadd.f32 %v3652, 1.0
    %v3666 = vadd.f32 %v3654, 1.0
    %v3667 = vadd.f32 %v3656, 1.0
    %v3668 = vadd.f32 %v3658, 1.0
    %v3669 = vadd.f32 %v3660, 1.0
    %v3670 = vadd.f32 %v3662, 1.0
    %v3671 = vrcp.pop %v3663
    %v3672 = vmul.f32 1.0, %v3671
    %v3673 = vrcp.pop %v3664
    %v3674 = vmul.f32 1.0, %v3673
    %v3675 = vrcp.pop %v3665
    %v3676 = vmul.f32 1.0, %v3675
    %v3677 = vrcp.pop %v3666
    %v3678 = vmul.f32 1.0, %v3677
    %v3679 = vrcp.pop %v3667
    %v3680 = vmul.f32 1.0, %v3679
    %v3681 = vrcp.pop %v3668
    %v3682 = vmul.f32 1.0, %v3681
    %v3683 = vrcp.pop %v3669
    %v3684 = vmul.f32 1.0, %v3683
    %v3685 = vrcp.pop %v3670
    %v3686 = vmul.f32 1.0, %v3685
    %v3687 = vmul.f32 %v3584, %v3029
    %v3688 = vmul.f32 %v3586, %v3030
    %v3689 = vmul.f32 %v3588, %v3031
    %v3690 = vmul.f32 %v3590, %v3032
    %v3691 = vmul.f32 %v3592, %v3033
    %v3692 = vmul.f32 %v3594, %v3034
    %v3693 = vmul.f32 %v3596, %v3035
    %v3694 = vmul.f32 %v3598, %v3036
    %v3695 = vmul.f32 %v3512, %v3615
    %v3696 = vmul.f32 %v3514, %v3616
    %v3697 = vmul.f32 %v3516, %v3617
    %v3698 = vmul.f32 %v3518, %v3618
    %v3699 = vmul.f32 %v3520, %v3619
    %v3700 = vmul.f32 %v3522, %v3620
    %v3701 = vmul.f32 %v3524, %v3621
    %v3702 = vmul.f32 %v3526, %v3622
    %v3703 = vadd.f32 %v3687, %v3695
    %v3704 = vadd.f32 %v3688, %v3696
    %v3705 = vadd.f32 %v3689, %v3697
    %v3706 = vadd.f32 %v3690, %v3698
    %v3707 = vadd.f32 %v3691, %v3699
    %v3708 = vadd.f32 %v3692, %v3700
    %v3709 = vadd.f32 %v3693, %v3701
    %v3710 = vadd.f32 %v3694, %v3702
    %v3711 = vtanh.pop %v3703
    %v3712 = vtanh.pop %v3704
    %v3713 = vtanh.pop %v3705
    %v3714 = vtanh.pop %v3706
    %v3715 = vtanh.pop %v3707
    %v3716 = vtanh.pop %v3708
    %v3717 = vtanh.pop %v3709
    %v3718 = vtanh.pop %v3710
    %v3719 = vmul.f32 %v3672, %v3711
    %v3720 = vmul.f32 %v3674, %v3712
    %v3721 = vmul.f32 %v3676, %v3713
    %v3722 = vmul.f32 %v3678, %v3714
    %v3723 = vmul.f32 %v3680, %v3715
    %v3724 = vmul.f32 %v3682, %v3716
    %v3725 = vmul.f32 %v3684, %v3717
    %v3726 = vmul.f32 %v3686, %v3718
    %3727 = vst [vmem:[#allocation5 + $0x4] sm:$0x1] %v3719
    %3728 = vst [vmem:[#allocation5 + $0xc] sm:$0x1] %v3720
    %3729 = vst [vmem:[#allocation5 + $0x14] sm:$0x1] %v3721
    %3730 = vst [vmem:[#allocation5 + $0x1c] sm:$0x1] %v3722
    %3731 = vst [vmem:[#allocation5 + $0x24] sm:$0x1] %v3723
    %3732 = vst [vmem:[#allocation5 + $0x2c] sm:$0x1] %v3724
    %3733 = vst [vmem:[#allocation5 + $0x34] sm:$0x1] %v3725
    %3734 = vst [vmem:[#allocation5 + $0x3c] sm:$0x1] %v3726
    %v3735 = vpack.c.bf16 %v3719, %v3719
    %v3736 = vpack.c.bf16 %v3720, %v3720
    %v3737 = vpack.c.bf16 %v3721, %v3721
    %v3738 = vpack.c.bf16 %v3722, %v3722
    %v3739 = vpack.c.bf16 %v3723, %v3723
    %v3740 = vpack.c.bf16 %v3724, %v3724
    %v3741 = vpack.c.bf16 %v3725, %v3725
    %v3742 = vpack.c.bf16 %v3726, %v3726
    %s3743 = scalar_lea.vmem [#allocation4], 5
    %v3744 = vld [vmem:[%s3743] ss:$8 sm:$0xf]
    %s3745 = scalar_lea.vmem [#allocation4], 37
    %v3746 = vld [vmem:[%s3745] ss:$8 sm:$0xf]
    %s3747 = scalar_lea.vmem [#allocation4], 69
    %v3748 = vld [vmem:[%s3747] ss:$8 sm:$0xf]
    %s3749 = scalar_lea.vmem [#allocation4], 101
    %v3750 = vld [vmem:[%s3749] ss:$8 sm:$0xf]
    %s3751 = scalar_lea.vmem [#allocation4], 133
    %v3752 = vld [vmem:[%s3751] ss:$8 sm:$0xf]
    %s3753 = scalar_lea.vmem [#allocation4], 165
    %v3754 = vld [vmem:[%s3753] ss:$8 sm:$0xf]
    %s3755 = scalar_lea.vmem [#allocation4], 197
    %v3756 = vld [vmem:[%s3755] ss:$8 sm:$0xf]
    %s3757 = scalar_lea.vmem [#allocation4], 229
    %v3758 = vld [vmem:[%s3757] ss:$8 sm:$0xf]
    %v3759 = vld [vmem:[#allocation11] sm:$0xff]
    %v3760 = vld [vmem:[#allocation11 + $0x8] sm:$0xff]
    %v3761 = vld [vmem:[#allocation11 + $0x10] sm:$0xff]
    %v3762 = vld [vmem:[#allocation11 + $0x18] sm:$0xff]
    %v3763 = vld [vmem:[#allocation11 + $0x20] sm:$0xff]
    %v3764 = vld [vmem:[#allocation11 + $0x28] sm:$0xff]
    %v3765 = vld [vmem:[#allocation11 + $0x30] sm:$0xff]
    %v3766 = vld [vmem:[#allocation11 + $0x38] sm:$0xff]
    %v3767 = vld [vmem:[#allocation11 + $0x40] sm:$0xff]
    %v3768 = vld [vmem:[#allocation11 + $0x48] sm:$0xff]
    %v3769 = vld [vmem:[#allocation11 + $0x50] sm:$0xff]
    %v3770 = vld [vmem:[#allocation11 + $0x58] sm:$0xff]
    %v3771 = vld [vmem:[#allocation11 + $0x60] sm:$0xff]
    %v3772 = vld [vmem:[#allocation11 + $0x68] sm:$0xff]
    %v3773 = vld [vmem:[#allocation11 + $0x70] sm:$0xff]
    %v3774 = vld [vmem:[#allocation11 + $0x78] sm:$0xff]
    %v3775 = vld [vmem:[#allocation11 + $0x80] sm:$0xff]
    %v3776 = vld [vmem:[#allocation11 + $0x88] sm:$0xff]
    %v3777 = vld [vmem:[#allocation11 + $0x90] sm:$0xff]
    %v3778 = vld [vmem:[#allocation11 + $0x98] sm:$0xff]
    %v3779 = vld [vmem:[#allocation11 + $0xa0] sm:$0xff]
    %v3780 = vld [vmem:[#allocation11 + $0xa8] sm:$0xff]
    %v3781 = vld [vmem:[#allocation11 + $0xb0] sm:$0xff]
    %v3782 = vld [vmem:[#allocation11 + $0xb8] sm:$0xff]
    %v3783 = vld [vmem:[#allocation11 + $0xc0] sm:$0xff]
    %v3784 = vld [vmem:[#allocation11 + $0xc8] sm:$0xff]
    %v3785 = vld [vmem:[#allocation11 + $0xd0] sm:$0xff]
    %v3786 = vld [vmem:[#allocation11 + $0xd8] sm:$0xff]
    %v3787 = vld [vmem:[#allocation11 + $0xe0] sm:$0xff]
    %v3788 = vld [vmem:[#allocation11 + $0xe8] sm:$0xff]
    %v3789 = vld [vmem:[#allocation11 + $0xf0] sm:$0xff]
    %v3790 = vld [vmem:[#allocation11 + $0xf8] sm:$0xff]
    %v3799 = vunpack.c.l.b16 %v3735
    %v3800 = vunpack.c.l.b16 %v3736
    %v3801 = vunpack.c.l.b16 %v3737
    %v3802 = vunpack.c.l.b16 %v3738
    %v3803 = vunpack.c.l.b16 %v3739
    %v3804 = vunpack.c.l.b16 %v3740
    %v3805 = vunpack.c.l.b16 %v3741
    %v3806 = vunpack.c.l.b16 %v3742
    %v3807 = vrot.slane %v3800, 7
    %v3808 = vsel %vm1105, %v3807, %v3799
    %v3809 = vrot.slane %v3801, 6
    %v3810 = vsel %vm1108, %v3809, %v3808
    %v3811 = vrot.slane %v3802, 5
    %v3812 = vsel %vm1111, %v3811, %v3810
    %v3813 = vrot.slane %v3803, 4
    %v3814 = vsel %vm1114, %v3813, %v3812
    %v3815 = vrot.slane %v3804, 3
    %v3816 = vsel %vm1117, %v3815, %v3814
    %v3817 = vrot.slane %v3805, 2
    %v3818 = vsel %vm1120, %v3817, %v3816
    %v3819 = vrot.slane %v3806, 1
    %v3820 = vsel %vm1123, %v3819, %v3818
    %v3821 = vpack.c.b16 %v3820, %v3820
    %v3855 = vunpack.c.l.b16 %v3759
    %v3856 = vunpack.c.h.b16 %v3759
    %v3857 = vunpack.c.l.b16 %v3760
    %v3858 = vunpack.c.h.b16 %v3760
    %v3859 = vunpack.c.l.b16 %v3761
    %v3860 = vunpack.c.h.b16 %v3761
    %v3861 = vunpack.c.l.b16 %v3762
    %v3862 = vunpack.c.h.b16 %v3762
    %v3863 = vunpack.c.l.b16 %v3763
    %v3864 = vunpack.c.h.b16 %v3763
    %v3865 = vunpack.c.l.b16 %v3764
    %v3866 = vunpack.c.h.b16 %v3764
    %v3867 = vunpack.c.l.b16 %v3765
    %v3868 = vunpack.c.h.b16 %v3765
    %v3869 = vunpack.c.l.b16 %v3766
    %v3870 = vunpack.c.h.b16 %v3766
    %v3871 = vunpack.c.l.b16 %v3767
    %v3872 = vunpack.c.h.b16 %v3767
    %v3873 = vunpack.c.l.b16 %v3768
    %v3874 = vunpack.c.h.b16 %v3768
    %v3875 = vunpack.c.l.b16 %v3769
    %v3876 = vunpack.c.h.b16 %v3769
    %v3877 = vunpack.c.l.b16 %v3770
    %v3878 = vunpack.c.h.b16 %v3770
    %v3879 = vunpack.c.l.b16 %v3771
    %v3880 = vunpack.c.h.b16 %v3771
    %v3881 = vunpack.c.l.b16 %v3772
    %v3882 = vunpack.c.h.b16 %v3772
    %v3883 = vunpack.c.l.b16 %v3773
    %v3884 = vunpack.c.h.b16 %v3773
    %v3885 = vunpack.c.l.b16 %v3774
    %v3886 = vunpack.c.h.b16 %v3774
    %v3887 = vunpack.c.l.b16 %v3775
    %v3888 = vunpack.c.h.b16 %v3775
    %v3889 = vunpack.c.l.b16 %v3776
    %v3890 = vunpack.c.h.b16 %v3776
    %v3891 = vunpack.c.l.b16 %v3777
    %v3892 = vunpack.c.h.b16 %v3777
    %v3893 = vunpack.c.l.b16 %v3778
    %v3894 = vunpack.c.h.b16 %v3778
    %v3895 = vunpack.c.l.b16 %v3779
    %v3896 = vunpack.c.h.b16 %v3779
    %v3897 = vunpack.c.l.b16 %v3780
    %v3898 = vunpack.c.h.b16 %v3780
    %v3899 = vunpack.c.l.b16 %v3781
    %v3900 = vunpack.c.h.b16 %v3781
    %v3901 = vunpack.c.l.b16 %v3782
    %v3902 = vunpack.c.h.b16 %v3782
    %v3903 = vunpack.c.l.b16 %v3783
    %v3904 = vunpack.c.h.b16 %v3783
    %v3905 = vunpack.c.l.b16 %v3784
    %v3906 = vunpack.c.h.b16 %v3784
    %v3907 = vunpack.c.l.b16 %v3785
    %v3908 = vunpack.c.h.b16 %v3785
    %v3909 = vunpack.c.l.b16 %v3786
    %v3910 = vunpack.c.h.b16 %v3786
    %v3911 = vunpack.c.l.b16 %v3787
    %v3912 = vunpack.c.h.b16 %v3787
    %v3913 = vunpack.c.l.b16 %v3788
    %v3914 = vunpack.c.h.b16 %v3788
    %v3915 = vunpack.c.l.b16 %v3789
    %v3916 = vunpack.c.h.b16 %v3789
    %v3917 = vunpack.c.l.b16 %v3790
    %v3918 = vunpack.c.h.b16 %v3790
    %v3919 = vpack.c.b16 %v3859, %v3855
    %v3920 = vpack.c.b16 %v3860, %v3856
    %v3921 = vpack.c.b16 %v3861, %v3857
    %v3922 = vpack.c.b16 %v3862, %v3858
    %v3923 = vpack.c.b16 %v3867, %v3863
    %v3924 = vpack.c.b16 %v3868, %v3864
    %v3925 = vpack.c.b16 %v3869, %v3865
    %v3926 = vpack.c.b16 %v3870, %v3866
    %v3927 = vpack.c.b16 %v3875, %v3871
    %v3928 = vpack.c.b16 %v3876, %v3872
    %v3929 = vpack.c.b16 %v3877, %v3873
    %v3930 = vpack.c.b16 %v3878, %v3874
    %v3931 = vpack.c.b16 %v3883, %v3879
    %v3932 = vpack.c.b16 %v3884, %v3880
    %v3933 = vpack.c.b16 %v3885, %v3881
    %v3934 = vpack.c.b16 %v3886, %v3882
    %v3935 = vpack.c.b16 %v3891, %v3887
    %v3936 = vpack.c.b16 %v3892, %v3888
    %v3937 = vpack.c.b16 %v3893, %v3889
    %v3938 = vpack.c.b16 %v3894, %v3890
    %v3939 = vpack.c.b16 %v3899, %v3895
    %v3940 = vpack.c.b16 %v3900, %v3896
    %v3941 = vpack.c.b16 %v3901, %v3897
    %v3942 = vpack.c.b16 %v3902, %v3898
    %v3943 = vpack.c.b16 %v3907, %v3903
    %v3944 = vpack.c.b16 %v3908, %v3904
    %v3945 = vpack.c.b16 %v3909, %v3905
    %v3946 = vpack.c.b16 %v3910, %v3906
    %v3947 = vpack.c.b16 %v3915, %v3911
    %v3948 = vpack.c.b16 %v3916, %v3912
    %v3949 = vpack.c.b16 %v3917, %v3913
    %v3950 = vpack.c.b16 %v3918, %v3914
    %3983 = vmatprep.subr.bf16.mxu0 %v3920
    %3984 = vmatpush1.bf16.msra.mxu0 %v3919
    %3985 = vmatprep.subr.bf16.mxu0 %v3924
    %3986 = vmatpush1.bf16.msra.mxu0 %v3923
    %3987 = vmatprep.subr.bf16.mxu0 %v3928
    %3988 = vmatpush1.bf16.msra.mxu0 %v3927
    %3989 = vmatprep.subr.bf16.mxu0 %v3932
    %3990 = vmatpush1.bf16.msra.mxu0 %v3931
    %3991 = vmatprep.subr.bf16.mxu0 %v3936
    %3992 = vmatpush1.bf16.msra.mxu0 %v3935
    %3993 = vmatprep.subr.bf16.mxu0 %v3940
    %3994 = vmatpush1.bf16.msra.mxu0 %v3939
    %3995 = vmatprep.subr.bf16.mxu0 %v3944
    %3996 = vmatpush1.bf16.msra.mxu0 %v3943
    %3997 = vmatprep.subr.bf16.mxu0 %v3948
    %3998 = vmatpush1.bf16.msra.mxu0 %v3947
    %3999 = vmatprep.subr.bf16.mxu0 0
    %4000 = vmatpush1.bf16.msra.mxu0 0
    %4001 = vmatprep.subr.bf16.mxu0 0
    %4002 = vmatpush1.bf16.msra.mxu0 0
    %4003 = vmatprep.subr.bf16.mxu0 0
    %4004 = vmatpush1.bf16.msra.mxu0 0
    %4005 = vmatprep.subr.bf16.mxu0 0
    %4006 = vmatpush1.bf16.msra.mxu0 0
    %4007 = vmatprep.subr.bf16.mxu0 0
    %4008 = vmatpush1.bf16.msra.mxu0 0
    %4009 = vmatprep.subr.bf16.mxu0 0
    %4010 = vmatpush1.bf16.msra.mxu0 0
    %4011 = vmatprep.subr.bf16.mxu0 0
    %4012 = vmatpush1.bf16.msra.mxu0 0
    %4013 = vmatprep.subr.bf16.mxu0 0
    %4014 = vmatpush1.bf16.msra.mxu0 0
    %4015 = vmatprep.mubr.bf16.mxu0 0
    %4016 = vmatmul.mubr.bf16.gmra.mrb[0].mxu0 %v3821
    %v4017 = vpop.f32.mrb[0].mxu0
    %v4018 = vadd.f32 0.0, %v4017
    %v4019 = vpop.f32.mrb[0].mxu0
    %v4020 = vadd.f32 0.0, %v4019
    %v4021 = vpop.f32.mrb[0].mxu0
    %v4022 = vpop.f32.mrb[0].mxu0
    %4023 = vdwg.mxu0
    %4024 = vmatprep.subr.bf16.mxu0 %v3922
    %4025 = vmatpush1.bf16.msra.mxu0 %v3921
    %4026 = vmatprep.subr.bf16.mxu0 %v3926
    %4027 = vmatpush1.bf16.msra.mxu0 %v3925
    %4028 = vmatprep.subr.bf16.mxu0 %v3930
    %4029 = vmatpush1.bf16.msra.mxu0 %v3929
    %4030 = vmatprep.subr.bf16.mxu0 %v3934
    %4031 = vmatpush1.bf16.msra.mxu0 %v3933
    %4032 = vmatprep.subr.bf16.mxu0 %v3938
    %4033 = vmatpush1.bf16.msra.mxu0 %v3937
    %4034 = vmatprep.subr.bf16.mxu0 %v3942
    %4035 = vmatpush1.bf16.msra.mxu0 %v3941
    %4036 = vmatprep.subr.bf16.mxu0 %v3946
    %4037 = vmatpush1.bf16.msra.mxu0 %v3945
    %4038 = vmatprep.subr.bf16.mxu0 %v3950
    %4039 = vmatpush1.bf16.msra.mxu0 %v3949
    %4040 = vmatprep.subr.bf16.mxu0 0
    %4041 = vmatpush1.bf16.msra.mxu0 0
    %4042 = vmatprep.subr.bf16.mxu0 0
    %4043 = vmatpush1.bf16.msra.mxu0 0
    %4044 = vmatprep.subr.bf16.mxu0 0
    %4045 = vmatpush1.bf16.msra.mxu0 0
    %4046 = vmatprep.subr.bf16.mxu0 0
    %4047 = vmatpush1.bf16.msra.mxu0 0
    %4048 = vmatprep.subr.bf16.mxu0 0
    %4049 = vmatpush1.bf16.msra.mxu0 0
    %4050 = vmatprep.subr.bf16.mxu0 0
    %4051 = vmatpush1.bf16.msra.mxu0 0
    %4052 = vmatprep.subr.bf16.mxu0 0
    %4053 = vmatpush1.bf16.msra.mxu0 0
    %4054 = vmatprep.subr.bf16.mxu0 0
    %4055 = vmatpush1.bf16.msra.mxu0 0
    %4056 = vmatprep.mubr.bf16.mxu0 0
    %4057 = vmatmul.mubr.bf16.gmra.mrb[0].mxu0 %v3821
    %v4058 = vpop.f32.mrb[0].mxu0
    %v4059 = vadd.f32 0.0, %v4058
    %v4060 = vpop.f32.mrb[0].mxu0
    %v4061 = vadd.f32 0.0, %v4060
    %v4062 = vpop.f32.mrb[0].mxu0
    %v4063 = vpop.f32.mrb[0].mxu0
    %4064 = vdwg.mxu0
    %v4069 = vcombine.low %v4018, %v4020
    %v4070 = vcombine.high %v4018, %v4020
    %v4071 = vcombine.low %v4059, %v4061
    %v4072 = vcombine.high %v4059, %v4061
    %v4074 = vunpack.c.l.s4 1966171168
    %v4075 = vunpack.c.0.s8 %v4074
    %v4076 = vlaneseq
    %v4077 = vshrl.u32 %v4076, 7
    %v4078 = vsub.s32 %v4075, %v4077
    %v4079 = vrot.slane %v4069, %v4078
    %v4081 = vunpack.c.l.s4 1966171168
    %v4082 = vunpack.c.0.s8 %v4081
    %v4083 = vlaneseq
    %v4084 = vshrl.u32 %v4083, 7
    %v4085 = vsub.s32 %v4082, %v4084
    %v4086 = vrot.slane %v4070, %v4085
    %v4088 = vunpack.c.l.s4 1966171168
    %v4089 = vunpack.c.0.s8 %v4088
    %v4090 = vlaneseq
    %v4091 = vshrl.u32 %v4090, 7
    %v4092 = vsub.s32 %v4089, %v4091
    %v4093 = vrot.slane %v4071, %v4092
    %v4095 = vunpack.c.l.s4 1966171168
    %v4096 = vunpack.c.0.s8 %v4095
    %v4097 = vlaneseq
    %v4098 = vshrl.u32 %v4097, 7
    %v4099 = vsub.s32 %v4096, %v4098
    %v4100 = vrot.slane %v4072, %v4099
    %v4101 = vcombine.low %v4079, %v4093
    %v4102 = vcombine.high %v4079, %v4093
    %v4103 = vcombine.low %v4086, %v4100
    %v4104 = vcombine.high %v4086, %v4100
    %v4106 = vunpack.c.l.s4 1966171168
    %v4107 = vunpack.c.0.s8 %v4106
    %v4108 = vlaneseq
    %v4109 = vshrl.u32 %v4108, 7
    %v4110 = vsub.s32 %v4107, %v4109
    %v4111 = vrot.slane %v4101, %v4110
    %v4113 = vunpack.c.l.s4 1966171168
    %v4114 = vunpack.c.0.s8 %v4113
    %v4115 = vlaneseq
    %v4116 = vshrl.u32 %v4115, 7
    %v4117 = vsub.s32 %v4114, %v4116
    %v4118 = vrot.slane %v4103, %v4117
    %v4120 = vunpack.c.l.s4 1966171168
    %v4121 = vunpack.c.0.s8 %v4120
    %v4122 = vlaneseq
    %v4123 = vshrl.u32 %v4122, 7
    %v4124 = vsub.s32 %v4121, %v4123
    %v4125 = vrot.slane %v4102, %v4124
    %v4127 = vunpack.c.l.s4 1966171168
    %v4128 = vunpack.c.0.s8 %v4127
    %v4129 = vlaneseq
    %v4130 = vshrl.u32 %v4129, 7
    %v4131 = vsub.s32 %v4128, %v4130
    %v4132 = vrot.slane %v4104, %v4131
    %v4133 = vcombine.high %v4111, %v4111
    %v4134 = vcombine.high %v4118, %v4118
    %v4135 = vcombine.high %v4125, %v4125
    %v4136 = vcombine.high %v4132, %v4132
    %v4145 = vadd.f32 %v3744, %v4111
    %v4146 = vadd.f32 %v3746, %v4125
    %v4147 = vadd.f32 %v3748, %v4133
    %v4148 = vadd.f32 %v3750, %v4135
    %v4149 = vadd.f32 %v3752, %v4118
    %v4150 = vadd.f32 %v3754, %v4132
    %v4151 = vadd.f32 %v3756, %v4134
    %v4152 = vadd.f32 %v3758, %v4136
    %v4153 = vxor.u32 %v4145, 2147483648
    %v4154 = vxor.u32 %v4146, 2147483648
    %v4155 = vxor.u32 %v4147, 2147483648
    %v4156 = vxor.u32 %v4148, 2147483648
    %v4157 = vxor.u32 %v4149, 2147483648
    %v4158 = vxor.u32 %v4150, 2147483648
    %v4159 = vxor.u32 %v4151, 2147483648
    %v4160 = vxor.u32 %v4152, 2147483648
    %v4161 = vmul.f32 %v4153, 1.442695
    %v4162 = vpow.pop %v4161
    %v4163 = vmul.f32 %v4154, 1.442695
    %v4164 = vpow.pop %v4163
    %v4165 = vmul.f32 %v4155, 1.442695
    %v4166 = vpow.pop %v4165
    %v4167 = vmul.f32 %v4156, 1.442695
    %v4168 = vpow.pop %v4167
    %v4169 = vmul.f32 %v4157, 1.442695
    %v4170 = vpow.pop %v4169
    %v4171 = vmul.f32 %v4158, 1.442695
    %v4172 = vpow.pop %v4171
    %v4173 = vmul.f32 %v4159, 1.442695
    %v4174 = vpow.pop %v4173
    %v4175 = vmul.f32 %v4160, 1.442695
    %v4176 = vpow.pop %v4175
    %v4177 = vadd.f32 %v4162, 1.0
    %v4178 = vadd.f32 %v4164, 1.0
    %v4179 = vadd.f32 %v4166, 1.0
    %v4180 = vadd.f32 %v4168, 1.0
    %v4181 = vadd.f32 %v4170, 1.0
    %v4182 = vadd.f32 %v4172, 1.0
    %v4183 = vadd.f32 %v4174, 1.0
    %v4184 = vadd.f32 %v4176, 1.0
    %v4185 = vrcp.pop %v4177
    %v4186 = vmul.f32 1.0, %v4185
    %v4187 = vrcp.pop %v4178
    %v4188 = vmul.f32 1.0, %v4187
    %v4189 = vrcp.pop %v4179
    %v4190 = vmul.f32 1.0, %v4189
    %v4191 = vrcp.pop %v4180
    %v4192 = vmul.f32 1.0, %v4191
    %v4193 = vrcp.pop %v4181
    %v4194 = vmul.f32 1.0, %v4193
    %v4195 = vrcp.pop %v4182
    %v4196 = vmul.f32 1.0, %v4195
    %v4197 = vrcp.pop %v4183
    %v4198 = vmul.f32 1.0, %v4197
    %v4199 = vrcp.pop %v4184
    %v4200 = vmul.f32 1.0, %v4199
    %v4209 = vrot.slane %v4145, 1
    %v4210 = vrot.slane %v4146, 1
    %v4211 = vrot.slane %v4147, 1
    %v4212 = vrot.slane %v4148, 1
    %v4213 = vrot.slane %v4149, 1
    %v4214 = vrot.slane %v4150, 1
    %v4215 = vrot.slane %v4151, 1
    %v4216 = vrot.slane %v4152, 1
    %v4225 = vxor.u32 %v4209, 2147483648
    %v4226 = vxor.u32 %v4210, 2147483648
    %v4227 = vxor.u32 %v4211, 2147483648
    %v4228 = vxor.u32 %v4212, 2147483648
    %v4229 = vxor.u32 %v4213, 2147483648
    %v4230 = vxor.u32 %v4214, 2147483648
    %v4231 = vxor.u32 %v4215, 2147483648
    %v4232 = vxor.u32 %v4216, 2147483648
    %v4233 = vmul.f32 %v4225, 1.442695
    %v4234 = vpow.pop %v4233
    %v4235 = vmul.f32 %v4226, 1.442695
    %v4236 = vpow.pop %v4235
    %v4237 = vmul.f32 %v4227, 1.442695
    %v4238 = vpow.pop %v4237
    %v4239 = vmul.f32 %v4228, 1.442695
    %v4240 = vpow.pop %v4239
    %v4241 = vmul.f32 %v4229, 1.442695
    %v4242 = vpow.pop %v4241
    %v4243 = vmul.f32 %v4230, 1.442695
    %v4244 = vpow.pop %v4243
    %v4245 = vmul.f32 %v4231, 1.442695
    %v4246 = vpow.pop %v4245
    %v4247 = vmul.f32 %v4232, 1.442695
    %v4248 = vpow.pop %v4247
    %v4249 = vadd.f32 %v4234, 1.0
    %v4250 = vadd.f32 %v4236, 1.0
    %v4251 = vadd.f32 %v4238, 1.0
    %v4252 = vadd.f32 %v4240, 1.0
    %v4253 = vadd.f32 %v4242, 1.0
    %v4254 = vadd.f32 %v4244, 1.0
    %v4255 = vadd.f32 %v4246, 1.0
    %v4256 = vadd.f32 %v4248, 1.0
    %v4257 = vrcp.pop %v4249
    %v4258 = vmul.f32 1.0, %v4257
    %v4259 = vrcp.pop %v4250
    %v4260 = vmul.f32 1.0, %v4259
    %v4261 = vrcp.pop %v4251
    %v4262 = vmul.f32 1.0, %v4261
    %v4263 = vrcp.pop %v4252
    %v4264 = vmul.f32 1.0, %v4263
    %v4265 = vrcp.pop %v4253
    %v4266 = vmul.f32 1.0, %v4265
    %v4267 = vrcp.pop %v4254
    %v4268 = vmul.f32 1.0, %v4267
    %v4269 = vrcp.pop %v4255
    %v4270 = vmul.f32 1.0, %v4269
    %v4271 = vrcp.pop %v4256
    %v4272 = vmul.f32 1.0, %v4271
    %v4273 = vrot.slane %v4145, 2
    %v4274 = vrot.slane %v4146, 2
    %v4275 = vrot.slane %v4147, 2
    %v4276 = vrot.slane %v4148, 2
    %v4277 = vrot.slane %v4149, 2
    %v4278 = vrot.slane %v4150, 2
    %v4279 = vrot.slane %v4151, 2
    %v4280 = vrot.slane %v4152, 2
    %v4289 = vtanh.pop %v4273
    %v4290 = vtanh.pop %v4274
    %v4291 = vtanh.pop %v4275
    %v4292 = vtanh.pop %v4276
    %v4293 = vtanh.pop %v4277
    %v4294 = vtanh.pop %v4278
    %v4295 = vtanh.pop %v4279
    %v4296 = vtanh.pop %v4280
    %v4297 = vrot.slane %v4145, 3
    %v4298 = vrot.slane %v4146, 3
    %v4299 = vrot.slane %v4147, 3
    %v4300 = vrot.slane %v4148, 3
    %v4301 = vrot.slane %v4149, 3
    %v4302 = vrot.slane %v4150, 3
    %v4303 = vrot.slane %v4151, 3
    %v4304 = vrot.slane %v4152, 3
    %v4313 = vxor.u32 %v4297, 2147483648
    %v4314 = vxor.u32 %v4298, 2147483648
    %v4315 = vxor.u32 %v4299, 2147483648
    %v4316 = vxor.u32 %v4300, 2147483648
    %v4317 = vxor.u32 %v4301, 2147483648
    %v4318 = vxor.u32 %v4302, 2147483648
    %v4319 = vxor.u32 %v4303, 2147483648
    %v4320 = vxor.u32 %v4304, 2147483648
    %v4321 = vmul.f32 %v4313, 1.442695
    %v4322 = vpow.pop %v4321
    %v4323 = vmul.f32 %v4314, 1.442695
    %v4324 = vpow.pop %v4323
    %v4325 = vmul.f32 %v4315, 1.442695
    %v4326 = vpow.pop %v4325
    %v4327 = vmul.f32 %v4316, 1.442695
    %v4328 = vpow.pop %v4327
    %v4329 = vmul.f32 %v4317, 1.442695
    %v4330 = vpow.pop %v4329
    %v4331 = vmul.f32 %v4318, 1.442695
    %v4332 = vpow.pop %v4331
    %v4333 = vmul.f32 %v4319, 1.442695
    %v4334 = vpow.pop %v4333
    %v4335 = vmul.f32 %v4320, 1.442695
    %v4336 = vpow.pop %v4335
    %v4337 = vadd.f32 %v4322, 1.0
    %v4338 = vadd.f32 %v4324, 1.0
    %v4339 = vadd.f32 %v4326, 1.0
    %v4340 = vadd.f32 %v4328, 1.0
    %v4341 = vadd.f32 %v4330, 1.0
    %v4342 = vadd.f32 %v4332, 1.0
    %v4343 = vadd.f32 %v4334, 1.0
    %v4344 = vadd.f32 %v4336, 1.0
    %v4345 = vrcp.pop %v4337
    %v4346 = vmul.f32 1.0, %v4345
    %v4347 = vrcp.pop %v4338
    %v4348 = vmul.f32 1.0, %v4347
    %v4349 = vrcp.pop %v4339
    %v4350 = vmul.f32 1.0, %v4349
    %v4351 = vrcp.pop %v4340
    %v4352 = vmul.f32 1.0, %v4351
    %v4353 = vrcp.pop %v4341
    %v4354 = vmul.f32 1.0, %v4353
    %v4355 = vrcp.pop %v4342
    %v4356 = vmul.f32 1.0, %v4355
    %v4357 = vrcp.pop %v4343
    %v4358 = vmul.f32 1.0, %v4357
    %v4359 = vrcp.pop %v4344
    %v4360 = vmul.f32 1.0, %v4359
    %v4361 = vmul.f32 %v4258, %v3703
    %v4362 = vmul.f32 %v4260, %v3704
    %v4363 = vmul.f32 %v4262, %v3705
    %v4364 = vmul.f32 %v4264, %v3706
    %v4365 = vmul.f32 %v4266, %v3707
    %v4366 = vmul.f32 %v4268, %v3708
    %v4367 = vmul.f32 %v4270, %v3709
    %v4368 = vmul.f32 %v4272, %v3710
    %v4369 = vmul.f32 %v4186, %v4289
    %v4370 = vmul.f32 %v4188, %v4290
    %v4371 = vmul.f32 %v4190, %v4291
    %v4372 = vmul.f32 %v4192, %v4292
    %v4373 = vmul.f32 %v4194, %v4293
    %v4374 = vmul.f32 %v4196, %v4294
    %v4375 = vmul.f32 %v4198, %v4295
    %v4376 = vmul.f32 %v4200, %v4296
    %v4377 = vadd.f32 %v4361, %v4369
    %v4378 = vadd.f32 %v4362, %v4370
    %v4379 = vadd.f32 %v4363, %v4371
    %v4380 = vadd.f32 %v4364, %v4372
    %v4381 = vadd.f32 %v4365, %v4373
    %v4382 = vadd.f32 %v4366, %v4374
    %v4383 = vadd.f32 %v4367, %v4375
    %v4384 = vadd.f32 %v4368, %v4376
    %v4385 = vtanh.pop %v4377
    %v4386 = vtanh.pop %v4378
    %v4387 = vtanh.pop %v4379
    %v4388 = vtanh.pop %v4380
    %v4389 = vtanh.pop %v4381
    %v4390 = vtanh.pop %v4382
    %v4391 = vtanh.pop %v4383
    %v4392 = vtanh.pop %v4384
    %v4393 = vmul.f32 %v4346, %v4385
    %v4394 = vmul.f32 %v4348, %v4386
    %v4395 = vmul.f32 %v4350, %v4387
    %v4396 = vmul.f32 %v4352, %v4388
    %v4397 = vmul.f32 %v4354, %v4389
    %v4398 = vmul.f32 %v4356, %v4390
    %v4399 = vmul.f32 %v4358, %v4391
    %v4400 = vmul.f32 %v4360, %v4392
    %4401 = vst [vmem:[#allocation5 + $0x5] sm:$0x1] %v4393
    %4402 = vst [vmem:[#allocation5 + $0xd] sm:$0x1] %v4394
    %4403 = vst [vmem:[#allocation5 + $0x15] sm:$0x1] %v4395
    %4404 = vst [vmem:[#allocation5 + $0x1d] sm:$0x1] %v4396
    %4405 = vst [vmem:[#allocation5 + $0x25] sm:$0x1] %v4397
    %4406 = vst [vmem:[#allocation5 + $0x2d] sm:$0x1] %v4398
    %4407 = vst [vmem:[#allocation5 + $0x35] sm:$0x1] %v4399
    %4408 = vst [vmem:[#allocation5 + $0x3d] sm:$0x1] %v4400
    %v4409 = vpack.c.bf16 %v4393, %v4393
    %v4410 = vpack.c.bf16 %v4394, %v4394
    %v4411 = vpack.c.bf16 %v4395, %v4395
    %v4412 = vpack.c.bf16 %v4396, %v4396
    %v4413 = vpack.c.bf16 %v4397, %v4397
    %v4414 = vpack.c.bf16 %v4398, %v4398
    %v4415 = vpack.c.bf16 %v4399, %v4399
    %v4416 = vpack.c.bf16 %v4400, %v4400
    %s4417 = scalar_lea.vmem [#allocation4], 6
    %v4418 = vld [vmem:[%s4417] ss:$8 sm:$0xf]
    %s4419 = scalar_lea.vmem [#allocation4], 38
    %v4420 = vld [vmem:[%s4419] ss:$8 sm:$0xf]
    %s4421 = scalar_lea.vmem [#allocation4], 70
    %v4422 = vld [vmem:[%s4421] ss:$8 sm:$0xf]
    %s4423 = scalar_lea.vmem [#allocation4], 102
    %v4424 = vld [vmem:[%s4423] ss:$8 sm:$0xf]
    %s4425 = scalar_lea.vmem [#allocation4], 134
    %v4426 = vld [vmem:[%s4425] ss:$8 sm:$0xf]
    %s4427 = scalar_lea.vmem [#allocation4], 166
    %v4428 = vld [vmem:[%s4427] ss:$8 sm:$0xf]
    %s4429 = scalar_lea.vmem [#allocation4], 198
    %v4430 = vld [vmem:[%s4429] ss:$8 sm:$0xf]
    %s4431 = scalar_lea.vmem [#allocation4], 230
    %v4432 = vld [vmem:[%s4431] ss:$8 sm:$0xf]
    %v4433 = vld [vmem:[#allocation11] sm:$0xff]
    %v4434 = vld [vmem:[#allocation11 + $0x8] sm:$0xff]
    %v4435 = vld [vmem:[#allocation11 + $0x10] sm:$0xff]
    %v4436 = vld [vmem:[#allocation11 + $0x18] sm:$0xff]
    %v4437 = vld [vmem:[#allocation11 + $0x20] sm:$0xff]
    %v4438 = vld [vmem:[#allocation11 + $0x28] sm:$0xff]
    %v4439 = vld [vmem:[#allocation11 + $0x30] sm:$0xff]
    %v4440 = vld [vmem:[#allocation11 + $0x38] sm:$0xff]
    %v4441 = vld [vmem:[#allocation11 + $0x40] sm:$0xff]
    %v4442 = vld [vmem:[#allocation11 + $0x48] sm:$0xff]
    %v4443 = vld [vmem:[#allocation11 + $0x50] sm:$0xff]
    %v4444 = vld [vmem:[#allocation11 + $0x58] sm:$0xff]
    %v4445 = vld [vmem:[#allocation11 + $0x60] sm:$0xff]
    %v4446 = vld [vmem:[#allocation11 + $0x68] sm:$0xff]
    %v4447 = vld [vmem:[#allocation11 + $0x70] sm:$0xff]
    %v4448 = vld [vmem:[#allocation11 + $0x78] sm:$0xff]
    %v4449 = vld [vmem:[#allocation11 + $0x80] sm:$0xff]
    %v4450 = vld [vmem:[#allocation11 + $0x88] sm:$0xff]
    %v4451 = vld [vmem:[#allocation11 + $0x90] sm:$0xff]
    %v4452 = vld [vmem:[#allocation11 + $0x98] sm:$0xff]
    %v4453 = vld [vmem:[#allocation11 + $0xa0] sm:$0xff]
    %v4454 = vld [vmem:[#allocation11 + $0xa8] sm:$0xff]
    %v4455 = vld [vmem:[#allocation11 + $0xb0] sm:$0xff]
    %v4456 = vld [vmem:[#allocation11 + $0xb8] sm:$0xff]
    %v4457 = vld [vmem:[#allocation11 + $0xc0] sm:$0xff]
    %v4458 = vld [vmem:[#allocation11 + $0xc8] sm:$0xff]
    %v4459 = vld [vmem:[#allocation11 + $0xd0] sm:$0xff]
    %v4460 = vld [vmem:[#allocation11 + $0xd8] sm:$0xff]
    %v4461 = vld [vmem:[#allocation11 + $0xe0] sm:$0xff]
    %v4462 = vld [vmem:[#allocation11 + $0xe8] sm:$0xff]
    %v4463 = vld [vmem:[#allocation11 + $0xf0] sm:$0xff]
    %v4464 = vld [vmem:[#allocation11 + $0xf8] sm:$0xff]
    %v4473 = vunpack.c.l.b16 %v4409
    %v4474 = vunpack.c.l.b16 %v4410
    %v4475 = vunpack.c.l.b16 %v4411
    %v4476 = vunpack.c.l.b16 %v4412
    %v4477 = vunpack.c.l.b16 %v4413
    %v4478 = vunpack.c.l.b16 %v4414
    %v4479 = vunpack.c.l.b16 %v4415
    %v4480 = vunpack.c.l.b16 %v4416
    %v4481 = vrot.slane %v4474, 7
    %v4482 = vsel %vm1105, %v4481, %v4473
    %v4483 = vrot.slane %v4475, 6
    %v4484 = vsel %vm1108, %v4483, %v4482
    %v4485 = vrot.slane %v4476, 5
    %v4486 = vsel %vm1111, %v4485, %v4484
    %v4487 = vrot.slane %v4477, 4
    %v4488 = vsel %vm1114, %v4487, %v4486
    %v4489 = vrot.slane %v4478, 3
    %v4490 = vsel %vm1117, %v4489, %v4488
    %v4491 = vrot.slane %v4479, 2
    %v4492 = vsel %vm1120, %v4491, %v4490
    %v4493 = vrot.slane %v4480, 1
    %v4494 = vsel %vm1123, %v4493, %v4492
    %v4495 = vpack.c.b16 %v4494, %v4494
    %v4529 = vunpack.c.l.b16 %v4433
    %v4530 = vunpack.c.h.b16 %v4433
    %v4531 = vunpack.c.l.b16 %v4434
    %v4532 = vunpack.c.h.b16 %v4434
    %v4533 = vunpack.c.l.b16 %v4435
    %v4534 = vunpack.c.h.b16 %v4435
    %v4535 = vunpack.c.l.b16 %v4436
    %v4536 = vunpack.c.h.b16 %v4436
    %v4537 = vunpack.c.l.b16 %v4437
    %v4538 = vunpack.c.h.b16 %v4437
    %v4539 = vunpack.c.l.b16 %v4438
    %v4540 = vunpack.c.h.b16 %v4438
    %v4541 = vunpack.c.l.b16 %v4439
    %v4542 = vunpack.c.h.b16 %v4439
    %v4543 = vunpack.c.l.b16 %v4440
    %v4544 = vunpack.c.h.b16 %v4440
    %v4545 = vunpack.c.l.b16 %v4441
    %v4546 = vunpack.c.h.b16 %v4441
    %v4547 = vunpack.c.l.b16 %v4442
    %v4548 = vunpack.c.h.b16 %v4442
    %v4549 = vunpack.c.l.b16 %v4443
    %v4550 = vunpack.c.h.b16 %v4443
    %v4551 = vunpack.c.l.b16 %v4444
    %v4552 = vunpack.c.h.b16 %v4444
    %v4553 = vunpack.c.l.b16 %v4445
    %v4554 = vunpack.c.h.b16 %v4445
    %v4555 = vunpack.c.l.b16 %v4446
    %v4556 = vunpack.c.h.b16 %v4446
    %v4557 = vunpack.c.l.b16 %v4447
    %v4558 = vunpack.c.h.b16 %v4447
    %v4559 = vunpack.c.l.b16 %v4448
    %v4560 = vunpack.c.h.b16 %v4448
    %v4561 = vunpack.c.l.b16 %v4449
    %v4562 = vunpack.c.h.b16 %v4449
    %v4563 = vunpack.c.l.b16 %v4450
    %v4564 = vunpack.c.h.b16 %v4450
    %v4565 = vunpack.c.l.b16 %v4451
    %v4566 = vunpack.c.h.b16 %v4451
    %v4567 = vunpack.c.l.b16 %v4452
    %v4568 = vunpack.c.h.b16 %v4452
    %v4569 = vunpack.c.l.b16 %v4453
    %v4570 = vunpack.c.h.b16 %v4453
    %v4571 = vunpack.c.l.b16 %v4454
    %v4572 = vunpack.c.h.b16 %v4454
    %v4573 = vunpack.c.l.b16 %v4455
    %v4574 = vunpack.c.h.b16 %v4455
    %v4575 = vunpack.c.l.b16 %v4456
    %v4576 = vunpack.c.h.b16 %v4456
    %v4577 = vunpack.c.l.b16 %v4457
    %v4578 = vunpack.c.h.b16 %v4457
    %v4579 = vunpack.c.l.b16 %v4458
    %v4580 = vunpack.c.h.b16 %v4458
    %v4581 = vunpack.c.l.b16 %v4459
    %v4582 = vunpack.c.h.b16 %v4459
    %v4583 = vunpack.c.l.b16 %v4460
    %v4584 = vunpack.c.h.b16 %v4460
    %v4585 = vunpack.c.l.b16 %v4461
    %v4586 = vunpack.c.h.b16 %v4461
    %v4587 = vunpack.c.l.b16 %v4462
    %v4588 = vunpack.c.h.b16 %v4462
    %v4589 = vunpack.c.l.b16 %v4463
    %v4590 = vunpack.c.h.b16 %v4463
    %v4591 = vunpack.c.l.b16 %v4464
    %v4592 = vunpack.c.h.b16 %v4464
    %v4593 = vpack.c.b16 %v4533, %v4529
    %v4594 = vpack.c.b16 %v4534, %v4530
    %v4595 = vpack.c.b16 %v4535, %v4531
    %v4596 = vpack.c.b16 %v4536, %v4532
    %v4597 = vpack.c.b16 %v4541, %v4537
    %v4598 = vpack.c.b16 %v4542, %v4538
    %v4599 = vpack.c.b16 %v4543, %v4539
    %v4600 = vpack.c.b16 %v4544, %v4540
    %v4601 = vpack.c.b16 %v4549, %v4545
    %v4602 = vpack.c.b16 %v4550, %v4546
    %v4603 = vpack.c.b16 %v4551, %v4547
    %v4604 = vpack.c.b16 %v4552, %v4548
    %v4605 = vpack.c.b16 %v4557, %v4553
    %v4606 = vpack.c.b16 %v4558, %v4554
    %v4607 = vpack.c.b16 %v4559, %v4555
    %v4608 = vpack.c.b16 %v4560, %v4556
    %v4609 = vpack.c.b16 %v4565, %v4561
    %v4610 = vpack.c.b16 %v4566, %v4562
    %v4611 = vpack.c.b16 %v4567, %v4563
    %v4612 = vpack.c.b16 %v4568, %v4564
    %v4613 = vpack.c.b16 %v4573, %v4569
    %v4614 = vpack.c.b16 %v4574, %v4570
    %v4615 = vpack.c.b16 %v4575, %v4571
    %v4616 = vpack.c.b16 %v4576, %v4572
    %v4617 = vpack.c.b16 %v4581, %v4577
    %v4618 = vpack.c.b16 %v4582, %v4578
    %v4619 = vpack.c.b16 %v4583, %v4579
    %v4620 = vpack.c.b16 %v4584, %v4580
    %v4621 = vpack.c.b16 %v4589, %v4585
    %v4622 = vpack.c.b16 %v4590, %v4586
    %v4623 = vpack.c.b16 %v4591, %v4587
    %v4624 = vpack.c.b16 %v4592, %v4588
    %4657 = vmatprep.subr.bf16.mxu0 %v4594
    %4658 = vmatpush1.bf16.msra.mxu0 %v4593
    %4659 = vmatprep.subr.bf16.mxu0 %v4598
    %4660 = vmatpush1.bf16.msra.mxu0 %v4597
    %4661 = vmatprep.subr.bf16.mxu0 %v4602
    %4662 = vmatpush1.bf16.msra.mxu0 %v4601
    %4663 = vmatprep.subr.bf16.mxu0 %v4606
    %4664 = vmatpush1.bf16.msra.mxu0 %v4605
    %4665 = vmatprep.subr.bf16.mxu0 %v4610
    %4666 = vmatpush1.bf16.msra.mxu0 %v4609
    %4667 = vmatprep.subr.bf16.mxu0 %v4614
    %4668 = vmatpush1.bf16.msra.mxu0 %v4613
    %4669 = vmatprep.subr.bf16.mxu0 %v4618
    %4670 = vmatpush1.bf16.msra.mxu0 %v4617
    %4671 = vmatprep.subr.bf16.mxu0 %v4622
    %4672 = vmatpush1.bf16.msra.mxu0 %v4621
    %4673 = vmatprep.subr.bf16.mxu0 0
    %4674 = vmatpush1.bf16.msra.mxu0 0
    %4675 = vmatprep.subr.bf16.mxu0 0
    %4676 = vmatpush1.bf16.msra.mxu0 0
    %4677 = vmatprep.subr.bf16.mxu0 0
    %4678 = vmatpush1.bf16.msra.mxu0 0
    %4679 = vmatprep.subr.bf16.mxu0 0
    %4680 = vmatpush1.bf16.msra.mxu0 0
    %4681 = vmatprep.subr.bf16.mxu0 0
    %4682 = vmatpush1.bf16.msra.mxu0 0
    %4683 = vmatprep.subr.bf16.mxu0 0
    %4684 = vmatpush1.bf16.msra.mxu0 0
    %4685 = vmatprep.subr.bf16.mxu0 0
    %4686 = vmatpush1.bf16.msra.mxu0 0
    %4687 = vmatprep.subr.bf16.mxu0 0
    %4688 = vmatpush1.bf16.msra.mxu0 0
    %4689 = vmatprep.mubr.bf16.mxu0 0
    %4690 = vmatmul.mubr.bf16.gmra.mrb[0].mxu0 %v4495
    %v4691 = vpop.f32.mrb[0].mxu0
    %v4692 = vadd.f32 0.0, %v4691
    %v4693 = vpop.f32.mrb[0].mxu0
    %v4694 = vadd.f32 0.0, %v4693
    %v4695 = vpop.f32.mrb[0].mxu0
    %v4696 = vpop.f32.mrb[0].mxu0
    %4697 = vdwg.mxu0
    %4698 = vmatprep.subr.bf16.mxu0 %v4596
    %4699 = vmatpush1.bf16.msra.mxu0 %v4595
    %4700 = vmatprep.subr.bf16.mxu0 %v4600
    %4701 = vmatpush1.bf16.msra.mxu0 %v4599
    %4702 = vmatprep.subr.bf16.mxu0 %v4604
    %4703 = vmatpush1.bf16.msra.mxu0 %v4603
    %4704 = vmatprep.subr.bf16.mxu0 %v4608
    %4705 = vmatpush1.bf16.msra.mxu0 %v4607
    %4706 = vmatprep.subr.bf16.mxu0 %v4612
    %4707 = vmatpush1.bf16.msra.mxu0 %v4611
    %4708 = vmatprep.subr.bf16.mxu0 %v4616
    %4709 = vmatpush1.bf16.msra.mxu0 %v4615
    %4710 = vmatprep.subr.bf16.mxu0 %v4620
    %4711 = vmatpush1.bf16.msra.mxu0 %v4619
    %4712 = vmatprep.subr.bf16.mxu0 %v4624
    %4713 = vmatpush1.bf16.msra.mxu0 %v4623
    %4714 = vmatprep.subr.bf16.mxu0 0
    %4715 = vmatpush1.bf16.msra.mxu0 0
    %4716 = vmatprep.subr.bf16.mxu0 0
    %4717 = vmatpush1.bf16.msra.mxu0 0
    %4718 = vmatprep.subr.bf16.mxu0 0
    %4719 = vmatpush1.bf16.msra.mxu0 0
    %4720 = vmatprep.subr.bf16.mxu0 0
    %4721 = vmatpush1.bf16.msra.mxu0 0
    %4722 = vmatprep.subr.bf16.mxu0 0
    %4723 = vmatpush1.bf16.msra.mxu0 0
    %4724 = vmatprep.subr.bf16.mxu0 0
    %4725 = vmatpush1.bf16.msra.mxu0 0
    %4726 = vmatprep.subr.bf16.mxu0 0
    %4727 = vmatpush1.bf16.msra.mxu0 0
    %4728 = vmatprep.subr.bf16.mxu0 0
    %4729 = vmatpush1.bf16.msra.mxu0 0
    %4730 = vmatprep.mubr.bf16.mxu0 0
    %4731 = vmatmul.mubr.bf16.gmra.mrb[0].mxu0 %v4495
    %v4732 = vpop.f32.mrb[0].mxu0
    %v4733 = vadd.f32 0.0, %v4732
    %v4734 = vpop.f32.mrb[0].mxu0
    %v4735 = vadd.f32 0.0, %v4734
    %v4736 = vpop.f32.mrb[0].mxu0
    %v4737 = vpop.f32.mrb[0].mxu0
    %4738 = vdwg.mxu0
    %v4743 = vcombine.low %v4692, %v4694
    %v4744 = vcombine.high %v4692, %v4694
    %v4745 = vcombine.low %v4733, %v4735
    %v4746 = vcombine.high %v4733, %v4735
    %v4748 = vunpack.c.l.s4 1966171168
    %v4749 = vunpack.c.0.s8 %v4748
    %v4750 = vlaneseq
    %v4751 = vshrl.u32 %v4750, 7
    %v4752 = vsub.s32 %v4749, %v4751
    %v4753 = vrot.slane %v4743, %v4752
    %v4755 = vunpack.c.l.s4 1966171168
    %v4756 = vunpack.c.0.s8 %v4755
    %v4757 = vlaneseq
    %v4758 = vshrl.u32 %v4757, 7
    %v4759 = vsub.s32 %v4756, %v4758
    %v4760 = vrot.slane %v4744, %v4759
    %v4762 = vunpack.c.l.s4 1966171168
    %v4763 = vunpack.c.0.s8 %v4762
    %v4764 = vlaneseq
    %v4765 = vshrl.u32 %v4764, 7
    %v4766 = vsub.s32 %v4763, %v4765
    %v4767 = vrot.slane %v4745, %v4766
    %v4769 = vunpack.c.l.s4 1966171168
    %v4770 = vunpack.c.0.s8 %v4769
    %v4771 = vlaneseq
    %v4772 = vshrl.u32 %v4771, 7
    %v4773 = vsub.s32 %v4770, %v4772
    %v4774 = vrot.slane %v4746, %v4773
    %v4775 = vcombine.low %v4753, %v4767
    %v4776 = vcombine.high %v4753, %v4767
    %v4777 = vcombine.low %v4760, %v4774
    %v4778 = vcombine.high %v4760, %v4774
    %v4780 = vunpack.c.l.s4 1966171168
    %v4781 = vunpack.c.0.s8 %v4780
    %v4782 = vlaneseq
    %v4783 = vshrl.u32 %v4782, 7
    %v4784 = vsub.s32 %v4781, %v4783
    %v4785 = vrot.slane %v4775, %v4784
    %v4787 = vunpack.c.l.s4 1966171168
    %v4788 = vunpack.c.0.s8 %v4787
    %v4789 = vlaneseq
    %v4790 = vshrl.u32 %v4789, 7
    %v4791 = vsub.s32 %v4788, %v4790
    %v4792 = vrot.slane %v4777, %v4791
    %v4794 = vunpack.c.l.s4 1966171168
    %v4795 = vunpack.c.0.s8 %v4794
    %v4796 = vlaneseq
    %v4797 = vshrl.u32 %v4796, 7
    %v4798 = vsub.s32 %v4795, %v4797
    %v4799 = vrot.slane %v4776, %v4798
    %v4801 = vunpack.c.l.s4 1966171168
    %v4802 = vunpack.c.0.s8 %v4801
    %v4803 = vlaneseq
    %v4804 = vshrl.u32 %v4803, 7
    %v4805 = vsub.s32 %v4802, %v4804
    %v4806 = vrot.slane %v4778, %v4805
    %v4807 = vcombine.high %v4785, %v4785
    %v4808 = vcombine.high %v4792, %v4792
    %v4809 = vcombine.high %v4799, %v4799
    %v4810 = vcombine.high %v4806, %v4806
    %v4819 = vadd.f32 %v4418, %v4785
    %v4820 = vadd.f32 %v4420, %v4799
    %v4821 = vadd.f32 %v4422, %v4807
    %v4822 = vadd.f32 %v4424, %v4809
    %v4823 = vadd.f32 %v4426, %v4792
    %v4824 = vadd.f32 %v4428, %v4806
    %v4825 = vadd.f32 %v4430, %v4808
    %v4826 = vadd.f32 %v4432, %v4810
    %v4827 = vxor.u32 %v4819, 2147483648
    %v4828 = vxor.u32 %v4820, 2147483648
    %v4829 = vxor.u32 %v4821, 2147483648
    %v4830 = vxor.u32 %v4822, 2147483648
    %v4831 = vxor.u32 %v4823, 2147483648
    %v4832 = vxor.u32 %v4824, 2147483648
    %v4833 = vxor.u32 %v4825, 2147483648
    %v4834 = vxor.u32 %v4826, 2147483648
    %v4835 = vmul.f32 %v4827, 1.442695
    %v4836 = vpow.pop %v4835
    %v4837 = vmul.f32 %v4828, 1.442695
    %v4838 = vpow.pop %v4837
    %v4839 = vmul.f32 %v4829, 1.442695
    %v4840 = vpow.pop %v4839
    %v4841 = vmul.f32 %v4830, 1.442695
    %v4842 = vpow.pop %v4841
    %v4843 = vmul.f32 %v4831, 1.442695
    %v4844 = vpow.pop %v4843
    %v4845 = vmul.f32 %v4832, 1.442695
    %v4846 = vpow.pop %v4845
    %v4847 = vmul.f32 %v4833, 1.442695
    %v4848 = vpow.pop %v4847
    %v4849 = vmul.f32 %v4834, 1.442695
    %v4850 = vpow.pop %v4849
    %v4851 = vadd.f32 %v4836, 1.0
    %v4852 = vadd.f32 %v4838, 1.0
    %v4853 = vadd.f32 %v4840, 1.0
    %v4854 = vadd.f32 %v4842, 1.0
    %v4855 = vadd.f32 %v4844, 1.0
    %v4856 = vadd.f32 %v4846, 1.0
    %v4857 = vadd.f32 %v4848, 1.0
    %v4858 = vadd.f32 %v4850, 1.0
    %v4859 = vrcp.pop %v4851
    %v4860 = vmul.f32 1.0, %v4859
    %v4861 = vrcp.pop %v4852
    %v4862 = vmul.f32 1.0, %v4861
    %v4863 = vrcp.pop %v4853
    %v4864 = vmul.f32 1.0, %v4863
    %v4865 = vrcp.pop %v4854
    %v4866 = vmul.f32 1.0, %v4865
    %v4867 = vrcp.pop %v4855
    %v4868 = vmul.f32 1.0, %v4867
    %v4869 = vrcp.pop %v4856
    %v4870 = vmul.f32 1.0, %v4869
    %v4871 = vrcp.pop %v4857
    %v4872 = vmul.f32 1.0, %v4871
    %v4873 = vrcp.pop %v4858
    %v4874 = vmul.f32 1.0, %v4873
    %v4883 = vrot.slane %v4819, 1
    %v4884 = vrot.slane %v4820, 1
    %v4885 = vrot.slane %v4821, 1
    %v4886 = vrot.slane %v4822, 1
    %v4887 = vrot.slane %v4823, 1
    %v4888 = vrot.slane %v4824, 1
    %v4889 = vrot.slane %v4825, 1
    %v4890 = vrot.slane %v4826, 1
    %v4899 = vxor.u32 %v4883, 2147483648
    %v4900 = vxor.u32 %v4884, 2147483648
    %v4901 = vxor.u32 %v4885, 2147483648
    %v4902 = vxor.u32 %v4886, 2147483648
    %v4903 = vxor.u32 %v4887, 2147483648
    %v4904 = vxor.u32 %v4888, 2147483648
    %v4905 = vxor.u32 %v4889, 2147483648
    %v4906 = vxor.u32 %v4890, 2147483648
    %v4907 = vmul.f32 %v4899, 1.442695
    %v4908 = vpow.pop %v4907
    %v4909 = vmul.f32 %v4900, 1.442695
    %v4910 = vpow.pop %v4909
    %v4911 = vmul.f32 %v4901, 1.442695
    %v4912 = vpow.pop %v4911
    %v4913 = vmul.f32 %v4902, 1.442695
    %v4914 = vpow.pop %v4913
    %v4915 = vmul.f32 %v4903, 1.442695
    %v4916 = vpow.pop %v4915
    %v4917 = vmul.f32 %v4904, 1.442695
    %v4918 = vpow.pop %v4917
    %v4919 = vmul.f32 %v4905, 1.442695
    %v4920 = vpow.pop %v4919
    %v4921 = vmul.f32 %v4906, 1.442695
    %v4922 = vpow.pop %v4921
    %v4923 = vadd.f32 %v4908, 1.0
    %v4924 = vadd.f32 %v4910, 1.0
    %v4925 = vadd.f32 %v4912, 1.0
    %v4926 = vadd.f32 %v4914, 1.0
    %v4927 = vadd.f32 %v4916, 1.0
    %v4928 = vadd.f32 %v4918, 1.0
    %v4929 = vadd.f32 %v4920, 1.0
    %v4930 = vadd.f32 %v4922, 1.0
    %v4931 = vrcp.pop %v4923
    %v4932 = vmul.f32 1.0, %v4931
    %v4933 = vrcp.pop %v4924
    %v4934 = vmul.f32 1.0, %v4933
    %v4935 = vrcp.pop %v4925
    %v4936 = vmul.f32 1.0, %v4935
    %v4937 = vrcp.pop %v4926
    %v4938 = vmul.f32 1.0, %v4937
    %v4939 = vrcp.pop %v4927
    %v4940 = vmul.f32 1.0, %v4939
    %v4941 = vrcp.pop %v4928
    %v4942 = vmul.f32 1.0, %v4941
    %v4943 = vrcp.pop %v4929
    %v4944 = vmul.f32 1.0, %v4943
    %v4945 = vrcp.pop %v4930
    %v4946 = vmul.f32 1.0, %v4945
    %v4947 = vrot.slane %v4819, 2
    %v4948 = vrot.slane %v4820, 2
    %v4949 = vrot.slane %v4821, 2
    %v4950 = vrot.slane %v4822, 2
    %v4951 = vrot.slane %v4823, 2
    %v4952 = vrot.slane %v4824, 2
    %v4953 = vrot.slane %v4825, 2
    %v4954 = vrot.slane %v4826, 2
    %v4963 = vtanh.pop %v4947
    %v4964 = vtanh.pop %v4948
    %v4965 = vtanh.pop %v4949
    %v4966 = vtanh.pop %v4950
    %v4967 = vtanh.pop %v4951
    %v4968 = vtanh.pop %v4952
    %v4969 = vtanh.pop %v4953
    %v4970 = vtanh.pop %v4954
    %v4971 = vrot.slane %v4819, 3
    %v4972 = vrot.slane %v4820, 3
    %v4973 = vrot.slane %v4821, 3
    %v4974 = vrot.slane %v4822, 3
    %v4975 = vrot.slane %v4823, 3
    %v4976 = vrot.slane %v4824, 3
    %v4977 = vrot.slane %v4825, 3
    %v4978 = vrot.slane %v4826, 3
    %v4987 = vxor.u32 %v4971, 2147483648
    %v4988 = vxor.u32 %v4972, 2147483648
    %v4989 = vxor.u32 %v4973, 2147483648
    %v4990 = vxor.u32 %v4974, 2147483648
    %v4991 = vxor.u32 %v4975, 2147483648
    %v4992 = vxor.u32 %v4976, 2147483648
    %v4993 = vxor.u32 %v4977, 2147483648
    %v4994 = vxor.u32 %v4978, 2147483648
    %v4995 = vmul.f32 %v4987, 1.442695
    %v4996 = vpow.pop %v4995
    %v4997 = vmul.f32 %v4988, 1.442695
    %v4998 = vpow.pop %v4997
    %v4999 = vmul.f32 %v4989, 1.442695
    %v5000 = vpow.pop %v4999
    %v5001 = vmul.f32 %v4990, 1.442695
    %v5002 = vpow.pop %v5001
    %v5003 = vmul.f32 %v4991, 1.442695
    %v5004 = vpow.pop %v5003
    %v5005 = vmul.f32 %v4992, 1.442695
    %v5006 = vpow.pop %v5005
    %v5007 = vmul.f32 %v4993, 1.442695
    %v5008 = vpow.pop %v5007
    %v5009 = vmul.f32 %v4994, 1.442695
    %v5010 = vpow.pop %v5009
    %v5011 = vadd.f32 %v4996, 1.0
    %v5012 = vadd.f32 %v4998, 1.0
    %v5013 = vadd.f32 %v5000, 1.0
    %v5014 = vadd.f32 %v5002, 1.0
    %v5015 = vadd.f32 %v5004, 1.0
    %v5016 = vadd.f32 %v5006, 1.0
    %v5017 = vadd.f32 %v5008, 1.0
    %v5018 = vadd.f32 %v5010, 1.0
    %v5019 = vrcp.pop %v5011
    %v5020 = vmul.f32 1.0, %v5019
    %v5021 = vrcp.pop %v5012
    %v5022 = vmul.f32 1.0, %v5021
    %v5023 = vrcp.pop %v5013
    %v5024 = vmul.f32 1.0, %v5023
    %v5025 = vrcp.pop %v5014
    %v5026 = vmul.f32 1.0, %v5025
    %v5027 = vrcp.pop %v5015
    %v5028 = vmul.f32 1.0, %v5027
    %v5029 = vrcp.pop %v5016
    %v5030 = vmul.f32 1.0, %v5029
    %v5031 = vrcp.pop %v5017
    %v5032 = vmul.f32 1.0, %v5031
    %v5033 = vrcp.pop %v5018
    %v5034 = vmul.f32 1.0, %v5033
    %v5035 = vmul.f32 %v4932, %v4377
    %v5036 = vmul.f32 %v4934, %v4378
    %v5037 = vmul.f32 %v4936, %v4379
    %v5038 = vmul.f32 %v4938, %v4380
    %v5039 = vmul.f32 %v4940, %v4381
    %v5040 = vmul.f32 %v4942, %v4382
    %v5041 = vmul.f32 %v4944, %v4383
    %v5042 = vmul.f32 %v4946, %v4384
    %v5043 = vmul.f32 %v4860, %v4963
    %v5044 = vmul.f32 %v4862, %v4964
    %v5045 = vmul.f32 %v4864, %v4965
    %v5046 = vmul.f32 %v4866, %v4966
    %v5047 = vmul.f32 %v4868, %v4967
    %v5048 = vmul.f32 %v4870, %v4968
    %v5049 = vmul.f32 %v4872, %v4969
    %v5050 = vmul.f32 %v4874, %v4970
    %v5051 = vadd.f32 %v5035, %v5043
    %v5052 = vadd.f32 %v5036, %v5044
    %v5053 = vadd.f32 %v5037, %v5045
    %v5054 = vadd.f32 %v5038, %v5046
    %v5055 = vadd.f32 %v5039, %v5047
    %v5056 = vadd.f32 %v5040, %v5048
    %v5057 = vadd.f32 %v5041, %v5049
    %v5058 = vadd.f32 %v5042, %v5050
    %v5059 = vtanh.pop %v5051
    %v5060 = vtanh.pop %v5052
    %v5061 = vtanh.pop %v5053
    %v5062 = vtanh.pop %v5054
    %v5063 = vtanh.pop %v5055
    %v5064 = vtanh.pop %v5056
    %v5065 = vtanh.pop %v5057
    %v5066 = vtanh.pop %v5058
    %v5067 = vmul.f32 %v5020, %v5059
    %v5068 = vmul.f32 %v5022, %v5060
    %v5069 = vmul.f32 %v5024, %v5061
    %v5070 = vmul.f32 %v5026, %v5062
    %v5071 = vmul.f32 %v5028, %v5063
    %v5072 = vmul.f32 %v5030, %v5064
    %v5073 = vmul.f32 %v5032, %v5065
    %v5074 = vmul.f32 %v5034, %v5066
    %5075 = vst [vmem:[#allocation5 + $0x6] sm:$0x1] %v5067
    %5076 = vst [vmem:[#allocation5 + $0xe] sm:$0x1] %v5068
    %5077 = vst [vmem:[#allocation5 + $0x16] sm:$0x1] %v5069
    %5078 = vst [vmem:[#allocation5 + $0x1e] sm:$0x1] %v5070
    %5079 = vst [vmem:[#allocation5 + $0x26] sm:$0x1] %v5071
    %5080 = vst [vmem:[#allocation5 + $0x2e] sm:$0x1] %v5072
    %5081 = vst [vmem:[#allocation5 + $0x36] sm:$0x1] %v5073
    %5082 = vst [vmem:[#allocation5 + $0x3e] sm:$0x1] %v5074
    %v5083 = vpack.c.bf16 %v5067, %v5067
    %v5084 = vpack.c.bf16 %v5068, %v5068
    %v5085 = vpack.c.bf16 %v5069, %v5069
    %v5086 = vpack.c.bf16 %v5070, %v5070
    %v5087 = vpack.c.bf16 %v5071, %v5071
    %v5088 = vpack.c.bf16 %v5072, %v5072
    %v5089 = vpack.c.bf16 %v5073, %v5073
    %v5090 = vpack.c.bf16 %v5074, %v5074
    %s5091 = scalar_lea.vmem [#allocation4], 7
    %v5092 = vld [vmem:[%s5091] ss:$8 sm:$0xf]
    %s5093 = scalar_lea.vmem [#allocation4], 39
    %v5094 = vld [vmem:[%s5093] ss:$8 sm:$0xf]
    %s5095 = scalar_lea.vmem [#allocation4], 71
    %v5096 = vld [vmem:[%s5095] ss:$8 sm:$0xf]
    %s5097 = scalar_lea.vmem [#allocation4], 103
    %v5098 = vld [vmem:[%s5097] ss:$8 sm:$0xf]
    %s5099 = scalar_lea.vmem [#allocation4], 135
    %v5100 = vld [vmem:[%s5099] ss:$8 sm:$0xf]
    %s5101 = scalar_lea.vmem [#allocation4], 167
    %v5102 = vld [vmem:[%s5101] ss:$8 sm:$0xf]
    %s5103 = scalar_lea.vmem [#allocation4], 199
    %v5104 = vld [vmem:[%s5103] ss:$8 sm:$0xf]
    %s5105 = scalar_lea.vmem [#allocation4], 231
    %v5106 = vld [vmem:[%s5105] ss:$8 sm:$0xf]
    %v5107 = vld [vmem:[#allocation11] sm:$0xff]
    %v5108 = vld [vmem:[#allocation11 + $0x8] sm:$0xff]
    %v5109 = vld [vmem:[#allocation11 + $0x10] sm:$0xff]
    %v5110 = vld [vmem:[#allocation11 + $0x18] sm:$0xff]
    %v5111 = vld [vmem:[#allocation11 + $0x20] sm:$0xff]
    %v5112 = vld [vmem:[#allocation11 + $0x28] sm:$0xff]
    %v5113 = vld [vmem:[#allocation11 + $0x30] sm:$0xff]
    %v5114 = vld [vmem:[#allocation11 + $0x38] sm:$0xff]
    %v5115 = vld [vmem:[#allocation11 + $0x40] sm:$0xff]
    %v5116 = vld [vmem:[#allocation11 + $0x48] sm:$0xff]
    %v5117 = vld [vmem:[#allocation11 + $0x50] sm:$0xff]
    %v5118 = vld [vmem:[#allocation11 + $0x58] sm:$0xff]
    %v5119 = vld [vmem:[#allocation11 + $0x60] sm:$0xff]
    %v5120 = vld [vmem:[#allocation11 + $0x68] sm:$0xff]
    %v5121 = vld [vmem:[#allocation11 + $0x70] sm:$0xff]
    %v5122 = vld [vmem:[#allocation11 + $0x78] sm:$0xff]
    %v5123 = vld [vmem:[#allocation11 + $0x80] sm:$0xff]
    %v5124 = vld [vmem:[#allocation11 + $0x88] sm:$0xff]
    %v5125 = vld [vmem:[#allocation11 + $0x90] sm:$0xff]
    %v5126 = vld [vmem:[#allocation11 + $0x98] sm:$0xff]
    %v5127 = vld [vmem:[#allocation11 + $0xa0] sm:$0xff]
    %v5128 = vld [vmem:[#allocation11 + $0xa8] sm:$0xff]
    %v5129 = vld [vmem:[#allocation11 + $0xb0] sm:$0xff]
    %v5130 = vld [vmem:[#allocation11 + $0xb8] sm:$0xff]
    %v5131 = vld [vmem:[#allocation11 + $0xc0] sm:$0xff]
    %v5132 = vld [vmem:[#allocation11 + $0xc8] sm:$0xff]
    %v5133 = vld [vmem:[#allocation11 + $0xd0] sm:$0xff]
    %v5134 = vld [vmem:[#allocation11 + $0xd8] sm:$0xff]
    %v5135 = vld [vmem:[#allocation11 + $0xe0] sm:$0xff]
    %v5136 = vld [vmem:[#allocation11 + $0xe8] sm:$0xff]
    %v5137 = vld [vmem:[#allocation11 + $0xf0] sm:$0xff]
    %v5138 = vld [vmem:[#allocation11 + $0xf8] sm:$0xff]
    %v5147 = vunpack.c.l.b16 %v5083
    %v5148 = vunpack.c.l.b16 %v5084
    %v5149 = vunpack.c.l.b16 %v5085
    %v5150 = vunpack.c.l.b16 %v5086
    %v5151 = vunpack.c.l.b16 %v5087
    %v5152 = vunpack.c.l.b16 %v5088
    %v5153 = vunpack.c.l.b16 %v5089
    %v5154 = vunpack.c.l.b16 %v5090
    %v5155 = vrot.slane %v5148, 7
    %v5156 = vsel %vm1105, %v5155, %v5147
    %v5157 = vrot.slane %v5149, 6
    %v5158 = vsel %vm1108, %v5157, %v5156
    %v5159 = vrot.slane %v5150, 5
    %v5160 = vsel %vm1111, %v5159, %v5158
    %v5161 = vrot.slane %v5151, 4
    %v5162 = vsel %vm1114, %v5161, %v5160
    %v5163 = vrot.slane %v5152, 3
    %v5164 = vsel %vm1117, %v5163, %v5162
    %v5165 = vrot.slane %v5153, 2
    %v5166 = vsel %vm1120, %v5165, %v5164
    %v5167 = vrot.slane %v5154, 1
    %v5168 = vsel %vm1123, %v5167, %v5166
    %v5169 = vpack.c.b16 %v5168, %v5168
    %v5203 = vunpack.c.l.b16 %v5107
    %v5204 = vunpack.c.h.b16 %v5107
    %v5205 = vunpack.c.l.b16 %v5108
    %v5206 = vunpack.c.h.b16 %v5108
    %v5207 = vunpack.c.l.b16 %v5109
    %v5208 = vunpack.c.h.b16 %v5109
    %v5209 = vunpack.c.l.b16 %v5110
    %v5210 = vunpack.c.h.b16 %v5110
    %v5211 = vunpack.c.l.b16 %v5111
    %v5212 = vunpack.c.h.b16 %v5111
    %v5213 = vunpack.c.l.b16 %v5112
    %v5214 = vunpack.c.h.b16 %v5112
    %v5215 = vunpack.c.l.b16 %v5113
    %v5216 = vunpack.c.h.b16 %v5113
    %v5217 = vunpack.c.l.b16 %v5114
    %v5218 = vunpack.c.h.b16 %v5114
    %v5219 = vunpack.c.l.b16 %v5115
    %v5220 = vunpack.c.h.b16 %v5115
    %v5221 = vunpack.c.l.b16 %v5116
    %v5222 = vunpack.c.h.b16 %v5116
    %v5223 = vunpack.c.l.b16 %v5117
    %v5224 = vunpack.c.h.b16 %v5117
    %v5225 = vunpack.c.l.b16 %v5118
    %v5226 = vunpack.c.h.b16 %v5118
    %v5227 = vunpack.c.l.b16 %v5119
    %v5228 = vunpack.c.h.b16 %v5119
    %v5229 = vunpack.c.l.b16 %v5120
    %v5230 = vunpack.c.h.b16 %v5120
    %v5231 = vunpack.c.l.b16 %v5121
    %v5232 = vunpack.c.h.b16 %v5121
    %v5233 = vunpack.c.l.b16 %v5122
    %v5234 = vunpack.c.h.b16 %v5122
    %v5235 = vunpack.c.l.b16 %v5123
    %v5236 = vunpack.c.h.b16 %v5123
    %v5237 = vunpack.c.l.b16 %v5124
    %v5238 = vunpack.c.h.b16 %v5124
    %v5239 = vunpack.c.l.b16 %v5125
    %v5240 = vunpack.c.h.b16 %v5125
    %v5241 = vunpack.c.l.b16 %v5126
    %v5242 = vunpack.c.h.b16 %v5126
    %v5243 = vunpack.c.l.b16 %v5127
    %v5244 = vunpack.c.h.b16 %v5127
    %v5245 = vunpack.c.l.b16 %v5128
    %v5246 = vunpack.c.h.b16 %v5128
    %v5247 = vunpack.c.l.b16 %v5129
    %v5248 = vunpack.c.h.b16 %v5129
    %v5249 = vunpack.c.l.b16 %v5130
    %v5250 = vunpack.c.h.b16 %v5130
    %v5251 = vunpack.c.l.b16 %v5131
    %v5252 = vunpack.c.h.b16 %v5131
    %v5253 = vunpack.c.l.b16 %v5132
    %v5254 = vunpack.c.h.b16 %v5132
    %v5255 = vunpack.c.l.b16 %v5133
    %v5256 = vunpack.c.h.b16 %v5133
    %v5257 = vunpack.c.l.b16 %v5134
    %v5258 = vunpack.c.h.b16 %v5134
    %v5259 = vunpack.c.l.b16 %v5135
    %v5260 = vunpack.c.h.b16 %v5135
    %v5261 = vunpack.c.l.b16 %v5136
    %v5262 = vunpack.c.h.b16 %v5136
    %v5263 = vunpack.c.l.b16 %v5137
    %v5264 = vunpack.c.h.b16 %v5137
    %v5265 = vunpack.c.l.b16 %v5138
    %v5266 = vunpack.c.h.b16 %v5138
    %v5267 = vpack.c.b16 %v5207, %v5203
    %v5268 = vpack.c.b16 %v5208, %v5204
    %v5269 = vpack.c.b16 %v5209, %v5205
    %v5270 = vpack.c.b16 %v5210, %v5206
    %v5271 = vpack.c.b16 %v5215, %v5211
    %v5272 = vpack.c.b16 %v5216, %v5212
    %v5273 = vpack.c.b16 %v5217, %v5213
    %v5274 = vpack.c.b16 %v5218, %v5214
    %v5275 = vpack.c.b16 %v5223, %v5219
    %v5276 = vpack.c.b16 %v5224, %v5220
    %v5277 = vpack.c.b16 %v5225, %v5221
    %v5278 = vpack.c.b16 %v5226, %v5222
    %v5279 = vpack.c.b16 %v5231, %v5227
    %v5280 = vpack.c.b16 %v5232, %v5228
    %v5281 = vpack.c.b16 %v5233, %v5229
    %v5282 = vpack.c.b16 %v5234, %v5230
    %v5283 = vpack.c.b16 %v5239, %v5235
    %v5284 = vpack.c.b16 %v5240, %v5236
    %v5285 = vpack.c.b16 %v5241, %v5237
    %v5286 = vpack.c.b16 %v5242, %v5238
    %v5287 = vpack.c.b16 %v5247, %v5243
    %v5288 = vpack.c.b16 %v5248, %v5244
    %v5289 = vpack.c.b16 %v5249, %v5245
    %v5290 = vpack.c.b16 %v5250, %v5246
    %v5291 = vpack.c.b16 %v5255, %v5251
    %v5292 = vpack.c.b16 %v5256, %v5252
    %v5293 = vpack.c.b16 %v5257, %v5253
    %v5294 = vpack.c.b16 %v5258, %v5254
    %v5295 = vpack.c.b16 %v5263, %v5259
    %v5296 = vpack.c.b16 %v5264, %v5260
    %v5297 = vpack.c.b16 %v5265, %v5261
    %v5298 = vpack.c.b16 %v5266, %v5262
    %5331 = vmatprep.subr.bf16.mxu0 %v5268
    %5332 = vmatpush1.bf16.msra.mxu0 %v5267
    %5333 = vmatprep.subr.bf16.mxu0 %v5272
    %5334 = vmatpush1.bf16.msra.mxu0 %v5271
    %5335 = vmatprep.subr.bf16.mxu0 %v5276
    %5336 = vmatpush1.bf16.msra.mxu0 %v5275
    %5337 = vmatprep.subr.bf16.mxu0 %v5280
    %5338 = vmatpush1.bf16.msra.mxu0 %v5279
    %5339 = vmatprep.subr.bf16.mxu0 %v5284
    %5340 = vmatpush1.bf16.msra.mxu0 %v5283
    %5341 = vmatprep.subr.bf16.mxu0 %v5288
    %5342 = vmatpush1.bf16.msra.mxu0 %v5287
    %5343 = vmatprep.subr.bf16.mxu0 %v5292
    %5344 = vmatpush1.bf16.msra.mxu0 %v5291
    %5345 = vmatprep.subr.bf16.mxu0 %v5296
    %5346 = vmatpush1.bf16.msra.mxu0 %v5295
    %5347 = vmatprep.subr.bf16.mxu0 0
    %5348 = vmatpush1.bf16.msra.mxu0 0
    %5349 = vmatprep.subr.bf16.mxu0 0
    %5350 = vmatpush1.bf16.msra.mxu0 0
    %5351 = vmatprep.subr.bf16.mxu0 0
    %5352 = vmatpush1.bf16.msra.mxu0 0
    %5353 = vmatprep.subr.bf16.mxu0 0
    %5354 = vmatpush1.bf16.msra.mxu0 0
    %5355 = vmatprep.subr.bf16.mxu0 0
    %5356 = vmatpush1.bf16.msra.mxu0 0
    %5357 = vmatprep.subr.bf16.mxu0 0
    %5358 = vmatpush1.bf16.msra.mxu0 0
    %5359 = vmatprep.subr.bf16.mxu0 0
    %5360 = vmatpush1.bf16.msra.mxu0 0
    %5361 = vmatprep.subr.bf16.mxu0 0
    %5362 = vmatpush1.bf16.msra.mxu0 0
    %5363 = vmatprep.mubr.bf16.mxu0 0
    %5364 = vmatmul.mubr.bf16.gmra.mrb[0].mxu0 %v5169
    %v5365 = vpop.f32.mrb[0].mxu0
    %v5366 = vadd.f32 0.0, %v5365
    %v5367 = vpop.f32.mrb[0].mxu0
    %v5368 = vadd.f32 0.0, %v5367
    %v5369 = vpop.f32.mrb[0].mxu0
    %v5370 = vpop.f32.mrb[0].mxu0
    %5371 = vdwg.mxu0
    %5372 = vmatprep.subr.bf16.mxu0 %v5270
    %5373 = vmatpush1.bf16.msra.mxu0 %v5269
    %5374 = vmatprep.subr.bf16.mxu0 %v5274
    %5375 = vmatpush1.bf16.msra.mxu0 %v5273
    %5376 = vmatprep.subr.bf16.mxu0 %v5278
    %5377 = vmatpush1.bf16.msra.mxu0 %v5277
    %5378 = vmatprep.subr.bf16.mxu0 %v5282
    %5379 = vmatpush1.bf16.msra.mxu0 %v5281
    %5380 = vmatprep.subr.bf16.mxu0 %v5286
    %5381 = vmatpush1.bf16.msra.mxu0 %v5285
    %5382 = vmatprep.subr.bf16.mxu0 %v5290
    %5383 = vmatpush1.bf16.msra.mxu0 %v5289
    %5384 = vmatprep.subr.bf16.mxu0 %v5294
    %5385 = vmatpush1.bf16.msra.mxu0 %v5293
    %5386 = vmatprep.subr.bf16.mxu0 %v5298
    %5387 = vmatpush1.bf16.msra.mxu0 %v5297
    %5388 = vmatprep.subr.bf16.mxu0 0
    %5389 = vmatpush1.bf16.msra.mxu0 0
    %5390 = vmatprep.subr.bf16.mxu0 0
    %5391 = vmatpush1.bf16.msra.mxu0 0
    %5392 = vmatprep.subr.bf16.mxu0 0
    %5393 = vmatpush1.bf16.msra.mxu0 0
    %5394 = vmatprep.subr.bf16.mxu0 0
    %5395 = vmatpush1.bf16.msra.mxu0 0
    %5396 = vmatprep.subr.bf16.mxu0 0
    %5397 = vmatpush1.bf16.msra.mxu0 0
    %5398 = vmatprep.subr.bf16.mxu0 0
    %5399 = vmatpush1.bf16.msra.mxu0 0
    %5400 = vmatprep.subr.bf16.mxu0 0
    %5401 = vmatpush1.bf16.msra.mxu0 0
    %5402 = vmatprep.subr.bf16.mxu0 0
    %5403 = vmatpush1.bf16.msra.mxu0 0
    %5404 = vmatprep.mubr.bf16.mxu0 0
    %5405 = vmatmul.mubr.bf16.gmra.mrb[0].mxu0 %v5169
    %v5406 = vpop.f32.mrb[0].mxu0
    %v5407 = vadd.f32 0.0, %v5406
    %v5408 = vpop.f32.mrb[0].mxu0
    %v5409 = vadd.f32 0.0, %v5408
    %v5410 = vpop.f32.mrb[0].mxu0
    %v5411 = vpop.f32.mrb[0].mxu0
    %5412 = vdwg.mxu0
    %v5417 = vcombine.low %v5366, %v5368
    %v5418 = vcombine.high %v5366, %v5368
    %v5419 = vcombine.low %v5407, %v5409
    %v5420 = vcombine.high %v5407, %v5409
    %v5422 = vunpack.c.l.s4 1966171168
    %v5423 = vunpack.c.0.s8 %v5422
    %v5424 = vlaneseq
    %v5425 = vshrl.u32 %v5424, 7
    %v5426 = vsub.s32 %v5423, %v5425
    %v5427 = vrot.slane %v5417, %v5426
    %v5429 = vunpack.c.l.s4 1966171168
    %v5430 = vunpack.c.0.s8 %v5429
    %v5431 = vlaneseq
    %v5432 = vshrl.u32 %v5431, 7
    %v5433 = vsub.s32 %v5430, %v5432
    %v5434 = vrot.slane %v5418, %v5433
    %v5436 = vunpack.c.l.s4 1966171168
    %v5437 = vunpack.c.0.s8 %v5436
    %v5438 = vlaneseq
    %v5439 = vshrl.u32 %v5438, 7
    %v5440 = vsub.s32 %v5437, %v5439
    %v5441 = vrot.slane %v5419, %v5440
    %v5443 = vunpack.c.l.s4 1966171168
    %v5444 = vunpack.c.0.s8 %v5443
    %v5445 = vlaneseq
    %v5446 = vshrl.u32 %v5445, 7
    %v5447 = vsub.s32 %v5444, %v5446
    %v5448 = vrot.slane %v5420, %v5447
    %v5449 = vcombine.low %v5427, %v5441
    %v5450 = vcombine.high %v5427, %v5441
    %v5451 = vcombine.low %v5434, %v5448
    %v5452 = vcombine.high %v5434, %v5448
    %v5454 = vunpack.c.l.s4 1966171168
    %v5455 = vunpack.c.0.s8 %v5454
    %v5456 = vlaneseq
    %v5457 = vshrl.u32 %v5456, 7
    %v5458 = vsub.s32 %v5455, %v5457
    %v5459 = vrot.slane %v5449, %v5458
    %v5461 = vunpack.c.l.s4 1966171168
    %v5462 = vunpack.c.0.s8 %v5461
    %v5463 = vlaneseq
    %v5464 = vshrl.u32 %v5463, 7
    %v5465 = vsub.s32 %v5462, %v5464
    %v5466 = vrot.slane %v5451, %v5465
    %v5468 = vunpack.c.l.s4 1966171168
    %v5469 = vunpack.c.0.s8 %v5468
    %v5470 = vlaneseq
    %v5471 = vshrl.u32 %v5470, 7
    %v5472 = vsub.s32 %v5469, %v5471
    %v5473 = vrot.slane %v5450, %v5472
    %v5475 = vunpack.c.l.s4 1966171168
    %v5476 = vunpack.c.0.s8 %v5475
    %v5477 = vlaneseq
    %v5478 = vshrl.u32 %v5477, 7
    %v5479 = vsub.s32 %v5476, %v5478
    %v5480 = vrot.slane %v5452, %v5479
    %v5481 = vcombine.high %v5459, %v5459
    %v5482 = vcombine.high %v5466, %v5466
    %v5483 = vcombine.high %v5473, %v5473
    %v5484 = vcombine.high %v5480, %v5480
    %v5493 = vadd.f32 %v5092, %v5459
    %v5494 = vadd.f32 %v5094, %v5473
    %v5495 = vadd.f32 %v5096, %v5481
    %v5496 = vadd.f32 %v5098, %v5483
    %v5497 = vadd.f32 %v5100, %v5466
    %v5498 = vadd.f32 %v5102, %v5480
    %v5499 = vadd.f32 %v5104, %v5482
    %v5500 = vadd.f32 %v5106, %v5484
    %v5501 = vxor.u32 %v5493, 2147483648
    %v5502 = vxor.u32 %v5494, 2147483648
    %v5503 = vxor.u32 %v5495, 2147483648
    %v5504 = vxor.u32 %v5496, 2147483648
    %v5505 = vxor.u32 %v5497, 2147483648
    %v5506 = vxor.u32 %v5498, 2147483648
    %v5507 = vxor.u32 %v5499, 2147483648
    %v5508 = vxor.u32 %v5500, 2147483648
    %v5509 = vmul.f32 %v5501, 1.442695
    %v5510 = vpow.pop %v5509
    %v5511 = vmul.f32 %v5502, 1.442695
    %v5512 = vpow.pop %v5511
    %v5513 = vmul.f32 %v5503, 1.442695
    %v5514 = vpow.pop %v5513
    %v5515 = vmul.f32 %v5504, 1.442695
    %v5516 = vpow.pop %v5515
    %v5517 = vmul.f32 %v5505, 1.442695
    %v5518 = vpow.pop %v5517
    %v5519 = vmul.f32 %v5506, 1.442695
    %v5520 = vpow.pop %v5519
    %v5521 = vmul.f32 %v5507, 1.442695
    %v5522 = vpow.pop %v5521
    %v5523 = vmul.f32 %v5508, 1.442695
    %v5524 = vpow.pop %v5523
    %v5525 = vadd.f32 %v5510, 1.0
    %v5526 = vadd.f32 %v5512, 1.0
    %v5527 = vadd.f32 %v5514, 1.0
    %v5528 = vadd.f32 %v5516, 1.0
    %v5529 = vadd.f32 %v5518, 1.0
    %v5530 = vadd.f32 %v5520, 1.0
    %v5531 = vadd.f32 %v5522, 1.0
    %v5532 = vadd.f32 %v5524, 1.0
    %v5533 = vrcp.pop %v5525
    %v5534 = vmul.f32 1.0, %v5533
    %v5535 = vrcp.pop %v5526
    %v5536 = vmul.f32 1.0, %v5535
    %v5537 = vrcp.pop %v5527
    %v5538 = vmul.f32 1.0, %v5537
    %v5539 = vrcp.pop %v5528
    %v5540 = vmul.f32 1.0, %v5539
    %v5541 = vrcp.pop %v5529
    %v5542 = vmul.f32 1.0, %v5541
    %v5543 = vrcp.pop %v5530
    %v5544 = vmul.f32 1.0, %v5543
    %v5545 = vrcp.pop %v5531
    %v5546 = vmul.f32 1.0, %v5545
    %v5547 = vrcp.pop %v5532
    %v5548 = vmul.f32 1.0, %v5547
    %v5557 = vrot.slane %v5493, 1
    %v5558 = vrot.slane %v5494, 1
    %v5559 = vrot.slane %v5495, 1
    %v5560 = vrot.slane %v5496, 1
    %v5561 = vrot.slane %v5497, 1
    %v5562 = vrot.slane %v5498, 1
    %v5563 = vrot.slane %v5499, 1
    %v5564 = vrot.slane %v5500, 1
    %v5573 = vxor.u32 %v5557, 2147483648
    %v5574 = vxor.u32 %v5558, 2147483648
    %v5575 = vxor.u32 %v5559, 2147483648
    %v5576 = vxor.u32 %v5560, 2147483648
    %v5577 = vxor.u32 %v5561, 2147483648
    %v5578 = vxor.u32 %v5562, 2147483648
    %v5579 = vxor.u32 %v5563, 2147483648
    %v5580 = vxor.u32 %v5564, 2147483648
    %v5581 = vmul.f32 %v5573, 1.442695
    %v5582 = vpow.pop %v5581
    %v5583 = vmul.f32 %v5574, 1.442695
    %v5584 = vpow.pop %v5583
    %v5585 = vmul.f32 %v5575, 1.442695
    %v5586 = vpow.pop %v5585
    %v5587 = vmul.f32 %v5576, 1.442695
    %v5588 = vpow.pop %v5587
    %v5589 = vmul.f32 %v5577, 1.442695
    %v5590 = vpow.pop %v5589
    %v5591 = vmul.f32 %v5578, 1.442695
    %v5592 = vpow.pop %v5591
    %v5593 = vmul.f32 %v5579, 1.442695
    %v5594 = vpow.pop %v5593
    %v5595 = vmul.f32 %v5580, 1.442695
    %v5596 = vpow.pop %v5595
    %v5597 = vadd.f32 %v5582, 1.0
    %v5598 = vadd.f32 %v5584, 1.0
    %v5599 = vadd.f32 %v5586, 1.0
    %v5600 = vadd.f32 %v5588, 1.0
    %v5601 = vadd.f32 %v5590, 1.0
    %v5602 = vadd.f32 %v5592, 1.0
    %v5603 = vadd.f32 %v5594, 1.0
    %v5604 = vadd.f32 %v5596, 1.0
    %v5605 = vrcp.pop %v5597
    %v5606 = vmul.f32 1.0, %v5605
    %v5607 = vrcp.pop %v5598
    %v5608 = vmul.f32 1.0, %v5607
    %v5609 = vrcp.pop %v5599
    %v5610 = vmul.f32 1.0, %v5609
    %v5611 = vrcp.pop %v5600
    %v5612 = vmul.f32 1.0, %v5611
    %v5613 = vrcp.pop %v5601
    %v5614 = vmul.f32 1.0, %v5613
    %v5615 = vrcp.pop %v5602
    %v5616 = vmul.f32 1.0, %v5615
    %v5617 = vrcp.pop %v5603
    %v5618 = vmul.f32 1.0, %v5617
    %v5619 = vrcp.pop %v5604
    %v5620 = vmul.f32 1.0, %v5619
    %v5621 = vrot.slane %v5493, 2
    %v5622 = vrot.slane %v5494, 2
    %v5623 = vrot.slane %v5495, 2
    %v5624 = vrot.slane %v5496, 2
    %v5625 = vrot.slane %v5497, 2
    %v5626 = vrot.slane %v5498, 2
    %v5627 = vrot.slane %v5499, 2
    %v5628 = vrot.slane %v5500, 2
    %v5637 = vtanh.pop %v5621
    %v5638 = vtanh.pop %v5622
    %v5639 = vtanh.pop %v5623
    %v5640 = vtanh.pop %v5624
    %v5641 = vtanh.pop %v5625
    %v5642 = vtanh.pop %v5626
    %v5643 = vtanh.pop %v5627
    %v5644 = vtanh.pop %v5628
    %v5645 = vrot.slane %v5493, 3
    %v5646 = vrot.slane %v5494, 3
    %v5647 = vrot.slane %v5495, 3
    %v5648 = vrot.slane %v5496, 3
    %v5649 = vrot.slane %v5497, 3
    %v5650 = vrot.slane %v5498, 3
    %v5651 = vrot.slane %v5499, 3
    %v5652 = vrot.slane %v5500, 3
    %v5661 = vxor.u32 %v5645, 2147483648
    %v5662 = vxor.u32 %v5646, 2147483648
    %v5663 = vxor.u32 %v5647, 2147483648
    %v5664 = vxor.u32 %v5648, 2147483648
    %v5665 = vxor.u32 %v5649, 2147483648
    %v5666 = vxor.u32 %v5650, 2147483648
    %v5667 = vxor.u32 %v5651, 2147483648
    %v5668 = vxor.u32 %v5652, 2147483648
    %v5669 = vmul.f32 %v5661, 1.442695
    %v5670 = vpow.pop %v5669
    %v5671 = vmul.f32 %v5662, 1.442695
    %v5672 = vpow.pop %v5671
    %v5673 = vmul.f32 %v5663, 1.442695
    %v5674 = vpow.pop %v5673
    %v5675 = vmul.f32 %v5664, 1.442695
    %v5676 = vpow.pop %v5675
    %v5677 = vmul.f32 %v5665, 1.442695
    %v5678 = vpow.pop %v5677
    %v5679 = vmul.f32 %v5666, 1.442695
    %v5680 = vpow.pop %v5679
    %v5681 = vmul.f32 %v5667, 1.442695
    %v5682 = vpow.pop %v5681
    %v5683 = vmul.f32 %v5668, 1.442695
    %v5684 = vpow.pop %v5683
    %v5685 = vadd.f32 %v5670, 1.0
    %v5686 = vadd.f32 %v5672, 1.0
    %v5687 = vadd.f32 %v5674, 1.0
    %v5688 = vadd.f32 %v5676, 1.0
    %v5689 = vadd.f32 %v5678, 1.0
    %v5690 = vadd.f32 %v5680, 1.0
    %v5691 = vadd.f32 %v5682, 1.0
    %v5692 = vadd.f32 %v5684, 1.0
    %v5693 = vrcp.pop %v5685
    %v5694 = vmul.f32 1.0, %v5693
    %v5695 = vrcp.pop %v5686
    %v5696 = vmul.f32 1.0, %v5695
    %v5697 = vrcp.pop %v5687
    %v5698 = vmul.f32 1.0, %v5697
    %v5699 = vrcp.pop %v5688
    %v5700 = vmul.f32 1.0, %v5699
    %v5701 = vrcp.pop %v5689
    %v5702 = vmul.f32 1.0, %v5701
    %v5703 = vrcp.pop %v5690
    %v5704 = vmul.f32 1.0, %v5703
    %v5705 = vrcp.pop %v5691
    %v5706 = vmul.f32 1.0, %v5705
    %v5707 = vrcp.pop %v5692
    %v5708 = vmul.f32 1.0, %v5707
    %v5709 = vmul.f32 %v5606, %v5051
    %v5710 = vmul.f32 %v5608, %v5052
    %v5711 = vmul.f32 %v5610, %v5053
    %v5712 = vmul.f32 %v5612, %v5054
    %v5713 = vmul.f32 %v5614, %v5055
    %v5714 = vmul.f32 %v5616, %v5056
    %v5715 = vmul.f32 %v5618, %v5057
    %v5716 = vmul.f32 %v5620, %v5058
    %v5717 = vmul.f32 %v5534, %v5637
    %v5718 = vmul.f32 %v5536, %v5638
    %v5719 = vmul.f32 %v5538, %v5639
    %v5720 = vmul.f32 %v5540, %v5640
    %v5721 = vmul.f32 %v5542, %v5641
    %v5722 = vmul.f32 %v5544, %v5642
    %v5723 = vmul.f32 %v5546, %v5643
    %v5724 = vmul.f32 %v5548, %v5644
    %v5725 = vadd.f32 %v5709, %v5717
    %v5726 = vadd.f32 %v5710, %v5718
    %v5727 = vadd.f32 %v5711, %v5719
    %v5728 = vadd.f32 %v5712, %v5720
    %v5729 = vadd.f32 %v5713, %v5721
    %v5730 = vadd.f32 %v5714, %v5722
    %v5731 = vadd.f32 %v5715, %v5723
    %v5732 = vadd.f32 %v5716, %v5724
    %v5733 = vtanh.pop %v5725
    %v5734 = vtanh.pop %v5726
    %v5735 = vtanh.pop %v5727
    %v5736 = vtanh.pop %v5728
    %v5737 = vtanh.pop %v5729
    %v5738 = vtanh.pop %v5730
    %v5739 = vtanh.pop %v5731
    %v5740 = vtanh.pop %v5732
    %v5741 = vmul.f32 %v5694, %v5733
    %v5742 = vmul.f32 %v5696, %v5734
    %v5743 = vmul.f32 %v5698, %v5735
    %v5744 = vmul.f32 %v5700, %v5736
    %v5745 = vmul.f32 %v5702, %v5737
    %v5746 = vmul.f32 %v5704, %v5738
    %v5747 = vmul.f32 %v5706, %v5739
    %v5748 = vmul.f32 %v5708, %v5740
    %5749 = vst [vmem:[#allocation5 + $0x7] sm:$0x1] %v5741
    %5750 = vst [vmem:[#allocation5 + $0xf] sm:$0x1] %v5742
    %5751 = vst [vmem:[#allocation5 + $0x17] sm:$0x1] %v5743
    %5752 = vst [vmem:[#allocation5 + $0x1f] sm:$0x1] %v5744
    %5753 = vst [vmem:[#allocation5 + $0x27] sm:$0x1] %v5745
    %5754 = vst [vmem:[#allocation5 + $0x2f] sm:$0x1] %v5746
    %5755 = vst [vmem:[#allocation5 + $0x37] sm:$0x1] %v5747
    %5756 = vst [vmem:[#allocation5 + $0x3f] sm:$0x1] %v5748
    %v5765 = vcombine.low %v5741, %v5742
    %v5766 = vcombine.low %v5743, %v5744
    %v5767 = vcombine.low %v5745, %v5746
    %v5768 = vcombine.low %v5747, %v5748
    %v5770 = vunpack.c.l.s4 1966171168
    %v5771 = vunpack.c.0.s8 %v5770
    %v5772 = vlaneseq
    %v5773 = vshrl.u32 %v5772, 7
    %v5774 = vsub.s32 %v5771, %v5773
    %v5775 = vrot.slane %v5765, %v5774
    %v5777 = vunpack.c.l.s4 1966171168
    %v5778 = vunpack.c.0.s8 %v5777
    %v5779 = vlaneseq
    %v5780 = vshrl.u32 %v5779, 7
    %v5781 = vsub.s32 %v5778, %v5780
    %v5782 = vrot.slane %v5766, %v5781
    %v5784 = vunpack.c.l.s4 1966171168
    %v5785 = vunpack.c.0.s8 %v5784
    %v5786 = vlaneseq
    %v5787 = vshrl.u32 %v5786, 7
    %v5788 = vsub.s32 %v5785, %v5787
    %v5789 = vrot.slane %v5767, %v5788
    %v5791 = vunpack.c.l.s4 1966171168
    %v5792 = vunpack.c.0.s8 %v5791
    %v5793 = vlaneseq
    %v5794 = vshrl.u32 %v5793, 7
    %v5795 = vsub.s32 %v5792, %v5794
    %v5796 = vrot.slane %v5768, %v5795
    %v5797 = vcombine.low %v5775, %v5782
    %v5798 = vcombine.low %v5789, %v5796
    %v5800 = vunpack.c.l.s4 1966171168
    %v5801 = vunpack.c.0.s8 %v5800
    %v5802 = vlaneseq
    %v5803 = vshrl.u32 %v5802, 7
    %v5804 = vsub.s32 %v5801, %v5803
    %v5805 = vrot.slane %v5797, %v5804
    %v5807 = vunpack.c.l.s4 1966171168
    %v5808 = vunpack.c.0.s8 %v5807
    %v5809 = vlaneseq
    %v5810 = vshrl.u32 %v5809, 7
    %v5811 = vsub.s32 %v5808, %v5810
    %v5812 = vrot.slane %v5798, %v5811
    %v5813 = vcombine.low %v5805, %v5812
    %5815 = vst [vmem:[#allocation2] sm:$0xff] %v5813
    %v5824 = vcombine.low %v5725, %v5726
    %v5825 = vcombine.low %v5727, %v5728
    %v5826 = vcombine.low %v5729, %v5730
    %v5827 = vcombine.low %v5731, %v5732
    %v5829 = vunpack.c.l.s4 1966171168
    %v5830 = vunpack.c.0.s8 %v5829
    %v5831 = vlaneseq
    %v5832 = vshrl.u32 %v5831, 7
    %v5833 = vsub.s32 %v5830, %v5832
    %v5834 = vrot.slane %v5824, %v5833
    %v5836 = vunpack.c.l.s4 1966171168
    %v5837 = vunpack.c.0.s8 %v5836
    %v5838 = vlaneseq
    %v5839 = vshrl.u32 %v5838, 7
    %v5840 = vsub.s32 %v5837, %v5839
    %v5841 = vrot.slane %v5825, %v5840
    %v5843 = vunpack.c.l.s4 1966171168
    %v5844 = vunpack.c.0.s8 %v5843
    %v5845 = vlaneseq
    %v5846 = vshrl.u32 %v5845, 7
    %v5847 = vsub.s32 %v5844, %v5846
    %v5848 = vrot.slane %v5826, %v5847
    %v5850 = vunpack.c.l.s4 1966171168
    %v5851 = vunpack.c.0.s8 %v5850
    %v5852 = vlaneseq
    %v5853 = vshrl.u32 %v5852, 7
    %v5854 = vsub.s32 %v5851, %v5853
    %v5855 = vrot.slane %v5827, %v5854
    %v5856 = vcombine.low %v5834, %v5841
    %v5857 = vcombine.low %v5848, %v5855
    %v5859 = vunpack.c.l.s4 1966171168
    %v5860 = vunpack.c.0.s8 %v5859
    %v5861 = vlaneseq
    %v5862 = vshrl.u32 %v5861, 7
    %v5863 = vsub.s32 %v5860, %v5862
    %v5864 = vrot.slane %v5856, %v5863
    %v5866 = vunpack.c.l.s4 1966171168
    %v5867 = vunpack.c.0.s8 %v5866
    %v5868 = vlaneseq
    %v5869 = vshrl.u32 %v5868, 7
    %v5870 = vsub.s32 %v5867, %v5869
    %v5871 = vrot.slane %v5857, %v5870
    %v5872 = vcombine.low %v5864, %v5871
    %5874 = vst [vmem:[#allocation3] sm:$0xff] %v5872
    %v5875 = vld [vmem:[#allocation5] sm:$0xff]
    %v5876 = vld [vmem:[#allocation5 + $0x8] sm:$0xff]
    %v5877 = vld [vmem:[#allocation5 + $0x10] sm:$0xff]
    %v5878 = vld [vmem:[#allocation5 + $0x18] sm:$0xff]
    %v5879 = vld [vmem:[#allocation5 + $0x20] sm:$0xff]
    %v5880 = vld [vmem:[#allocation5 + $0x28] sm:$0xff]
    %v5881 = vld [vmem:[#allocation5 + $0x30] sm:$0xff]
    %v5882 = vld [vmem:[#allocation5 + $0x38] sm:$0xff]
    %5883 = vst [vmem:[#allocation15] sm:$0xff] %v5875
    %5884 = vst [vmem:[#allocation15 + $0x8] sm:$0xff] %v5876
    %5885 = vst [vmem:[#allocation15 + $0x10] sm:$0xff] %v5877
    %5886 = vst [vmem:[#allocation15 + $0x18] sm:$0xff] %v5878
    %5887 = vst [vmem:[#allocation15 + $0x20] sm:$0xff] %v5879
    %5888 = vst [vmem:[#allocation15 + $0x28] sm:$0xff] %v5880
    %5889 = vst [vmem:[#allocation15 + $0x30] sm:$0xff] %v5881
    %5890 = vst [vmem:[#allocation15 + $0x38] sm:$0xff] %v5882
    %v5891 = vld [vmem:[#allocation5] sm:$0xff]
    %v5892 = vld [vmem:[#allocation5 + $0x8] sm:$0xff]
    %v5893 = vld [vmem:[#allocation5 + $0x10] sm:$0xff]
    %v5894 = vld [vmem:[#allocation5 + $0x18] sm:$0xff]
    %v5895 = vld [vmem:[#allocation5 + $0x20] sm:$0xff]
    %v5896 = vld [vmem:[#allocation5 + $0x28] sm:$0xff]
    %v5897 = vld [vmem:[#allocation5 + $0x30] sm:$0xff]
    %v5898 = vld [vmem:[#allocation5 + $0x38] sm:$0xff]
    %v5899 = vpack.c.bf16 %v5892, %v5891
    %v5900 = vpack.c.bf16 %v5894, %v5893
    %v5901 = vpack.c.bf16 %v5896, %v5895
    %v5902 = vpack.c.bf16 %v5898, %v5897
    %v5903 = vld [vmem:[#allocation12] sm:$0xf]
    %v5904 = vld [vmem:[#allocation12 + $0x4] sm:$0xf]
    %v5905 = vld [vmem:[#allocation12 + $0x8] sm:$0xf]
    %v5906 = vld [vmem:[#allocation12 + $0xc] sm:$0xf]
    %v5907 = vld [vmem:[#allocation12 + $0x10] sm:$0xf]
    %v5908 = vld [vmem:[#allocation12 + $0x14] sm:$0xf]
    %v5909 = vld [vmem:[#allocation12 + $0x18] sm:$0xf]
    %v5910 = vld [vmem:[#allocation12 + $0x1c] sm:$0xf]
    %v5911 = vld [vmem:[#allocation12 + $0x20] sm:$0xf]
    %v5912 = vld [vmem:[#allocation12 + $0x24] sm:$0xf]
    %v5913 = vld [vmem:[#allocation12 + $0x28] sm:$0xf]
    %v5914 = vld [vmem:[#allocation12 + $0x2c] sm:$0xf]
    %v5915 = vld [vmem:[#allocation12 + $0x30] sm:$0xf]
    %v5916 = vld [vmem:[#allocation12 + $0x34] sm:$0xf]
    %v5917 = vld [vmem:[#allocation12 + $0x38] sm:$0xf]
    %v5918 = vld [vmem:[#allocation12 + $0x3c] sm:$0xf]
    %v5919 = vld [vmem:[%s5] sm:$0x1]
    %v5921 = vlaneseq
    %v5922 = vshrl.u32 %v5921, 7
    %v5923 = vsub.s32 0, %v5922
    %v5924 = vrot.slane %v5919, %v5923
    %v5942 = vunpack.c.l.b16 %v5903
    %v5943 = vunpack.c.l.b16 %v5904
    %v5944 = vunpack.c.l.b16 %v5905
    %v5945 = vunpack.c.l.b16 %v5906
    %v5946 = vunpack.c.l.b16 %v5907
    %v5947 = vunpack.c.l.b16 %v5908
    %v5948 = vunpack.c.l.b16 %v5909
    %v5949 = vunpack.c.l.b16 %v5910
    %v5950 = vunpack.c.l.b16 %v5911
    %v5951 = vunpack.c.l.b16 %v5912
    %v5952 = vunpack.c.l.b16 %v5913
    %v5953 = vunpack.c.l.b16 %v5914
    %v5954 = vunpack.c.l.b16 %v5915
    %v5955 = vunpack.c.l.b16 %v5916
    %v5956 = vunpack.c.l.b16 %v5917
    %v5957 = vunpack.c.l.b16 %v5918
    %v5958 = vpack.c.b16 %v5943, %v5942
    %v5959 = vpack.c.b16 %v5945, %v5944
    %v5960 = vpack.c.b16 %v5947, %v5946
    %v5961 = vpack.c.b16 %v5949, %v5948
    %v5962 = vpack.c.b16 %v5951, %v5950
    %v5963 = vpack.c.b16 %v5953, %v5952
    %v5964 = vpack.c.b16 %v5955, %v5954
    %v5965 = vpack.c.b16 %v5957, %v5956
    %5974 = vmatprep.subr.bf16.mxu0 0
    %5975 = vmatpush1.bf16.msra.mxu0 %v5958
    %5976 = vmatprep.subr.bf16.mxu0 0
    %5977 = vmatpush1.bf16.msra.mxu0 %v5959
    %5978 = vmatprep.subr.bf16.mxu0 0
    %5979 = vmatpush1.bf16.msra.mxu0 %v5960
    %5980 = vmatprep.subr.bf16.mxu0 0
    %5981 = vmatpush1.bf16.msra.mxu0 %v5961
    %5982 = vmatprep.subr.bf16.mxu0 0
    %5983 = vmatpush1.bf16.msra.mxu0 %v5962
    %5984 = vmatprep.subr.bf16.mxu0 0
    %5985 = vmatpush1.bf16.msra.mxu0 %v5963
    %5986 = vmatprep.subr.bf16.mxu0 0
    %5987 = vmatpush1.bf16.msra.mxu0 %v5964
    %5988 = vmatprep.subr.bf16.mxu0 0
    %5989 = vmatpush1.bf16.msra.mxu0 %v5965
    %5990 = vmatprep.subr.bf16.mxu0 0
    %5991 = vmatpush1.bf16.msra.mxu0 0
    %5992 = vmatprep.subr.bf16.mxu0 0
    %5993 = vmatpush1.bf16.msra.mxu0 0
    %5994 = vmatprep.subr.bf16.mxu0 0
    %5995 = vmatpush1.bf16.msra.mxu0 0
    %5996 = vmatprep.subr.bf16.mxu0 0
    %5997 = vmatpush1.bf16.msra.mxu0 0
    %5998 = vmatprep.subr.bf16.mxu0 0
    %5999 = vmatpush1.bf16.msra.mxu0 0
    %6000 = vmatprep.subr.bf16.mxu0 0
    %6001 = vmatpush1.bf16.msra.mxu0 0
    %6002 = vmatprep.subr.bf16.mxu0 0
    %6003 = vmatpush1.bf16.msra.mxu0 0
    %6004 = vmatprep.subr.bf16.mxu0 0
    %6005 = vmatpush1.bf16.msra.mxu0 0
    %6006 = vmatprep.mubr.bf16.mxu0 0
    %6007 = vmatmul.mubr.bf16.gmra.mrb[0].mxu0 %v5899
    %v6008 = vpop.f32.mrb[0].mxu0
    %v6009 = vadd.f32 %v5924, %v6008
    %v6010 = vpop.f32.mrb[0].mxu0
    %v6011 = vpop.f32.mrb[0].mxu0
    %v6012 = vadd.f32 %v5924, %v6011
    %v6013 = vpop.f32.mrb[0].mxu0
    %6014 = vmatprep.mubr.bf16.mxu0 0
    %6015 = vmatmul.mubr.bf16.gmra.mrb[0].mxu0 %v5900
    %v6016 = vpop.f32.mrb[0].mxu0
    %v6017 = vadd.f32 %v5924, %v6016
    %v6018 = vpop.f32.mrb[0].mxu0
    %v6019 = vpop.f32.mrb[0].mxu0
    %v6020 = vadd.f32 %v5924, %v6019
    %v6021 = vpop.f32.mrb[0].mxu0
    %6022 = vmatprep.mubr.bf16.mxu0 0
    %6023 = vmatmul.mubr.bf16.gmra.mrb[0].mxu0 %v5901
    %v6024 = vpop.f32.mrb[0].mxu0
    %v6025 = vadd.f32 %v5924, %v6024
    %v6026 = vpop.f32.mrb[0].mxu0
    %v6027 = vpop.f32.mrb[0].mxu0
    %v6028 = vadd.f32 %v5924, %v6027
    %v6029 = vpop.f32.mrb[0].mxu0
    %6030 = vmatprep.mubr.bf16.mxu0 0
    %6031 = vmatmul.mubr.bf16.gmra.mrb[0].mxu0 %v5902
    %v6032 = vpop.f32.mrb[0].mxu0
    %v6033 = vadd.f32 %v5924, %v6032
    %v6034 = vpop.f32.mrb[0].mxu0
    %v6035 = vpop.f32.mrb[0].mxu0
    %v6036 = vadd.f32 %v5924, %v6035
    %v6037 = vpop.f32.mrb[0].mxu0
    %6038 = vdwg.mxu0
    %v6039 = vxor.u32 %v6009, 2147483648
    %v6040 = vxor.u32 %v6012, 2147483648
    %v6041 = vxor.u32 %v6017, 2147483648
    %v6042 = vxor.u32 %v6020, 2147483648
    %v6043 = vxor.u32 %v6025, 2147483648
    %v6044 = vxor.u32 %v6028, 2147483648
    %v6045 = vxor.u32 %v6033, 2147483648
    %v6046 = vxor.u32 %v6036, 2147483648
    %v6047 = vmul.f32 %v6039, 1.442695
    %v6048 = vpow.pop %v6047
    %v6049 = vmul.f32 %v6040, 1.442695
    %v6050 = vpow.pop %v6049
    %v6051 = vmul.f32 %v6041, 1.442695
    %v6052 = vpow.pop %v6051
    %v6053 = vmul.f32 %v6042, 1.442695
    %v6054 = vpow.pop %v6053
    %v6055 = vmul.f32 %v6043, 1.442695
    %v6056 = vpow.pop %v6055
    %v6057 = vmul.f32 %v6044, 1.442695
    %v6058 = vpow.pop %v6057
    %v6059 = vmul.f32 %v6045, 1.442695
    %v6060 = vpow.pop %v6059
    %v6061 = vmul.f32 %v6046, 1.442695
    %v6062 = vpow.pop %v6061
    %v6063 = vadd.f32 %v6048, 1.0
    %v6064 = vadd.f32 %v6050, 1.0
    %v6065 = vadd.f32 %v6052, 1.0
    %v6066 = vadd.f32 %v6054, 1.0
    %v6067 = vadd.f32 %v6056, 1.0
    %v6068 = vadd.f32 %v6058, 1.0
    %v6069 = vadd.f32 %v6060, 1.0
    %v6070 = vadd.f32 %v6062, 1.0
    %v6071 = vrcp.pop %v6063
    %v6072 = vmul.f32 1.0, %v6071
    %v6073 = vrcp.pop %v6064
    %v6074 = vmul.f32 1.0, %v6073
    %v6075 = vrcp.pop %v6065
    %v6076 = vmul.f32 1.0, %v6075
    %v6077 = vrcp.pop %v6066
    %v6078 = vmul.f32 1.0, %v6077
    %v6079 = vrcp.pop %v6067
    %v6080 = vmul.f32 1.0, %v6079
    %v6081 = vrcp.pop %v6068
    %v6082 = vmul.f32 1.0, %v6081
    %v6083 = vrcp.pop %v6069
    %v6084 = vmul.f32 1.0, %v6083
    %v6085 = vrcp.pop %v6070
    %v6086 = vmul.f32 1.0, %v6085
    %6087 = vst [vmem:[#allocation14] sm:$0xff] %v6072
    %6088 = vst [vmem:[#allocation14 + $0x8] sm:$0xff] %v6074
    %6089 = vst [vmem:[#allocation14 + $0x10] sm:$0xff] %v6076
    %6090 = vst [vmem:[#allocation14 + $0x18] sm:$0xff] %v6078
    %6091 = vst [vmem:[#allocation14 + $0x20] sm:$0xff] %v6080
    %6092 = vst [vmem:[#allocation14 + $0x28] sm:$0xff] %v6082
    %6093 = vst [vmem:[#allocation14 + $0x30] sm:$0xff] %v6084
    %6094 = vst [vmem:[#allocation14 + $0x38] sm:$0xff] %v6086
    // Predicated region
    $region46: #{tpu_custom_call.1} parent=1 // pred_check
      _
    $region47: #{tpu_custom_call.1} parent=1 // pred_check_branch
      %6096 = sbr.rel (0) target = $region49
    $region48: #{tpu_custom_call.1} parent=1 // pred_region
      %s6098 = ssub.s32 1024, 1024
      %6099 = vsyncadd [#allocation8], %s6098
      %s6100 = sshll.u32 [#allocation14], 4
      %s6101 = int_to_ptr.vmem [resolvable:$true] %s6100
      %6106 = dma.vmem_to_hbm [thread:$0]  %s6101, 1024, %s6, [#allocation8], 128, 128, 8
    $region49: #{tpu_custom_call.1} parent=1 // pred_fallthru
      _
    // Predicated region
    $region50: #{tpu_custom_call.1} parent=1 // pred_check
      _
    $region51: #{tpu_custom_call.1} parent=1 // pred_check_branch
      %6108 = sbr.rel (0) target = $region53
    $region52: #{tpu_custom_call.1} parent=1 // pred_region
      %s6110 = ssub.s32 1024, 1024
      %6111 = vsyncadd [#allocation16], %s6110
      %s6112 = sshll.u32 [#allocation15], 4
      %s6113 = int_to_ptr.vmem [resolvable:$true] %s6112
      %6118 = dma.vmem_to_hbm [thread:$0]  %s6113, 1024, %s7, [#allocation16], 128, 128, 8
    $region53: #{tpu_custom_call.1} parent=1 // pred_fallthru
      _
    // Predicated region
    $region54: #{tpu_custom_call.1} parent=1 // pred_check
      _
    $region55: #{tpu_custom_call.1} parent=1 // pred_check_branch
      %6120 = sbr.rel (0) target = $region57
    $region56: #{tpu_custom_call.1} parent=1 // pred_region
      %6121 = dma.done [#allocation8], 1024
    $region57: #{tpu_custom_call.1} parent=1 // pred_fallthru
      _
    // Predicated region
    $region58: #{tpu_custom_call.1} parent=1 // pred_check
      _
    $region59: #{tpu_custom_call.1} parent=1 // pred_check_branch
      %6123 = sbr.rel (0) target = $region61
    $region60: #{tpu_custom_call.1} parent=1 // pred_region
      %6124 = dma.done [#allocation16], 1024
    $region61: #{tpu_custom_call.1} parent=1 // pred_fallthru
      _
    %6125 = vsyncpa [#allocation7], 1
    %6126 = vsyncpa [#allocation10], 1
    %6127 = vsyncpa [#allocation13], 1
    %6128 = vsyncpa [#allocation8], 1
    %6129 = vsyncpa [#allocation16], 1

</llo_original>
